<compile_context>
chip_gen: v6e
topology: v6e:2x2x1
jax: 0.10.0
libtpu: 0.0.40
codegen_flags: <defaults>
</compile_context>

<pallas_src>
import numpy as np
import jax
import jax.numpy as jnp
from jax.experimental import pallas as pl
from jax.experimental.pallas import tpu as pltpu


def _round_up(x, m):
    return (x + m - 1) // m * m


# ----------------------------------------------------------------------------
# Fused GRU-stack kernel: all layers, one time chunk per grid step.
#   len_ref  : (Bp, 1)          int32  sequence lengths (absolute)
#   x_ref    : (Tm*Bp, Dp)      bf16   layer-0 inputs for this chunk (flat)
#   wih0_ref : (Dp, 3*Hp)       bf16   W_ih^T, layer 0 (gate-block padded)
#   wihr_ref : (Lr, Hp, 3*Hp)   bf16   W_ih^T, layers >= 1
#   whh_ref  : (L, Hp, 3*Hp)    f32    W_hh^T (f32: no compounding bf16 error)
#   bgi_ref  : (L, 1, 3*Hp)     f32    b_ih + [b_hr, b_hz, 0]   (folded)
#   bhn_ref  : (L, 1, Hp)       f32    b_hn (n-gate hidden bias)
#   h0_ref   : (L, Bp, Hp)      f32    initial hidden state
#   out_ref  : (Tm, Bp, Hp)     f32    last-layer outputs (padded positions = 0)
#   hN_ref   : (L, Bp, Hp)      f32    hidden state; resident carry across chunks
#   x_scr    : (Tm, Bp, Hp)     f32    inter-layer activations (VMEM)
#   gi_scr   : (Tm, Bp, 3*Hp)   bf16   per-chunk input projection (VMEM)
# ----------------------------------------------------------------------------
def _gru_stack_kernel(len_ref, x_ref, wih0_ref, wihr_ref, whh_ref, bgi_ref,
                      bhn_ref, h0_ref, out_ref, hN_ref, x_scr, gi_scr):
    Tm, Bp, Hp = out_ref.shape
    n_layers = h0_ref.shape[0]
    c = pl.program_id(0)

    @pl.when(c == 0)
    def _():
        hN_ref[...] = h0_ref[...]          # seed the resident hidden carry

    lens = len_ref[...]                    # (Bp, 1) int32, loaded once
    t_base = c * Tm                        # global time offset of this chunk
    unroll = True if Tm <= 32 else 8

    for l in range(n_layers):              # static layer loop
        # ---- bulk input projection for the whole chunk (one bf16 matmul) ----
        if l == 0:
            x2d = x_ref[...]                                    # (Tm*Bp, Dp) bf16
            w_in = wih0_ref[...]
        else:
            x2d = x_scr[...].reshape(Tm * Bp, Hp).astype(jnp.bfloat16)
            w_in = wihr_ref[l - 1]
        gi = jnp.dot(x2d, w_in, preferred_element_type=jnp.float32) + bgi_ref[l]
        gi_scr[...] = gi.reshape(Tm, Bp, 3 * Hp).astype(jnp.bfloat16)

        whh = whh_ref[l]                   # (Hp, 3Hp) f32, hoisted out of loop
        bhn = bhn_ref[l]                   # (1, Hp)   f32
        dst = out_ref if l == n_layers - 1 else x_scr

        def step(t, h):
            gi_t = gi_scr[t].astype(jnp.float32)               # (Bp, 3Hp)
            gh = jnp.dot(h, whh, preferred_element_type=jnp.float32)
            # PyTorch gate order [reset, update, new]; 128-aligned lane blocks.
            r = jax.nn.sigmoid(gi_t[:, 0:Hp] + gh[:, 0:Hp])
            z = jax.nn.sigmoid(gi_t[:, Hp:2 * Hp] + gh[:, Hp:2 * Hp])
            n = jnp.tanh(gi_t[:, 2 * Hp:3 * Hp] + r * (gh[:, 2 * Hp:3 * Hp] + bhn))
            h_new = (1.0 - z) * n + z * h
            # For finished sequences (t >= len) the comparison is False:
            # h freezes (pack_padded) and the emitted output is zero (pad_packed).
            mask = (t_base + t) < lens                         # (Bp, 1) bool
            dst[t] = jnp.where(mask, h_new, 0.0).astype(dst.dtype)
            return jnp.where(mask, h_new, h)

        hN_ref[l] = jax.lax.fori_loop(0, Tm, step, hN_ref[l], unroll=unroll)


# ----------------------------------------------------------------------------
# VMEM sizing helpers (pessimistic: assume every pipelined block is
# double-buffered), used both to pick the time chunk and to set the limit.
# ----------------------------------------------------------------------------
def _vmem_footprint(Tm, Bp, Dp, Hp, L, Lr):
    BF, F32 = 2, 4
    x_blk = Tm * Bp * Dp * BF
    out_blk = Tm * Bp * Hp * F32
    weights = (Dp * 3 * Hp * BF + Lr * Hp * 3 * Hp * BF
               + L * Hp * 3 * Hp * F32 + L * 3 * Hp * F32 + L * Hp * F32)
    state = 2 * L * Bp * Hp * F32 + Bp * 4
    scratch = Tm * Bp * Hp * F32 + Tm * Bp * 3 * Hp * BF
    return 2 * (x_blk + out_blk + weights + state) + scratch


def _choose_time_chunk(Bp, Dp, Hp, L, Lr):
    try:
        cap = int(getattr(pltpu.get_tpu_info(), "vmem_capacity_bytes", 64 << 20))
    except Exception:
        cap = 64 << 20                      # conservative (v7x per-TC) fallback
    budget = int(cap * 0.6)                 # headroom for compiler temporaries
    tm = 256
    while tm > 8 and _vmem_footprint(tm, Bp, Dp, Hp, L, Lr) > budget:
        tm //= 2
    return tm


# ----------------------------------------------------------------------------
# Parameter init (mirrors nn.Embedding / nn.GRU) and one-time prep:
# transpose, per-gate 128-lane padding, bias folding, bf16 casts.
# ----------------------------------------------------------------------------
def init_encoder_params(key, vocab_size, embed_dim, style_embed_dim,
                        hidden_dim, num_styles, n_layers):
    keys = jax.random.split(key, 2 + 4 * n_layers)
    params = {
        "text_emb": jax.random.normal(keys[0], (vocab_size, embed_dim), jnp.float32),
        "style_emb": jax.random.normal(keys[1], (num_styles, style_embed_dim), jnp.float32),
        "gru": [],
    }
    bound = 1.0 / np.sqrt(hidden_dim)
    for l in range(n_layers):
        in_size = embed_dim + style_embed_dim if l == 0 else hidden_dim
        k = keys[2 + 4 * l: 2 + 4 * (l + 1)]
        params["gru"].append({
            "w_ih": jax.random.uniform(k[0], (3 * hidden_dim, in_size),
                                       jnp.float32, -bound, bound),
            "w_hh": jax.random.uniform(k[1], (3 * hidden_dim, hidden_dim),
                                       jnp.float32, -bound, bound),
            "b_ih": jax.random.uniform(k[2], (3 * hidden_dim,),
                                       jnp.float32, -bound, bound),
            "b_hh": jax.random.uniform(k[3], (3 * hidden_dim,),
                                       jnp.float32, -bound, bound),
        })
    return params


def prepare_encoder_params(params, lane=128):
    H = params["gru"][0]["w_hh"].shape[1]
    D = params["gru"][0]["w_ih"].shape[1]
    Hp = _round_up(H, lane)
    Dp = _round_up(D, lane)
    L = len(params["gru"])

    def pad_gate_mat(w, in_pad):            # (3H, IN) -> (in_pad, 3*Hp), transposed
        in_dim = w.shape[1]
        wt = w.T.reshape(in_dim, 3, H)
        wt = jnp.pad(wt, ((0, in_pad - in_dim), (0, 0), (0, Hp - H)))
        return wt.reshape(in_pad, 3 * Hp)

    def pad_gate_rows(b3):                  # (3, H) -> (1, 3*Hp)
        return jnp.pad(b3, ((0, 0), (0, Hp - H))).reshape(1, 3 * Hp)

    wih0 = None
    wihr, whh, bgi, bhn = [], [], [], []
    for l, layer in enumerate(params["gru"]):
        whh.append(pad_gate_mat(layer["w_hh"], Hp))
        b_ih = layer["b_ih"].reshape(3, H)
        b_hh = layer["b_hh"].reshape(3, H)
        # Fold b_hh[r], b_hh[z] into the (per-chunk, off-critical-path) gi bias.
        bgi.append(pad_gate_rows(jnp.stack([b_ih[0] + b_hh[0],
                                            b_ih[1] + b_hh[1],
                                            b_ih[2]])))
        bhn.append(jnp.pad(b_hh[2], (0, Hp - H)).reshape(1, Hp))
        if l == 0:
            wih0 = pad_gate_mat(layer["w_ih"], Dp).astype(jnp.bfloat16)
        else:
            wihr.append(pad_gate_mat(layer["w_ih"], Hp))
    if not wihr:                            # keep a non-empty (unused) slab for L=1
        wihr = [jnp.zeros((Hp, 3 * Hp), jnp.float32)]

    return {
        "text_emb": params["text_emb"], "style_emb": params["style_emb"],
        "wih0_p": wih0,                                   # (Dp, 3Hp) bf16
        "wihr_p": jnp.stack(wihr).astype(jnp.bfloat16),   # (Lr, Hp, 3Hp) bf16
        "whh_p": jnp.stack(whh),                          # (L, Hp, 3Hp) f32
        "bgi_p": jnp.stack(bgi),                          # (L, 1, 3Hp) f32
        "bhn_p": jnp.stack(bhn),                          # (L, 1, Hp)  f32
        "H": H, "Hp": Hp, "D": D, "Dp": Dp, "n_layers": L,
    }


# ----------------------------------------------------------------------------
# Encoder.forward equivalent.
#   input_sequences:   (T, B) int32 token ids   (time-major, batch_first=False)
#   sequences_styles:  (T, B) int32 style ids
#   sequences_lengths: (B,)   host ints (sorted descending, as pack_padded requires)
#   hidden:            optional (n_layers, B, H)
# Returns: outputs (t_max, B, H), hidden (n_layers, B, H)
# ----------------------------------------------------------------------------
def encoder_forward(prepared, input_sequences, sequences_styles, sequences_lengths,
                    hidden=None, time_chunk=None):
    text_emb = prepared["text_emb"][input_sequences]        # (T, B, E)
    style_emb = prepared["style_emb"][sequences_styles]     # (T, B, SE)
    x = jnp.concatenate([text_emb, style_emb], axis=2).astype(jnp.float32)

    T, B, D = x.shape
    H, Hp, Dp, L = prepared["H"], prepared["Hp"], prepared["Dp"], prepared["n_layers"]
    Lr = prepared["wihr_p"].shape[0]
    Bp = _round_up(B, 8)

    lengths_np = np.asarray(sequences_lengths, dtype=np.int32)
    t_max = int(lengths_np.max())           # recurrence only runs to the longest seq

    if time_chunk is None:
        time_chunk = _choose_time_chunk(Bp, Dp, Hp, L, Lr)
    Tm = max(1, min(time_chunk, t_max))
    n_chunks = -(-t_max // Tm)
    T_pad = n_chunks * Tm

    lens_p = np.zeros((Bp, 1), np.int32)
    lens_p[:B, 0] = lengths_np
    lens_p = jnp.asarray(lens_p)

    # Lane/batch/time padding + bf16 cast of the raw inputs; padded rows/lanes
    # are zero and masked inside the kernel.  (t_max*Bp*Dp*2 bytes total — no
    # padded 3*Hp-wide f32 gi tensor ever touches HBM.)
    x_p = jnp.pad(x[:t_max], ((0, T_pad - t_max), (0, Bp - B), (0, Dp - D)))
    x_p = x_p.reshape(T_pad * Bp, Dp).astype(jnp.bfloat16)

    if hidden is None:
        hidden = jnp.zeros((L, B, H), jnp.float32)
    h0_p = jnp.pad(hidden.astype(jnp.float32), ((0, 0), (0, Bp - B), (0, Hp - H)))

    vmem_limit = int(min(_vmem_footprint(Tm, Bp, Dp, Hp, L, Lr) + (4 << 20),
                         100 << 20))

    out_p, hN_p = pl.pallas_call(
        _gru_stack_kernel,
        out_shape=(jax.ShapeDtypeStruct((T_pad, Bp, Hp), jnp.float32),
                   jax.ShapeDtypeStruct((L, Bp, Hp), jnp.float32)),
        grid_spec=pltpu.PrefetchScalarGridSpec(
            num_scalar_prefetch=0,
            grid=(n_chunks,),
            in_specs=[
                pl.BlockSpec((Bp, 1), lambda c: (0, 0)),                 # lens
                pl.BlockSpec((Tm * Bp, Dp), lambda c: (c, 0)),           # x chunk
                pl.BlockSpec((Dp, 3 * Hp), lambda c: (0, 0)),            # wih0
                pl.BlockSpec((Lr, Hp, 3 * Hp), lambda c: (0, 0, 0)),     # wih l>=1
                pl.BlockSpec((L, Hp, 3 * Hp), lambda c: (0, 0, 0)),      # whh
                pl.BlockSpec((L, 1, 3 * Hp), lambda c: (0, 0, 0)),       # bgi
                pl.BlockSpec((L, 1, Hp), lambda c: (0, 0, 0)),           # bhn
                pl.BlockSpec((L, Bp, Hp), lambda c: (0, 0, 0)),          # h0
            ],
            out_specs=[
                pl.BlockSpec((Tm, Bp, Hp), lambda c: (c, 0, 0)),         # outputs
                pl.BlockSpec((L, Bp, Hp), lambda c: (0, 0, 0)),          # hN (carry)
            ],
            scratch_shapes=[
                pltpu.VMEM((Tm, Bp, Hp), jnp.float32),                   # x_scr
                pltpu.VMEM((Tm, Bp, 3 * Hp), jnp.bfloat16),              # gi_scr
            ],
        ),
        compiler_params=pltpu.CompilerParams(
            dimension_semantics=("arbitrary",),        # hidden carried across chunks
            vmem_limit_bytes=vmem_limit),
    )(lens_p, x_p, prepared["wih0_p"], prepared["wihr_p"], prepared["whh_p"],
      prepared["bgi_p"], prepared["bhn_p"], h0_p)

    return out_p[:t_max, :B, :H], hN_p[:, :B, :H]


# ----------------------------------------------------------------------------
# Pure-JAX reference (PyTorch GRU semantics incl. packing) for a numerics check.
# ----------------------------------------------------------------------------
def _reference_forward(params, input_sequences, sequences_styles, lengths, hidden=None):
    text_emb = params["text_emb"][input_sequences]
    style_emb = params["style_emb"][sequences_styles]
    x = jnp.concatenate([text_emb, style_emb], axis=2).astype(jnp.float32)
    T, B, _ = x.shape
    L = len(params["gru"])
    H = params["gru"][0]["w_hh"].shape[1]
    if hidden is None:
        hidden = jnp.zeros((L, B, H), jnp.float32)
    lengths = jnp.asarray(np.asarray(lengths), jnp.int32)
    ts = jnp.arange(T)
    hs = []
    for l, layer in enumerate(params["gru"]):
        def step(h, inp, layer=layer):
            x_t, t = inp
            gi = x_t @ layer["w_ih"].T + layer["b_ih"]
            gh = h @ layer["w_hh"].T + layer["b_hh"]
            r = jax.nn.sigmoid(gi[:, :H] + gh[:, :H])
            z = jax.nn.sigmoid(gi[:, H:2 * H] + gh[:, H:2 * H])
            n = jnp.tanh(gi[:, 2 * H:] + r * gh[:, 2 * H:])
            h_new = (1.0 - z) * n + z * h
            mask = (t < lengths)[:, None]
            h_upd = jnp.where(mask, h_new, h)
            return h_upd, jnp.where(mask, h_upd, 0.0)
        h_fin, out = jax.lax.scan(step, hidden[l], (x, ts))
        hs.append(h_fin)
        x = out
    t_max = int(np.asarray(lengths).max())
    return x[:t_max], jnp.stack(hs)


if __name__ == "__main__":
    vocab_size = 50
    embed_dim = 24
    style_embed_dim = 8
    hidden_dim = 32
    num_styles = 4
    n_layers = 2
    T, B = 8, 2

    key = jax.random.PRNGKey(0)
    pkey, k_tok, k_sty = jax.random.split(key, 3)
    params = init_encoder_params(pkey, vocab_size, embed_dim, style_embed_dim,
                                 hidden_dim, num_styles, n_layers)
    prepared = prepare_encoder_params(params)

    input_sequences = jax.random.randint(k_tok, (T, B), 0, vocab_size, jnp.int32)
    sequences_styles = jax.random.randint(k_sty, (T, B), 0, num_styles, jnp.int32)
    sequences_lengths = np.array([T, 5], dtype=np.int32)   # sorted descending

    outputs, hidden = encoder_forward(prepared, input_sequences, sequences_styles,
                                      sequences_lengths)
    jax.block_until_ready((outputs, hidden))

    assert outputs.shape == (T, B, hidden_dim)
    assert hidden.shape == (n_layers, B, hidden_dim)

    # Numerics check vs. pure-JAX reference (bf16 input projections -> loose tol).
    ref_out, ref_hid = _reference_forward(params, input_sequences, sequences_styles,
                                          sequences_lengths)
    err_o = float(jnp.max(jnp.abs(outputs - ref_out)))
    err_h = float(jnp.max(jnp.abs(hidden - ref_hid)))
    assert err_o < 5e-2 and err_h < 5e-2, (err_o, err_h)

    print("KERNEL_OK")
</pallas_src>

<mosaic_0001>
module attributes {stable_mosaic.version = 11 : i64} {
  func.func @_gru_stack_kernel(%arg0: i32, %arg1: memref<8x1xi32, #tpu.memory_space<vmem>>, %arg2: memref<64x128xbf16, #tpu.memory_space<vmem>>, %arg3: memref<128x384xbf16, #tpu.memory_space<vmem>>, %arg4: memref<1x128x384xbf16, #tpu.memory_space<vmem>>, %arg5: memref<2x128x384xf32, #tpu.memory_space<vmem>>, %arg6: memref<2x1x384xf32, #tpu.memory_space<vmem>>, %arg7: memref<2x1x128xf32, #tpu.memory_space<vmem>>, %arg8: memref<2x8x128xf32, #tpu.memory_space<vmem>>, %arg9: memref<8x8x128xf32, #tpu.memory_space<vmem>>, %arg10: memref<2x8x128xf32, #tpu.memory_space<vmem>>, %arg11: memref<8x8x128xf32, #tpu.memory_space<vmem>>, %arg12: memref<8x8x384xbf16, #tpu.memory_space<vmem>>) attributes {dimension_semantics = [#tpu.dimension_semantics<arbitrary>], iteration_bounds = array<i64: 1>, scalar_prefetch = 0 : i64, scratch_operands = 2 : i64, tpu.core_type = #tpu.core_type<tc>, window_params = [{pipeline_mode = #tpu.pipeline_mode<synchronous>, transform_indices = @transform_0, window_bounds = array<i64: 8, 1>}, {transform_indices = @transform_1, window_bounds = array<i64: 64, 128>}, {pipeline_mode = #tpu.pipeline_mode<synchronous>, transform_indices = @transform_2, window_bounds = array<i64: 128, 384>}, {pipeline_mode = #tpu.pipeline_mode<synchronous>, transform_indices = @transform_3, window_bounds = array<i64: 1, 128, 384>}, {pipeline_mode = #tpu.pipeline_mode<synchronous>, transform_indices = @transform_4, window_bounds = array<i64: 2, 128, 384>}, {pipeline_mode = #tpu.pipeline_mode<synchronous>, transform_indices = @transform_5, window_bounds = array<i64: 2, 1, 384>}, {pipeline_mode = #tpu.pipeline_mode<synchronous>, transform_indices = @transform_6, window_bounds = array<i64: 2, 1, 128>}, {pipeline_mode = #tpu.pipeline_mode<synchronous>, transform_indices = @transform_7, window_bounds = array<i64: 2, 8, 128>}, {transform_indices = @transform_8, window_bounds = array<i64: 8, 8, 128>}, {pipeline_mode = #tpu.pipeline_mode<synchronous>, transform_indices = @transform_9, window_bounds = array<i64: 2, 8, 128>}]} {
    %c0_i32 = arith.constant 0 : i32
    %0 = arith.cmpi eq, %arg0, %c0_i32 : i32
    %1 = arith.extui %0 : i1 to i32
    %c0_i32_0 = arith.constant 0 : i32
    %2 = arith.cmpi ne, %1, %c0_i32_0 : i32
    scf.if %2 {
      %c0_203 = arith.constant 0 : index
      %c0_204 = arith.constant 0 : index
      %c0_205 = arith.constant 0 : index
      %798 = vector.load %arg8[%c0_203, %c0_204, %c0_205] : memref<2x8x128xf32, #tpu.memory_space<vmem>>, vector<2x8x128xf32>
      %c0_206 = arith.constant 0 : index
      %c0_207 = arith.constant 0 : index
      %c0_208 = arith.constant 0 : index
      %799 = vector.load %arg10[%c0_206, %c0_207, %c0_208] : memref<2x8x128xf32, #tpu.memory_space<vmem>>, vector<2x8x128xf32>
      tpu.vector_store %arg10[%c0_206, %c0_207, %c0_208], %798 {strides = array<i32>} : memref<2x8x128xf32, #tpu.memory_space<vmem>>, vector<2x8x128xf32>,
    } else {
    }
    %c0 = arith.constant 0 : index
    %c0_1 = arith.constant 0 : index
    %3 = vector.load %arg1[%c0, %c0_1] : memref<8x1xi32, #tpu.memory_space<vmem>>, vector<8x1xi32>
    %c8_i32 = arith.constant 8 : i32
    %4 = arith.muli %arg0, %c8_i32 : i32
    %c0_2 = arith.constant 0 : index
    %c0_3 = arith.constant 0 : index
    %5 = vector.load %arg2[%c0_2, %c0_3] : memref<64x128xbf16, #tpu.memory_space<vmem>>, vector<64x128xbf16>
    %c0_4 = arith.constant 0 : index
    %c0_5 = arith.constant 0 : index
    %6 = vector.load %arg3[%c0_4, %c0_5] : memref<128x384xbf16, #tpu.memory_space<vmem>>, vector<128x384xbf16>
    %cst = arith.constant dense<0.000000e+00> : vector<64x384xf32>
    %7 = tpu.matmul %5, %6, %cst {dimension_numbers = #tpu.dot_dimension_numbers<[1], [0], [0], [1], [0, 0, 1, 1], [], []>} : vector<64x128xbf16>, vector<128x384xbf16>, vector<64x384xf32> -> vector<64x384xf32>
    %c0_6 = arith.constant 0 : index
    %c0_7 = arith.constant 0 : index
    %c0_8 = arith.constant 0 : index
    %8 = vector.load %arg6[%c0_6, %c0_7, %c0_8] : memref<2x1x384xf32, #tpu.memory_space<vmem>>, vector<1x1x384xf32>
    %9 = vector.shape_cast %8 : vector<1x1x384xf32> to vector<1x384xf32>
    %10 = vector.broadcast %9 : vector<1x384xf32> to vector<64x384xf32>
    %11 = arith.addf %7, %10 : vector<64x384xf32>
    %12 = vector.shape_cast %11 : vector<64x384xf32> to vector<8x8x384xf32>
    %13 = arith.truncf %12 : vector<8x8x384xf32> to vector<8x8x384xbf16>
    %c0_9 = arith.constant 0 : index
    %c0_10 = arith.constant 0 : index
    %c0_11 = arith.constant 0 : index
    %14 = vector.load %arg12[%c0_9, %c0_10, %c0_11] : memref<8x8x384xbf16, #tpu.memory_space<vmem>>, vector<8x8x384xbf16>
    tpu.vector_store %arg12[%c0_9, %c0_10, %c0_11], %13 {strides = array<i32>} : memref<8x8x384xbf16, #tpu.memory_space<vmem>>, vector<8x8x384xbf16>,
    %c0_12 = arith.constant 0 : index
    %c0_13 = arith.constant 0 : index
    %c0_14 = arith.constant 0 : index
    %15 = vector.load %arg5[%c0_12, %c0_13, %c0_14] : memref<2x128x384xf32, #tpu.memory_space<vmem>>, vector<1x128x384xf32>
    %16 = vector.shape_cast %15 : vector<1x128x384xf32> to vector<128x384xf32>
    %c0_15 = arith.constant 0 : index
    %c0_16 = arith.constant 0 : index
    %c0_17 = arith.constant 0 : index
    %17 = vector.load %arg7[%c0_15, %c0_16, %c0_17] : memref<2x1x128xf32, #tpu.memory_space<vmem>>, vector<1x1x128xf32>
    %18 = vector.shape_cast %17 : vector<1x1x128xf32> to vector<1x128xf32>
    %c0_18 = arith.constant 0 : index
    %c0_19 = arith.constant 0 : index
    %c0_20 = arith.constant 0 : index
    %19 = vector.load %arg10[%c0_18, %c0_19, %c0_20] : memref<2x8x128xf32, #tpu.memory_space<vmem>>, vector<1x8x128xf32>
    %20 = vector.shape_cast %19 : vector<1x8x128xf32> to vector<8x128xf32>
    %c0_i32_21 = arith.constant 0 : i32
    %21 = arith.index_cast %c0_i32_21 : i32 to index
    %c0_22 = arith.constant 0 : index
    %c0_23 = arith.constant 0 : index
    %22 = vector.load %arg12[%21, %c0_22, %c0_23] : memref<8x8x384xbf16, #tpu.memory_space<vmem>>, vector<1x8x384xbf16>
    %23 = vector.shape_cast %22 : vector<1x8x384xbf16> to vector<8x384xbf16>
    %24 = arith.extf %23 : vector<8x384xbf16> to vector<8x384xf32>
    %cst_24 = arith.constant dense<0.000000e+00> : vector<8x384xf32>
    %25 = tpu.matmul %20, %16, %cst_24 {dimension_numbers = #tpu.dot_dimension_numbers<[1], [0], [0], [1], [0, 0, 1, 1], [], []>} : vector<8x128xf32>, vector<128x384xf32>, vector<8x384xf32> -> vector<8x384xf32>
    %26 = vector.extract_strided_slice %24 {offsets = [0, 0], sizes = [8, 128], strides = [1, 1]} : vector<8x384xf32> to vector<8x128xf32>
    %27 = vector.extract_strided_slice %25 {offsets = [0, 0], sizes = [8, 128], strides = [1, 1]} : vector<8x384xf32> to vector<8x128xf32>
    %28 = arith.addf %26, %27 : vector<8x128xf32>
    %29 = arith.negf %28 : vector<8x128xf32>
    %30 = math.exp %29 : vector<8x128xf32>
    %cst_25 = arith.constant 1.000000e+00 : f32
    %31 = vector.broadcast %cst_25 : f32 to vector<8x128xf32>
    %32 = arith.addf %31, %30 : vector<8x128xf32>
    %33 = arith.divf %31, %32 : vector<8x128xf32>
    %34 = vector.extract_strided_slice %24 {offsets = [0, 128], sizes = [8, 128], strides = [1, 1]} : vector<8x384xf32> to vector<8x128xf32>
    %35 = vector.extract_strided_slice %25 {offsets = [0, 128], sizes = [8, 128], strides = [1, 1]} : vector<8x384xf32> to vector<8x128xf32>
    %36 = arith.addf %34, %35 : vector<8x128xf32>
    %37 = arith.negf %36 : vector<8x128xf32>
    %38 = math.exp %37 : vector<8x128xf32>
    %cst_26 = arith.constant 1.000000e+00 : f32
    %39 = vector.broadcast %cst_26 : f32 to vector<8x128xf32>
    %40 = arith.addf %39, %38 : vector<8x128xf32>
    %41 = arith.divf %39, %40 : vector<8x128xf32>
    %42 = vector.extract_strided_slice %24 {offsets = [0, 256], sizes = [8, 128], strides = [1, 1]} : vector<8x384xf32> to vector<8x128xf32>
    %43 = vector.extract_strided_slice %25 {offsets = [0, 256], sizes = [8, 128], strides = [1, 1]} : vector<8x384xf32> to vector<8x128xf32>
    %44 = vector.broadcast %18 : vector<1x128xf32> to vector<8x128xf32>
    %45 = arith.addf %43, %44 : vector<8x128xf32>
    %46 = arith.mulf %33, %45 : vector<8x128xf32>
    %47 = arith.addf %42, %46 : vector<8x128xf32>
    %48 = math.tanh %47 : vector<8x128xf32>
    %cst_27 = arith.constant 1.000000e+00 : f32
    %49 = vector.broadcast %cst_27 : f32 to vector<8x128xf32>
    %50 = arith.subf %49, %41 : vector<8x128xf32>
    %51 = arith.mulf %50, %48 : vector<8x128xf32>
    %52 = arith.mulf %41, %20 : vector<8x128xf32>
    %53 = arith.addf %51, %52 : vector<8x128xf32>
    %54 = arith.addi %4, %c0_i32_21 : i32
    %55 = vector.broadcast %54 : i32 to vector<8x1xi32>
    %56 = arith.cmpi slt, %55, %3 : vector<8x1xi32>
    %cst_28 = arith.constant 0.000000e+00 : f32
    %57 = vector.shape_cast %56 : vector<8x1xi1> to vector<8x1xi1>
    %58 = vector.broadcast %57 : vector<8x1xi1> to vector<8x128xi1>
    %59 = vector.broadcast %cst_28 : f32 to vector<8x128xf32>
    %60 = arith.select %58, %53, %59 : vector<8x128xi1>, vector<8x128xf32>
    %61 = arith.index_cast %c0_i32_21 : i32 to index
    %c0_29 = arith.constant 0 : index
    %c0_30 = arith.constant 0 : index
    %62 = vector.load %arg11[%61, %c0_29, %c0_30] : memref<8x8x128xf32, #tpu.memory_space<vmem>>, vector<1x8x128xf32>
    %63 = vector.shape_cast %62 : vector<1x8x128xf32> to vector<8x128xf32>
    %64 = vector.shape_cast %60 : vector<8x128xf32> to vector<1x8x128xf32>
    tpu.vector_store %arg11[%61, %c0_29, %c0_30], %64 {strides = array<i32>} : memref<8x8x128xf32, #tpu.memory_space<vmem>>, vector<1x8x128xf32>,
    %65 = vector.shape_cast %56 : vector<8x1xi1> to vector<8x1xi1>
    %66 = vector.broadcast %65 : vector<8x1xi1> to vector<8x128xi1>
    %67 = arith.select %66, %53, %20 : vector<8x128xi1>, vector<8x128xf32>
    %c1_i32 = arith.constant 1 : i32
    %68 = arith.index_cast %c1_i32 : i32 to index
    %c0_31 = arith.constant 0 : index
    %c0_32 = arith.constant 0 : index
    %69 = vector.load %arg12[%68, %c0_31, %c0_32] : memref<8x8x384xbf16, #tpu.memory_space<vmem>>, vector<1x8x384xbf16>
    %70 = vector.shape_cast %69 : vector<1x8x384xbf16> to vector<8x384xbf16>
    %71 = arith.extf %70 : vector<8x384xbf16> to vector<8x384xf32>
    %cst_33 = arith.constant dense<0.000000e+00> : vector<8x384xf32>
    %72 = tpu.matmul %67, %16, %cst_33 {dimension_numbers = #tpu.dot_dimension_numbers<[1], [0], [0], [1], [0, 0, 1, 1], [], []>} : vector<8x128xf32>, vector<128x384xf32>, vector<8x384xf32> -> vector<8x384xf32>
    %73 = vector.extract_strided_slice %71 {offsets = [0, 0], sizes = [8, 128], strides = [1, 1]} : vector<8x384xf32> to vector<8x128xf32>
    %74 = vector.extract_strided_slice %72 {offsets = [0, 0], sizes = [8, 128], strides = [1, 1]} : vector<8x384xf32> to vector<8x128xf32>
    %75 = arith.addf %73, %74 : vector<8x128xf32>
    %76 = arith.negf %75 : vector<8x128xf32>
    %77 = math.exp %76 : vector<8x128xf32>
    %cst_34 = arith.constant 1.000000e+00 : f32
    %78 = vector.broadcast %cst_34 : f32 to vector<8x128xf32>
    %79 = arith.addf %78, %77 : vector<8x128xf32>
    %80 = arith.divf %78, %79 : vector<8x128xf32>
    %81 = vector.extract_strided_slice %71 {offsets = [0, 128], sizes = [8, 128], strides = [1, 1]} : vector<8x384xf32> to vector<8x128xf32>
    %82 = vector.extract_strided_slice %72 {offsets = [0, 128], sizes = [8, 128], strides = [1, 1]} : vector<8x384xf32> to vector<8x128xf32>
    %83 = arith.addf %81, %82 : vector<8x128xf32>
    %84 = arith.negf %83 : vector<8x128xf32>
    %85 = math.exp %84 : vector<8x128xf32>
    %cst_35 = arith.constant 1.000000e+00 : f32
    %86 = vector.broadcast %cst_35 : f32 to vector<8x128xf32>
    %87 = arith.addf %86, %85 : vector<8x128xf32>
    %88 = arith.divf %86, %87 : vector<8x128xf32>
    %89 = vector.extract_strided_slice %71 {offsets = [0, 256], sizes = [8, 128], strides = [1, 1]} : vector<8x384xf32> to vector<8x128xf32>
    %90 = vector.extract_strided_slice %72 {offsets = [0, 256], sizes = [8, 128], strides = [1, 1]} : vector<8x384xf32> to vector<8x128xf32>
    %91 = vector.broadcast %18 : vector<1x128xf32> to vector<8x128xf32>
    %92 = arith.addf %90, %91 : vector<8x128xf32>
    %93 = arith.mulf %80, %92 : vector<8x128xf32>
    %94 = arith.addf %89, %93 : vector<8x128xf32>
    %95 = math.tanh %94 : vector<8x128xf32>
    %cst_36 = arith.constant 1.000000e+00 : f32
    %96 = vector.broadcast %cst_36 : f32 to vector<8x128xf32>
    %97 = arith.subf %96, %88 : vector<8x128xf32>
    %98 = arith.mulf %97, %95 : vector<8x128xf32>
    %99 = arith.mulf %88, %67 : vector<8x128xf32>
    %100 = arith.addf %98, %99 : vector<8x128xf32>
    %101 = arith.addi %4, %c1_i32 : i32
    %102 = vector.broadcast %101 : i32 to vector<8x1xi32>
    %103 = arith.cmpi slt, %102, %3 : vector<8x1xi32>
    %cst_37 = arith.constant 0.000000e+00 : f32
    %104 = vector.shape_cast %103 : vector<8x1xi1> to vector<8x1xi1>
    %105 = vector.broadcast %104 : vector<8x1xi1> to vector<8x128xi1>
    %106 = vector.broadcast %cst_37 : f32 to vector<8x128xf32>
    %107 = arith.select %105, %100, %106 : vector<8x128xi1>, vector<8x128xf32>
    %108 = arith.index_cast %c1_i32 : i32 to index
    %c0_38 = arith.constant 0 : index
    %c0_39 = arith.constant 0 : index
    %109 = vector.load %arg11[%108, %c0_38, %c0_39] : memref<8x8x128xf32, #tpu.memory_space<vmem>>, vector<1x8x128xf32>
    %110 = vector.shape_cast %109 : vector<1x8x128xf32> to vector<8x128xf32>
    %111 = vector.shape_cast %107 : vector<8x128xf32> to vector<1x8x128xf32>
    tpu.vector_store %arg11[%108, %c0_38, %c0_39], %111 {strides = array<i32>} : memref<8x8x128xf32, #tpu.memory_space<vmem>>, vector<1x8x128xf32>,
    %112 = vector.shape_cast %103 : vector<8x1xi1> to vector<8x1xi1>
    %113 = vector.broadcast %112 : vector<8x1xi1> to vector<8x128xi1>
    %114 = arith.select %113, %100, %67 : vector<8x128xi1>, vector<8x128xf32>
    %c2_i32 = arith.constant 2 : i32
    %115 = arith.index_cast %c2_i32 : i32 to index
    %c0_40 = arith.constant 0 : index
    %c0_41 = arith.constant 0 : index
    %116 = vector.load %arg12[%115, %c0_40, %c0_41] : memref<8x8x384xbf16, #tpu.memory_space<vmem>>, vector<1x8x384xbf16>
    %117 = vector.shape_cast %116 : vector<1x8x384xbf16> to vector<8x384xbf16>
    %118 = arith.extf %117 : vector<8x384xbf16> to vector<8x384xf32>
    %cst_42 = arith.constant dense<0.000000e+00> : vector<8x384xf32>
    %119 = tpu.matmul %114, %16, %cst_42 {dimension_numbers = #tpu.dot_dimension_numbers<[1], [0], [0], [1], [0, 0, 1, 1], [], []>} : vector<8x128xf32>, vector<128x384xf32>, vector<8x384xf32> -> vector<8x384xf32>
    %120 = vector.extract_strided_slice %118 {offsets = [0, 0], sizes = [8, 128], strides = [1, 1]} : vector<8x384xf32> to vector<8x128xf32>
    %121 = vector.extract_strided_slice %119 {offsets = [0, 0], sizes = [8, 128], strides = [1, 1]} : vector<8x384xf32> to vector<8x128xf32>
    %122 = arith.addf %120, %121 : vector<8x128xf32>
    %123 = arith.negf %122 : vector<8x128xf32>
    %124 = math.exp %123 : vector<8x128xf32>
    %cst_43 = arith.constant 1.000000e+00 : f32
    %125 = vector.broadcast %cst_43 : f32 to vector<8x128xf32>
    %126 = arith.addf %125, %124 : vector<8x128xf32>
    %127 = arith.divf %125, %126 : vector<8x128xf32>
    %128 = vector.extract_strided_slice %118 {offsets = [0, 128], sizes = [8, 128], strides = [1, 1]} : vector<8x384xf32> to vector<8x128xf32>
    %129 = vector.extract_strided_slice %119 {offsets = [0, 128], sizes = [8, 128], strides = [1, 1]} : vector<8x384xf32> to vector<8x128xf32>
    %130 = arith.addf %128, %129 : vector<8x128xf32>
    %131 = arith.negf %130 : vector<8x128xf32>
    %132 = math.exp %131 : vector<8x128xf32>
    %cst_44 = arith.constant 1.000000e+00 : f32
    %133 = vector.broadcast %cst_44 : f32 to vector<8x128xf32>
    %134 = arith.addf %133, %132 : vector<8x128xf32>
    %135 = arith.divf %133, %134 : vector<8x128xf32>
    %136 = vector.extract_strided_slice %118 {offsets = [0, 256], sizes = [8, 128], strides = [1, 1]} : vector<8x384xf32> to vector<8x128xf32>
    %137 = vector.extract_strided_slice %119 {offsets = [0, 256], sizes = [8, 128], strides = [1, 1]} : vector<8x384xf32> to vector<8x128xf32>
    %138 = vector.broadcast %18 : vector<1x128xf32> to vector<8x128xf32>
    %139 = arith.addf %137, %138 : vector<8x128xf32>
    %140 = arith.mulf %127, %139 : vector<8x128xf32>
    %141 = arith.addf %136, %140 : vector<8x128xf32>
    %142 = math.tanh %141 : vector<8x128xf32>
    %cst_45 = arith.constant 1.000000e+00 : f32
    %143 = vector.broadcast %cst_45 : f32 to vector<8x128xf32>
    %144 = arith.subf %143, %135 : vector<8x128xf32>
    %145 = arith.mulf %144, %142 : vector<8x128xf32>
    %146 = arith.mulf %135, %114 : vector<8x128xf32>
    %147 = arith.addf %145, %146 : vector<8x128xf32>
    %148 = arith.addi %4, %c2_i32 : i32
    %149 = vector.broadcast %148 : i32 to vector<8x1xi32>
    %150 = arith.cmpi slt, %149, %3 : vector<8x1xi32>
    %cst_46 = arith.constant 0.000000e+00 : f32
    %151 = vector.shape_cast %150 : vector<8x1xi1> to vector<8x1xi1>
    %152 = vector.broadcast %151 : vector<8x1xi1> to vector<8x128xi1>
    %153 = vector.broadcast %cst_46 : f32 to vector<8x128xf32>
    %154 = arith.select %152, %147, %153 : vector<8x128xi1>, vector<8x128xf32>
    %155 = arith.index_cast %c2_i32 : i32 to index
    %c0_47 = arith.constant 0 : index
    %c0_48 = arith.constant 0 : index
    %156 = vector.load %arg11[%155, %c0_47, %c0_48] : memref<8x8x128xf32, #tpu.memory_space<vmem>>, vector<1x8x128xf32>
    %157 = vector.shape_cast %156 : vector<1x8x128xf32> to vector<8x128xf32>
    %158 = vector.shape_cast %154 : vector<8x128xf32> to vector<1x8x128xf32>
    tpu.vector_store %arg11[%155, %c0_47, %c0_48], %158 {strides = array<i32>} : memref<8x8x128xf32, #tpu.memory_space<vmem>>, vector<1x8x128xf32>,
    %159 = vector.shape_cast %150 : vector<8x1xi1> to vector<8x1xi1>
    %160 = vector.broadcast %159 : vector<8x1xi1> to vector<8x128xi1>
    %161 = arith.select %160, %147, %114 : vector<8x128xi1>, vector<8x128xf32>
    %c3_i32 = arith.constant 3 : i32
    %162 = arith.index_cast %c3_i32 : i32 to index
    %c0_49 = arith.constant 0 : index
    %c0_50 = arith.constant 0 : index
    %163 = vector.load %arg12[%162, %c0_49, %c0_50] : memref<8x8x384xbf16, #tpu.memory_space<vmem>>, vector<1x8x384xbf16>
    %164 = vector.shape_cast %163 : vector<1x8x384xbf16> to vector<8x384xbf16>
    %165 = arith.extf %164 : vector<8x384xbf16> to vector<8x384xf32>
    %cst_51 = arith.constant dense<0.000000e+00> : vector<8x384xf32>
    %166 = tpu.matmul %161, %16, %cst_51 {dimension_numbers = #tpu.dot_dimension_numbers<[1], [0], [0], [1], [0, 0, 1, 1], [], []>} : vector<8x128xf32>, vector<128x384xf32>, vector<8x384xf32> -> vector<8x384xf32>
    %167 = vector.extract_strided_slice %165 {offsets = [0, 0], sizes = [8, 128], strides = [1, 1]} : vector<8x384xf32> to vector<8x128xf32>
    %168 = vector.extract_strided_slice %166 {offsets = [0, 0], sizes = [8, 128], strides = [1, 1]} : vector<8x384xf32> to vector<8x128xf32>
    %169 = arith.addf %167, %168 : vector<8x128xf32>
    %170 = arith.negf %169 : vector<8x128xf32>
    %171 = math.exp %170 : vector<8x128xf32>
    %cst_52 = arith.constant 1.000000e+00 : f32
    %172 = vector.broadcast %cst_52 : f32 to vector<8x128xf32>
    %173 = arith.addf %172, %171 : vector<8x128xf32>
    %174 = arith.divf %172, %173 : vector<8x128xf32>
    %175 = vector.extract_strided_slice %165 {offsets = [0, 128], sizes = [8, 128], strides = [1, 1]} : vector<8x384xf32> to vector<8x128xf32>
    %176 = vector.extract_strided_slice %166 {offsets = [0, 128], sizes = [8, 128], strides = [1, 1]} : vector<8x384xf32> to vector<8x128xf32>
    %177 = arith.addf %175, %176 : vector<8x128xf32>
    %178 = arith.negf %177 : vector<8x128xf32>
    %179 = math.exp %178 : vector<8x128xf32>
    %cst_53 = arith.constant 1.000000e+00 : f32
    %180 = vector.broadcast %cst_53 : f32 to vector<8x128xf32>
    %181 = arith.addf %180, %179 : vector<8x128xf32>
    %182 = arith.divf %180, %181 : vector<8x128xf32>
    %183 = vector.extract_strided_slice %165 {offsets = [0, 256], sizes = [8, 128], strides = [1, 1]} : vector<8x384xf32> to vector<8x128xf32>
    %184 = vector.extract_strided_slice %166 {offsets = [0, 256], sizes = [8, 128], strides = [1, 1]} : vector<8x384xf32> to vector<8x128xf32>
    %185 = vector.broadcast %18 : vector<1x128xf32> to vector<8x128xf32>
    %186 = arith.addf %184, %185 : vector<8x128xf32>
    %187 = arith.mulf %174, %186 : vector<8x128xf32>
    %188 = arith.addf %183, %187 : vector<8x128xf32>
    %189 = math.tanh %188 : vector<8x128xf32>
    %cst_54 = arith.constant 1.000000e+00 : f32
    %190 = vector.broadcast %cst_54 : f32 to vector<8x128xf32>
    %191 = arith.subf %190, %182 : vector<8x128xf32>
    %192 = arith.mulf %191, %189 : vector<8x128xf32>
    %193 = arith.mulf %182, %161 : vector<8x128xf32>
    %194 = arith.addf %192, %193 : vector<8x128xf32>
    %195 = arith.addi %4, %c3_i32 : i32
    %196 = vector.broadcast %195 : i32 to vector<8x1xi32>
    %197 = arith.cmpi slt, %196, %3 : vector<8x1xi32>
    %cst_55 = arith.constant 0.000000e+00 : f32
    %198 = vector.shape_cast %197 : vector<8x1xi1> to vector<8x1xi1>
    %199 = vector.broadcast %198 : vector<8x1xi1> to vector<8x128xi1>
    %200 = vector.broadcast %cst_55 : f32 to vector<8x128xf32>
    %201 = arith.select %199, %194, %200 : vector<8x128xi1>, vector<8x128xf32>
    %202 = arith.index_cast %c3_i32 : i32 to index
    %c0_56 = arith.constant 0 : index
    %c0_57 = arith.constant 0 : index
    %203 = vector.load %arg11[%202, %c0_56, %c0_57] : memref<8x8x128xf32, #tpu.memory_space<vmem>>, vector<1x8x128xf32>
    %204 = vector.shape_cast %203 : vector<1x8x128xf32> to vector<8x128xf32>
    %205 = vector.shape_cast %201 : vector<8x128xf32> to vector<1x8x128xf32>
    tpu.vector_store %arg11[%202, %c0_56, %c0_57], %205 {strides = array<i32>} : memref<8x8x128xf32, #tpu.memory_space<vmem>>, vector<1x8x128xf32>,
    %206 = vector.shape_cast %197 : vector<8x1xi1> to vector<8x1xi1>
    %207 = vector.broadcast %206 : vector<8x1xi1> to vector<8x128xi1>
    %208 = arith.select %207, %194, %161 : vector<8x128xi1>, vector<8x128xf32>
    %c4_i32 = arith.constant 4 : i32
    %209 = arith.index_cast %c4_i32 : i32 to index
    %c0_58 = arith.constant 0 : index
    %c0_59 = arith.constant 0 : index
    %210 = vector.load %arg12[%209, %c0_58, %c0_59] : memref<8x8x384xbf16, #tpu.memory_space<vmem>>, vector<1x8x384xbf16>
    %211 = vector.shape_cast %210 : vector<1x8x384xbf16> to vector<8x384xbf16>
    %212 = arith.extf %211 : vector<8x384xbf16> to vector<8x384xf32>
    %cst_60 = arith.constant dense<0.000000e+00> : vector<8x384xf32>
    %213 = tpu.matmul %208, %16, %cst_60 {dimension_numbers = #tpu.dot_dimension_numbers<[1], [0], [0], [1], [0, 0, 1, 1], [], []>} : vector<8x128xf32>, vector<128x384xf32>, vector<8x384xf32> -> vector<8x384xf32>
    %214 = vector.extract_strided_slice %212 {offsets = [0, 0], sizes = [8, 128], strides = [1, 1]} : vector<8x384xf32> to vector<8x128xf32>
    %215 = vector.extract_strided_slice %213 {offsets = [0, 0], sizes = [8, 128], strides = [1, 1]} : vector<8x384xf32> to vector<8x128xf32>
    %216 = arith.addf %214, %215 : vector<8x128xf32>
    %217 = arith.negf %216 : vector<8x128xf32>
    %218 = math.exp %217 : vector<8x128xf32>
    %cst_61 = arith.constant 1.000000e+00 : f32
    %219 = vector.broadcast %cst_61 : f32 to vector<8x128xf32>
    %220 = arith.addf %219, %218 : vector<8x128xf32>
    %221 = arith.divf %219, %220 : vector<8x128xf32>
    %222 = vector.extract_strided_slice %212 {offsets = [0, 128], sizes = [8, 128], strides = [1, 1]} : vector<8x384xf32> to vector<8x128xf32>
    %223 = vector.extract_strided_slice %213 {offsets = [0, 128], sizes = [8, 128], strides = [1, 1]} : vector<8x384xf32> to vector<8x128xf32>
    %224 = arith.addf %222, %223 : vector<8x128xf32>
    %225 = arith.negf %224 : vector<8x128xf32>
    %226 = math.exp %225 : vector<8x128xf32>
    %cst_62 = arith.constant 1.000000e+00 : f32
    %227 = vector.broadcast %cst_62 : f32 to vector<8x128xf32>
    %228 = arith.addf %227, %226 : vector<8x128xf32>
    %229 = arith.divf %227, %228 : vector<8x128xf32>
    %230 = vector.extract_strided_slice %212 {offsets = [0, 256], sizes = [8, 128], strides = [1, 1]} : vector<8x384xf32> to vector<8x128xf32>
    %231 = vector.extract_strided_slice %213 {offsets = [0, 256], sizes = [8, 128], strides = [1, 1]} : vector<8x384xf32> to vector<8x128xf32>
    %232 = vector.broadcast %18 : vector<1x128xf32> to vector<8x128xf32>
    %233 = arith.addf %231, %232 : vector<8x128xf32>
    %234 = arith.mulf %221, %233 : vector<8x128xf32>
    %235 = arith.addf %230, %234 : vector<8x128xf32>
    %236 = math.tanh %235 : vector<8x128xf32>
    %cst_63 = arith.constant 1.000000e+00 : f32
    %237 = vector.broadcast %cst_63 : f32 to vector<8x128xf32>
    %238 = arith.subf %237, %229 : vector<8x128xf32>
    %239 = arith.mulf %238, %236 : vector<8x128xf32>
    %240 = arith.mulf %229, %208 : vector<8x128xf32>
    %241 = arith.addf %239, %240 : vector<8x128xf32>
    %242 = arith.addi %4, %c4_i32 : i32
    %243 = vector.broadcast %242 : i32 to vector<8x1xi32>
    %244 = arith.cmpi slt, %243, %3 : vector<8x1xi32>
    %cst_64 = arith.constant 0.000000e+00 : f32
    %245 = vector.shape_cast %244 : vector<8x1xi1> to vector<8x1xi1>
    %246 = vector.broadcast %245 : vector<8x1xi1> to vector<8x128xi1>
    %247 = vector.broadcast %cst_64 : f32 to vector<8x128xf32>
    %248 = arith.select %246, %241, %247 : vector<8x128xi1>, vector<8x128xf32>
    %249 = arith.index_cast %c4_i32 : i32 to index
    %c0_65 = arith.constant 0 : index
    %c0_66 = arith.constant 0 : index
    %250 = vector.load %arg11[%249, %c0_65, %c0_66] : memref<8x8x128xf32, #tpu.memory_space<vmem>>, vector<1x8x128xf32>
    %251 = vector.shape_cast %250 : vector<1x8x128xf32> to vector<8x128xf32>
    %252 = vector.shape_cast %248 : vector<8x128xf32> to vector<1x8x128xf32>
    tpu.vector_store %arg11[%249, %c0_65, %c0_66], %252 {strides = array<i32>} : memref<8x8x128xf32, #tpu.memory_space<vmem>>, vector<1x8x128xf32>,
    %253 = vector.shape_cast %244 : vector<8x1xi1> to vector<8x1xi1>
    %254 = vector.broadcast %253 : vector<8x1xi1> to vector<8x128xi1>
    %255 = arith.select %254, %241, %208 : vector<8x128xi1>, vector<8x128xf32>
    %c5_i32 = arith.constant 5 : i32
    %256 = arith.index_cast %c5_i32 : i32 to index
    %c0_67 = arith.constant 0 : index
    %c0_68 = arith.constant 0 : index
    %257 = vector.load %arg12[%256, %c0_67, %c0_68] : memref<8x8x384xbf16, #tpu.memory_space<vmem>>, vector<1x8x384xbf16>
    %258 = vector.shape_cast %257 : vector<1x8x384xbf16> to vector<8x384xbf16>
    %259 = arith.extf %258 : vector<8x384xbf16> to vector<8x384xf32>
    %cst_69 = arith.constant dense<0.000000e+00> : vector<8x384xf32>
    %260 = tpu.matmul %255, %16, %cst_69 {dimension_numbers = #tpu.dot_dimension_numbers<[1], [0], [0], [1], [0, 0, 1, 1], [], []>} : vector<8x128xf32>, vector<128x384xf32>, vector<8x384xf32> -> vector<8x384xf32>
    %261 = vector.extract_strided_slice %259 {offsets = [0, 0], sizes = [8, 128], strides = [1, 1]} : vector<8x384xf32> to vector<8x128xf32>
    %262 = vector.extract_strided_slice %260 {offsets = [0, 0], sizes = [8, 128], strides = [1, 1]} : vector<8x384xf32> to vector<8x128xf32>
    %263 = arith.addf %261, %262 : vector<8x128xf32>
    %264 = arith.negf %263 : vector<8x128xf32>
    %265 = math.exp %264 : vector<8x128xf32>
    %cst_70 = arith.constant 1.000000e+00 : f32
    %266 = vector.broadcast %cst_70 : f32 to vector<8x128xf32>
    %267 = arith.addf %266, %265 : vector<8x128xf32>
    %268 = arith.divf %266, %267 : vector<8x128xf32>
    %269 = vector.extract_strided_slice %259 {offsets = [0, 128], sizes = [8, 128], strides = [1, 1]} : vector<8x384xf32> to vector<8x128xf32>
    %270 = vector.extract_strided_slice %260 {offsets = [0, 128], sizes = [8, 128], strides = [1, 1]} : vector<8x384xf32> to vector<8x128xf32>
    %271 = arith.addf %269, %270 : vector<8x128xf32>
    %272 = arith.negf %271 : vector<8x128xf32>
    %273 = math.exp %272 : vector<8x128xf32>
    %cst_71 = arith.constant 1.000000e+00 : f32
    %274 = vector.broadcast %cst_71 : f32 to vector<8x128xf32>
    %275 = arith.addf %274, %273 : vector<8x128xf32>
    %276 = arith.divf %274, %275 : vector<8x128xf32>
    %277 = vector.extract_strided_slice %259 {offsets = [0, 256], sizes = [8, 128], strides = [1, 1]} : vector<8x384xf32> to vector<8x128xf32>
    %278 = vector.extract_strided_slice %260 {offsets = [0, 256], sizes = [8, 128], strides = [1, 1]} : vector<8x384xf32> to vector<8x128xf32>
    %279 = vector.broadcast %18 : vector<1x128xf32> to vector<8x128xf32>
    %280 = arith.addf %278, %279 : vector<8x128xf32>
    %281 = arith.mulf %268, %280 : vector<8x128xf32>
    %282 = arith.addf %277, %281 : vector<8x128xf32>
    %283 = math.tanh %282 : vector<8x128xf32>
    %cst_72 = arith.constant 1.000000e+00 : f32
    %284 = vector.broadcast %cst_72 : f32 to vector<8x128xf32>
    %285 = arith.subf %284, %276 : vector<8x128xf32>
    %286 = arith.mulf %285, %283 : vector<8x128xf32>
    %287 = arith.mulf %276, %255 : vector<8x128xf32>
    %288 = arith.addf %286, %287 : vector<8x128xf32>
    %289 = arith.addi %4, %c5_i32 : i32
    %290 = vector.broadcast %289 : i32 to vector<8x1xi32>
    %291 = arith.cmpi slt, %290, %3 : vector<8x1xi32>
    %cst_73 = arith.constant 0.000000e+00 : f32
    %292 = vector.shape_cast %291 : vector<8x1xi1> to vector<8x1xi1>
    %293 = vector.broadcast %292 : vector<8x1xi1> to vector<8x128xi1>
    %294 = vector.broadcast %cst_73 : f32 to vector<8x128xf32>
    %295 = arith.select %293, %288, %294 : vector<8x128xi1>, vector<8x128xf32>
    %296 = arith.index_cast %c5_i32 : i32 to index
    %c0_74 = arith.constant 0 : index
    %c0_75 = arith.constant 0 : index
    %297 = vector.load %arg11[%296, %c0_74, %c0_75] : memref<8x8x128xf32, #tpu.memory_space<vmem>>, vector<1x8x128xf32>
    %298 = vector.shape_cast %297 : vector<1x8x128xf32> to vector<8x128xf32>
    %299 = vector.shape_cast %295 : vector<8x128xf32> to vector<1x8x128xf32>
    tpu.vector_store %arg11[%296, %c0_74, %c0_75], %299 {strides = array<i32>} : memref<8x8x128xf32, #tpu.memory_space<vmem>>, vector<1x8x128xf32>,
    %300 = vector.shape_cast %291 : vector<8x1xi1> to vector<8x1xi1>
    %301 = vector.broadcast %300 : vector<8x1xi1> to vector<8x128xi1>
    %302 = arith.select %301, %288, %255 : vector<8x128xi1>, vector<8x128xf32>
    %c6_i32 = arith.constant 6 : i32
    %303 = arith.index_cast %c6_i32 : i32 to index
    %c0_76 = arith.constant 0 : index
    %c0_77 = arith.constant 0 : index
    %304 = vector.load %arg12[%303, %c0_76, %c0_77] : memref<8x8x384xbf16, #tpu.memory_space<vmem>>, vector<1x8x384xbf16>
    %305 = vector.shape_cast %304 : vector<1x8x384xbf16> to vector<8x384xbf16>
    %306 = arith.extf %305 : vector<8x384xbf16> to vector<8x384xf32>
    %cst_78 = arith.constant dense<0.000000e+00> : vector<8x384xf32>
    %307 = tpu.matmul %302, %16, %cst_78 {dimension_numbers = #tpu.dot_dimension_numbers<[1], [0], [0], [1], [0, 0, 1, 1], [], []>} : vector<8x128xf32>, vector<128x384xf32>, vector<8x384xf32> -> vector<8x384xf32>
    %308 = vector.extract_strided_slice %306 {offsets = [0, 0], sizes = [8, 128], strides = [1, 1]} : vector<8x384xf32> to vector<8x128xf32>
    %309 = vector.extract_strided_slice %307 {offsets = [0, 0], sizes = [8, 128], strides = [1, 1]} : vector<8x384xf32> to vector<8x128xf32>
    %310 = arith.addf %308, %309 : vector<8x128xf32>
    %311 = arith.negf %310 : vector<8x128xf32>
    %312 = math.exp %311 : vector<8x128xf32>
    %cst_79 = arith.constant 1.000000e+00 : f32
    %313 = vector.broadcast %cst_79 : f32 to vector<8x128xf32>
    %314 = arith.addf %313, %312 : vector<8x128xf32>
    %315 = arith.divf %313, %314 : vector<8x128xf32>
    %316 = vector.extract_strided_slice %306 {offsets = [0, 128], sizes = [8, 128], strides = [1, 1]} : vector<8x384xf32> to vector<8x128xf32>
    %317 = vector.extract_strided_slice %307 {offsets = [0, 128], sizes = [8, 128], strides = [1, 1]} : vector<8x384xf32> to vector<8x128xf32>
    %318 = arith.addf %316, %317 : vector<8x128xf32>
    %319 = arith.negf %318 : vector<8x128xf32>
    %320 = math.exp %319 : vector<8x128xf32>
    %cst_80 = arith.constant 1.000000e+00 : f32
    %321 = vector.broadcast %cst_80 : f32 to vector<8x128xf32>
    %322 = arith.addf %321, %320 : vector<8x128xf32>
    %323 = arith.divf %321, %322 : vector<8x128xf32>
    %324 = vector.extract_strided_slice %306 {offsets = [0, 256], sizes = [8, 128], strides = [1, 1]} : vector<8x384xf32> to vector<8x128xf32>
    %325 = vector.extract_strided_slice %307 {offsets = [0, 256], sizes = [8, 128], strides = [1, 1]} : vector<8x384xf32> to vector<8x128xf32>
    %326 = vector.broadcast %18 : vector<1x128xf32> to vector<8x128xf32>
    %327 = arith.addf %325, %326 : vector<8x128xf32>
    %328 = arith.mulf %315, %327 : vector<8x128xf32>
    %329 = arith.addf %324, %328 : vector<8x128xf32>
    %330 = math.tanh %329 : vector<8x128xf32>
    %cst_81 = arith.constant 1.000000e+00 : f32
    %331 = vector.broadcast %cst_81 : f32 to vector<8x128xf32>
    %332 = arith.subf %331, %323 : vector<8x128xf32>
    %333 = arith.mulf %332, %330 : vector<8x128xf32>
    %334 = arith.mulf %323, %302 : vector<8x128xf32>
    %335 = arith.addf %333, %334 : vector<8x128xf32>
    %336 = arith.addi %4, %c6_i32 : i32
    %337 = vector.broadcast %336 : i32 to vector<8x1xi32>
    %338 = arith.cmpi slt, %337, %3 : vector<8x1xi32>
    %cst_82 = arith.constant 0.000000e+00 : f32
    %339 = vector.shape_cast %338 : vector<8x1xi1> to vector<8x1xi1>
    %340 = vector.broadcast %339 : vector<8x1xi1> to vector<8x128xi1>
    %341 = vector.broadcast %cst_82 : f32 to vector<8x128xf32>
    %342 = arith.select %340, %335, %341 : vector<8x128xi1>, vector<8x128xf32>
    %343 = arith.index_cast %c6_i32 : i32 to index
    %c0_83 = arith.constant 0 : index
    %c0_84 = arith.constant 0 : index
    %344 = vector.load %arg11[%343, %c0_83, %c0_84] : memref<8x8x128xf32, #tpu.memory_space<vmem>>, vector<1x8x128xf32>
    %345 = vector.shape_cast %344 : vector<1x8x128xf32> to vector<8x128xf32>
    %346 = vector.shape_cast %342 : vector<8x128xf32> to vector<1x8x128xf32>
    tpu.vector_store %arg11[%343, %c0_83, %c0_84], %346 {strides = array<i32>} : memref<8x8x128xf32, #tpu.memory_space<vmem>>, vector<1x8x128xf32>,
    %347 = vector.shape_cast %338 : vector<8x1xi1> to vector<8x1xi1>
    %348 = vector.broadcast %347 : vector<8x1xi1> to vector<8x128xi1>
    %349 = arith.select %348, %335, %302 : vector<8x128xi1>, vector<8x128xf32>
    %c7_i32 = arith.constant 7 : i32
    %350 = arith.index_cast %c7_i32 : i32 to index
    %c0_85 = arith.constant 0 : index
    %c0_86 = arith.constant 0 : index
    %351 = vector.load %arg12[%350, %c0_85, %c0_86] : memref<8x8x384xbf16, #tpu.memory_space<vmem>>, vector<1x8x384xbf16>
    %352 = vector.shape_cast %351 : vector<1x8x384xbf16> to vector<8x384xbf16>
    %353 = arith.extf %352 : vector<8x384xbf16> to vector<8x384xf32>
    %cst_87 = arith.constant dense<0.000000e+00> : vector<8x384xf32>
    %354 = tpu.matmul %349, %16, %cst_87 {dimension_numbers = #tpu.dot_dimension_numbers<[1], [0], [0], [1], [0, 0, 1, 1], [], []>} : vector<8x128xf32>, vector<128x384xf32>, vector<8x384xf32> -> vector<8x384xf32>
    %355 = vector.extract_strided_slice %353 {offsets = [0, 0], sizes = [8, 128], strides = [1, 1]} : vector<8x384xf32> to vector<8x128xf32>
    %356 = vector.extract_strided_slice %354 {offsets = [0, 0], sizes = [8, 128], strides = [1, 1]} : vector<8x384xf32> to vector<8x128xf32>
    %357 = arith.addf %355, %356 : vector<8x128xf32>
    %358 = arith.negf %357 : vector<8x128xf32>
    %359 = math.exp %358 : vector<8x128xf32>
    %cst_88 = arith.constant 1.000000e+00 : f32
    %360 = vector.broadcast %cst_88 : f32 to vector<8x128xf32>
    %361 = arith.addf %360, %359 : vector<8x128xf32>
    %362 = arith.divf %360, %361 : vector<8x128xf32>
    %363 = vector.extract_strided_slice %353 {offsets = [0, 128], sizes = [8, 128], strides = [1, 1]} : vector<8x384xf32> to vector<8x128xf32>
    %364 = vector.extract_strided_slice %354 {offsets = [0, 128], sizes = [8, 128], strides = [1, 1]} : vector<8x384xf32> to vector<8x128xf32>
    %365 = arith.addf %363, %364 : vector<8x128xf32>
    %366 = arith.negf %365 : vector<8x128xf32>
    %367 = math.exp %366 : vector<8x128xf32>
    %cst_89 = arith.constant 1.000000e+00 : f32
    %368 = vector.broadcast %cst_89 : f32 to vector<8x128xf32>
    %369 = arith.addf %368, %367 : vector<8x128xf32>
    %370 = arith.divf %368, %369 : vector<8x128xf32>
    %371 = vector.extract_strided_slice %353 {offsets = [0, 256], sizes = [8, 128], strides = [1, 1]} : vector<8x384xf32> to vector<8x128xf32>
    %372 = vector.extract_strided_slice %354 {offsets = [0, 256], sizes = [8, 128], strides = [1, 1]} : vector<8x384xf32> to vector<8x128xf32>
    %373 = vector.broadcast %18 : vector<1x128xf32> to vector<8x128xf32>
    %374 = arith.addf %372, %373 : vector<8x128xf32>
    %375 = arith.mulf %362, %374 : vector<8x128xf32>
    %376 = arith.addf %371, %375 : vector<8x128xf32>
    %377 = math.tanh %376 : vector<8x128xf32>
    %cst_90 = arith.constant 1.000000e+00 : f32
    %378 = vector.broadcast %cst_90 : f32 to vector<8x128xf32>
    %379 = arith.subf %378, %370 : vector<8x128xf32>
    %380 = arith.mulf %379, %377 : vector<8x128xf32>
    %381 = arith.mulf %370, %349 : vector<8x128xf32>
    %382 = arith.addf %380, %381 : vector<8x128xf32>
    %383 = arith.addi %4, %c7_i32 : i32
    %384 = vector.broadcast %383 : i32 to vector<8x1xi32>
    %385 = arith.cmpi slt, %384, %3 : vector<8x1xi32>
    %cst_91 = arith.constant 0.000000e+00 : f32
    %386 = vector.shape_cast %385 : vector<8x1xi1> to vector<8x1xi1>
    %387 = vector.broadcast %386 : vector<8x1xi1> to vector<8x128xi1>
    %388 = vector.broadcast %cst_91 : f32 to vector<8x128xf32>
    %389 = arith.select %387, %382, %388 : vector<8x128xi1>, vector<8x128xf32>
    %390 = arith.index_cast %c7_i32 : i32 to index
    %c0_92 = arith.constant 0 : index
    %c0_93 = arith.constant 0 : index
    %391 = vector.load %arg11[%390, %c0_92, %c0_93] : memref<8x8x128xf32, #tpu.memory_space<vmem>>, vector<1x8x128xf32>
    %392 = vector.shape_cast %391 : vector<1x8x128xf32> to vector<8x128xf32>
    %393 = vector.shape_cast %389 : vector<8x128xf32> to vector<1x8x128xf32>
    tpu.vector_store %arg11[%390, %c0_92, %c0_93], %393 {strides = array<i32>} : memref<8x8x128xf32, #tpu.memory_space<vmem>>, vector<1x8x128xf32>,
    %394 = vector.shape_cast %385 : vector<8x1xi1> to vector<8x1xi1>
    %395 = vector.broadcast %394 : vector<8x1xi1> to vector<8x128xi1>
    %396 = arith.select %395, %382, %349 : vector<8x128xi1>, vector<8x128xf32>
    %c8_i32_94 = arith.constant 8 : i32
    %c0_95 = arith.constant 0 : index
    %c0_96 = arith.constant 0 : index
    %c0_97 = arith.constant 0 : index
    %397 = vector.load %arg10[%c0_95, %c0_96, %c0_97] : memref<2x8x128xf32, #tpu.memory_space<vmem>>, vector<1x8x128xf32>
    %398 = vector.shape_cast %397 : vector<1x8x128xf32> to vector<8x128xf32>
    %399 = vector.shape_cast %396 : vector<8x128xf32> to vector<1x8x128xf32>
    tpu.vector_store %arg10[%c0_95, %c0_96, %c0_97], %399 {strides = array<i32>} : memref<2x8x128xf32, #tpu.memory_space<vmem>>, vector<1x8x128xf32>,
    %c0_98 = arith.constant 0 : index
    %c0_99 = arith.constant 0 : index
    %c0_100 = arith.constant 0 : index
    %400 = vector.load %arg11[%c0_98, %c0_99, %c0_100] : memref<8x8x128xf32, #tpu.memory_space<vmem>>, vector<8x8x128xf32>
    %401 = vector.shape_cast %400 : vector<8x8x128xf32> to vector<64x128xf32>
    %402 = arith.truncf %401 : vector<64x128xf32> to vector<64x128xbf16>
    %c0_101 = arith.constant 0 : index
    %c0_102 = arith.constant 0 : index
    %c0_103 = arith.constant 0 : index
    %403 = vector.load %arg4[%c0_101, %c0_102, %c0_103] : memref<1x128x384xbf16, #tpu.memory_space<vmem>>, vector<1x128x384xbf16>
    %404 = vector.shape_cast %403 : vector<1x128x384xbf16> to vector<128x384xbf16>
    %cst_104 = arith.constant dense<0.000000e+00> : vector<64x384xf32>
    %405 = tpu.matmul %402, %404, %cst_104 {dimension_numbers = #tpu.dot_dimension_numbers<[1], [0], [0], [1], [0, 0, 1, 1], [], []>} : vector<64x128xbf16>, vector<128x384xbf16>, vector<64x384xf32> -> vector<64x384xf32>
    %c1 = arith.constant 1 : index
    %c0_105 = arith.constant 0 : index
    %c0_106 = arith.constant 0 : index
    %406 = vector.load %arg6[%c1, %c0_105, %c0_106] : memref<2x1x384xf32, #tpu.memory_space<vmem>>, vector<1x1x384xf32>
    %407 = vector.shape_cast %406 : vector<1x1x384xf32> to vector<1x384xf32>
    %408 = vector.broadcast %407 : vector<1x384xf32> to vector<64x384xf32>
    %409 = arith.addf %405, %408 : vector<64x384xf32>
    %410 = vector.shape_cast %409 : vector<64x384xf32> to vector<8x8x384xf32>
    %411 = arith.truncf %410 : vector<8x8x384xf32> to vector<8x8x384xbf16>
    %c0_107 = arith.constant 0 : index
    %c0_108 = arith.constant 0 : index
    %c0_109 = arith.constant 0 : index
    %412 = vector.load %arg12[%c0_107, %c0_108, %c0_109] : memref<8x8x384xbf16, #tpu.memory_space<vmem>>, vector<8x8x384xbf16>
    tpu.vector_store %arg12[%c0_107, %c0_108, %c0_109], %411 {strides = array<i32>} : memref<8x8x384xbf16, #tpu.memory_space<vmem>>, vector<8x8x384xbf16>,
    %c1_110 = arith.constant 1 : index
    %c0_111 = arith.constant 0 : index
    %c0_112 = arith.constant 0 : index
    %413 = vector.load %arg5[%c1_110, %c0_111, %c0_112] : memref<2x128x384xf32, #tpu.memory_space<vmem>>, vector<1x128x384xf32>
    %414 = vector.shape_cast %413 : vector<1x128x384xf32> to vector<128x384xf32>
    %c1_113 = arith.constant 1 : index
    %c0_114 = arith.constant 0 : index
    %c0_115 = arith.constant 0 : index
    %415 = vector.load %arg7[%c1_113, %c0_114, %c0_115] : memref<2x1x128xf32, #tpu.memory_space<vmem>>, vector<1x1x128xf32>
    %416 = vector.shape_cast %415 : vector<1x1x128xf32> to vector<1x128xf32>
    %c1_116 = arith.constant 1 : index
    %c0_117 = arith.constant 0 : index
    %c0_118 = arith.constant 0 : index
    %417 = vector.load %arg10[%c1_116, %c0_117, %c0_118] : memref<2x8x128xf32, #tpu.memory_space<vmem>>, vector<1x8x128xf32>
    %418 = vector.shape_cast %417 : vector<1x8x128xf32> to vector<8x128xf32>
    %c0_i32_119 = arith.constant 0 : i32
    %419 = arith.index_cast %c0_i32_119 : i32 to index
    %c0_120 = arith.constant 0 : index
    %c0_121 = arith.constant 0 : index
    %420 = vector.load %arg12[%419, %c0_120, %c0_121] : memref<8x8x384xbf16, #tpu.memory_space<vmem>>, vector<1x8x384xbf16>
    %421 = vector.shape_cast %420 : vector<1x8x384xbf16> to vector<8x384xbf16>
    %422 = arith.extf %421 : vector<8x384xbf16> to vector<8x384xf32>
    %cst_122 = arith.constant dense<0.000000e+00> : vector<8x384xf32>
    %423 = tpu.matmul %418, %414, %cst_122 {dimension_numbers = #tpu.dot_dimension_numbers<[1], [0], [0], [1], [0, 0, 1, 1], [], []>} : vector<8x128xf32>, vector<128x384xf32>, vector<8x384xf32> -> vector<8x384xf32>
    %424 = vector.extract_strided_slice %422 {offsets = [0, 0], sizes = [8, 128], strides = [1, 1]} : vector<8x384xf32> to vector<8x128xf32>
    %425 = vector.extract_strided_slice %423 {offsets = [0, 0], sizes = [8, 128], strides = [1, 1]} : vector<8x384xf32> to vector<8x128xf32>
    %426 = arith.addf %424, %425 : vector<8x128xf32>
    %427 = arith.negf %426 : vector<8x128xf32>
    %428 = math.exp %427 : vector<8x128xf32>
    %cst_123 = arith.constant 1.000000e+00 : f32
    %429 = vector.broadcast %cst_123 : f32 to vector<8x128xf32>
    %430 = arith.addf %429, %428 : vector<8x128xf32>
    %431 = arith.divf %429, %430 : vector<8x128xf32>
    %432 = vector.extract_strided_slice %422 {offsets = [0, 128], sizes = [8, 128], strides = [1, 1]} : vector<8x384xf32> to vector<8x128xf32>
    %433 = vector.extract_strided_slice %423 {offsets = [0, 128], sizes = [8, 128], strides = [1, 1]} : vector<8x384xf32> to vector<8x128xf32>
    %434 = arith.addf %432, %433 : vector<8x128xf32>
    %435 = arith.negf %434 : vector<8x128xf32>
    %436 = math.exp %435 : vector<8x128xf32>
    %cst_124 = arith.constant 1.000000e+00 : f32
    %437 = vector.broadcast %cst_124 : f32 to vector<8x128xf32>
    %438 = arith.addf %437, %436 : vector<8x128xf32>
    %439 = arith.divf %437, %438 : vector<8x128xf32>
    %440 = vector.extract_strided_slice %422 {offsets = [0, 256], sizes = [8, 128], strides = [1, 1]} : vector<8x384xf32> to vector<8x128xf32>
    %441 = vector.extract_strided_slice %423 {offsets = [0, 256], sizes = [8, 128], strides = [1, 1]} : vector<8x384xf32> to vector<8x128xf32>
    %442 = vector.broadcast %416 : vector<1x128xf32> to vector<8x128xf32>
    %443 = arith.addf %441, %442 : vector<8x128xf32>
    %444 = arith.mulf %431, %443 : vector<8x128xf32>
    %445 = arith.addf %440, %444 : vector<8x128xf32>
    %446 = math.tanh %445 : vector<8x128xf32>
    %cst_125 = arith.constant 1.000000e+00 : f32
    %447 = vector.broadcast %cst_125 : f32 to vector<8x128xf32>
    %448 = arith.subf %447, %439 : vector<8x128xf32>
    %449 = arith.mulf %448, %446 : vector<8x128xf32>
    %450 = arith.mulf %439, %418 : vector<8x128xf32>
    %451 = arith.addf %449, %450 : vector<8x128xf32>
    %452 = arith.addi %4, %c0_i32_119 : i32
    %453 = vector.broadcast %452 : i32 to vector<8x1xi32>
    %454 = arith.cmpi slt, %453, %3 : vector<8x1xi32>
    %cst_126 = arith.constant 0.000000e+00 : f32
    %455 = vector.shape_cast %454 : vector<8x1xi1> to vector<8x1xi1>
    %456 = vector.broadcast %455 : vector<8x1xi1> to vector<8x128xi1>
    %457 = vector.broadcast %cst_126 : f32 to vector<8x128xf32>
    %458 = arith.select %456, %451, %457 : vector<8x128xi1>, vector<8x128xf32>
    %459 = arith.index_cast %c0_i32_119 : i32 to index
    %c0_127 = arith.constant 0 : index
    %c0_128 = arith.constant 0 : index
    %460 = vector.load %arg9[%459, %c0_127, %c0_128] : memref<8x8x128xf32, #tpu.memory_space<vmem>>, vector<1x8x128xf32>
    %461 = vector.shape_cast %460 : vector<1x8x128xf32> to vector<8x128xf32>
    %462 = vector.shape_cast %458 : vector<8x128xf32> to vector<1x8x128xf32>
    tpu.vector_store %arg9[%459, %c0_127, %c0_128], %462 {strides = array<i32>} : memref<8x8x128xf32, #tpu.memory_space<vmem>>, vector<1x8x128xf32>,
    %463 = vector.shape_cast %454 : vector<8x1xi1> to vector<8x1xi1>
    %464 = vector.broadcast %463 : vector<8x1xi1> to vector<8x128xi1>
    %465 = arith.select %464, %451, %418 : vector<8x128xi1>, vector<8x128xf32>
    %c1_i32_129 = arith.constant 1 : i32
    %466 = arith.index_cast %c1_i32_129 : i32 to index
    %c0_130 = arith.constant 0 : index
    %c0_131 = arith.constant 0 : index
    %467 = vector.load %arg12[%466, %c0_130, %c0_131] : memref<8x8x384xbf16, #tpu.memory_space<vmem>>, vector<1x8x384xbf16>
    %468 = vector.shape_cast %467 : vector<1x8x384xbf16> to vector<8x384xbf16>
    %469 = arith.extf %468 : vector<8x384xbf16> to vector<8x384xf32>
    %cst_132 = arith.constant dense<0.000000e+00> : vector<8x384xf32>
    %470 = tpu.matmul %465, %414, %cst_132 {dimension_numbers = #tpu.dot_dimension_numbers<[1], [0], [0], [1], [0, 0, 1, 1], [], []>} : vector<8x128xf32>, vector<128x384xf32>, vector<8x384xf32> -> vector<8x384xf32>
    %471 = vector.extract_strided_slice %469 {offsets = [0, 0], sizes = [8, 128], strides = [1, 1]} : vector<8x384xf32> to vector<8x128xf32>
    %472 = vector.extract_strided_slice %470 {offsets = [0, 0], sizes = [8, 128], strides = [1, 1]} : vector<8x384xf32> to vector<8x128xf32>
    %473 = arith.addf %471, %472 : vector<8x128xf32>
    %474 = arith.negf %473 : vector<8x128xf32>
    %475 = math.exp %474 : vector<8x128xf32>
    %cst_133 = arith.constant 1.000000e+00 : f32
    %476 = vector.broadcast %cst_133 : f32 to vector<8x128xf32>
    %477 = arith.addf %476, %475 : vector<8x128xf32>
    %478 = arith.divf %476, %477 : vector<8x128xf32>
    %479 = vector.extract_strided_slice %469 {offsets = [0, 128], sizes = [8, 128], strides = [1, 1]} : vector<8x384xf32> to vector<8x128xf32>
    %480 = vector.extract_strided_slice %470 {offsets = [0, 128], sizes = [8, 128], strides = [1, 1]} : vector<8x384xf32> to vector<8x128xf32>
    %481 = arith.addf %479, %480 : vector<8x128xf32>
    %482 = arith.negf %481 : vector<8x128xf32>
    %483 = math.exp %482 : vector<8x128xf32>
    %cst_134 = arith.constant 1.000000e+00 : f32
    %484 = vector.broadcast %cst_134 : f32 to vector<8x128xf32>
    %485 = arith.addf %484, %483 : vector<8x128xf32>
    %486 = arith.divf %484, %485 : vector<8x128xf32>
    %487 = vector.extract_strided_slice %469 {offsets = [0, 256], sizes = [8, 128], strides = [1, 1]} : vector<8x384xf32> to vector<8x128xf32>
    %488 = vector.extract_strided_slice %470 {offsets = [0, 256], sizes = [8, 128], strides = [1, 1]} : vector<8x384xf32> to vector<8x128xf32>
    %489 = vector.broadcast %416 : vector<1x128xf32> to vector<8x128xf32>
    %490 = arith.addf %488, %489 : vector<8x128xf32>
    %491 = arith.mulf %478, %490 : vector<8x128xf32>
    %492 = arith.addf %487, %491 : vector<8x128xf32>
    %493 = math.tanh %492 : vector<8x128xf32>
    %cst_135 = arith.constant 1.000000e+00 : f32
    %494 = vector.broadcast %cst_135 : f32 to vector<8x128xf32>
    %495 = arith.subf %494, %486 : vector<8x128xf32>
    %496 = arith.mulf %495, %493 : vector<8x128xf32>
    %497 = arith.mulf %486, %465 : vector<8x128xf32>
    %498 = arith.addf %496, %497 : vector<8x128xf32>
    %499 = arith.addi %4, %c1_i32_129 : i32
    %500 = vector.broadcast %499 : i32 to vector<8x1xi32>
    %501 = arith.cmpi slt, %500, %3 : vector<8x1xi32>
    %cst_136 = arith.constant 0.000000e+00 : f32
    %502 = vector.shape_cast %501 : vector<8x1xi1> to vector<8x1xi1>
    %503 = vector.broadcast %502 : vector<8x1xi1> to vector<8x128xi1>
    %504 = vector.broadcast %cst_136 : f32 to vector<8x128xf32>
    %505 = arith.select %503, %498, %504 : vector<8x128xi1>, vector<8x128xf32>
    %506 = arith.index_cast %c1_i32_129 : i32 to index
    %c0_137 = arith.constant 0 : index
    %c0_138 = arith.constant 0 : index
    %507 = vector.load %arg9[%506, %c0_137, %c0_138] : memref<8x8x128xf32, #tpu.memory_space<vmem>>, vector<1x8x128xf32>
    %508 = vector.shape_cast %507 : vector<1x8x128xf32> to vector<8x128xf32>
    %509 = vector.shape_cast %505 : vector<8x128xf32> to vector<1x8x128xf32>
    tpu.vector_store %arg9[%506, %c0_137, %c0_138], %509 {strides = array<i32>} : memref<8x8x128xf32, #tpu.memory_space<vmem>>, vector<1x8x128xf32>,
    %510 = vector.shape_cast %501 : vector<8x1xi1> to vector<8x1xi1>
    %511 = vector.broadcast %510 : vector<8x1xi1> to vector<8x128xi1>
    %512 = arith.select %511, %498, %465 : vector<8x128xi1>, vector<8x128xf32>
    %c2_i32_139 = arith.constant 2 : i32
    %513 = arith.index_cast %c2_i32_139 : i32 to index
    %c0_140 = arith.constant 0 : index
    %c0_141 = arith.constant 0 : index
    %514 = vector.load %arg12[%513, %c0_140, %c0_141] : memref<8x8x384xbf16, #tpu.memory_space<vmem>>, vector<1x8x384xbf16>
    %515 = vector.shape_cast %514 : vector<1x8x384xbf16> to vector<8x384xbf16>
    %516 = arith.extf %515 : vector<8x384xbf16> to vector<8x384xf32>
    %cst_142 = arith.constant dense<0.000000e+00> : vector<8x384xf32>
    %517 = tpu.matmul %512, %414, %cst_142 {dimension_numbers = #tpu.dot_dimension_numbers<[1], [0], [0], [1], [0, 0, 1, 1], [], []>} : vector<8x128xf32>, vector<128x384xf32>, vector<8x384xf32> -> vector<8x384xf32>
    %518 = vector.extract_strided_slice %516 {offsets = [0, 0], sizes = [8, 128], strides = [1, 1]} : vector<8x384xf32> to vector<8x128xf32>
    %519 = vector.extract_strided_slice %517 {offsets = [0, 0], sizes = [8, 128], strides = [1, 1]} : vector<8x384xf32> to vector<8x128xf32>
    %520 = arith.addf %518, %519 : vector<8x128xf32>
    %521 = arith.negf %520 : vector<8x128xf32>
    %522 = math.exp %521 : vector<8x128xf32>
    %cst_143 = arith.constant 1.000000e+00 : f32
    %523 = vector.broadcast %cst_143 : f32 to vector<8x128xf32>
    %524 = arith.addf %523, %522 : vector<8x128xf32>
    %525 = arith.divf %523, %524 : vector<8x128xf32>
    %526 = vector.extract_strided_slice %516 {offsets = [0, 128], sizes = [8, 128], strides = [1, 1]} : vector<8x384xf32> to vector<8x128xf32>
    %527 = vector.extract_strided_slice %517 {offsets = [0, 128], sizes = [8, 128], strides = [1, 1]} : vector<8x384xf32> to vector<8x128xf32>
    %528 = arith.addf %526, %527 : vector<8x128xf32>
    %529 = arith.negf %528 : vector<8x128xf32>
    %530 = math.exp %529 : vector<8x128xf32>
    %cst_144 = arith.constant 1.000000e+00 : f32
    %531 = vector.broadcast %cst_144 : f32 to vector<8x128xf32>
    %532 = arith.addf %531, %530 : vector<8x128xf32>
    %533 = arith.divf %531, %532 : vector<8x128xf32>
    %534 = vector.extract_strided_slice %516 {offsets = [0, 256], sizes = [8, 128], strides = [1, 1]} : vector<8x384xf32> to vector<8x128xf32>
    %535 = vector.extract_strided_slice %517 {offsets = [0, 256], sizes = [8, 128], strides = [1, 1]} : vector<8x384xf32> to vector<8x128xf32>
    %536 = vector.broadcast %416 : vector<1x128xf32> to vector<8x128xf32>
    %537 = arith.addf %535, %536 : vector<8x128xf32>
    %538 = arith.mulf %525, %537 : vector<8x128xf32>
    %539 = arith.addf %534, %538 : vector<8x128xf32>
    %540 = math.tanh %539 : vector<8x128xf32>
    %cst_145 = arith.constant 1.000000e+00 : f32
    %541 = vector.broadcast %cst_145 : f32 to vector<8x128xf32>
    %542 = arith.subf %541, %533 : vector<8x128xf32>
    %543 = arith.mulf %542, %540 : vector<8x128xf32>
    %544 = arith.mulf %533, %512 : vector<8x128xf32>
    %545 = arith.addf %543, %544 : vector<8x128xf32>
    %546 = arith.addi %4, %c2_i32_139 : i32
    %547 = vector.broadcast %546 : i32 to vector<8x1xi32>
    %548 = arith.cmpi slt, %547, %3 : vector<8x1xi32>
    %cst_146 = arith.constant 0.000000e+00 : f32
    %549 = vector.shape_cast %548 : vector<8x1xi1> to vector<8x1xi1>
    %550 = vector.broadcast %549 : vector<8x1xi1> to vector<8x128xi1>
    %551 = vector.broadcast %cst_146 : f32 to vector<8x128xf32>
    %552 = arith.select %550, %545, %551 : vector<8x128xi1>, vector<8x128xf32>
    %553 = arith.index_cast %c2_i32_139 : i32 to index
    %c0_147 = arith.constant 0 : index
    %c0_148 = arith.constant 0 : index
    %554 = vector.load %arg9[%553, %c0_147, %c0_148] : memref<8x8x128xf32, #tpu.memory_space<vmem>>, vector<1x8x128xf32>
    %555 = vector.shape_cast %554 : vector<1x8x128xf32> to vector<8x128xf32>
    %556 = vector.shape_cast %552 : vector<8x128xf32> to vector<1x8x128xf32>
    tpu.vector_store %arg9[%553, %c0_147, %c0_148], %556 {strides = array<i32>} : memref<8x8x128xf32, #tpu.memory_space<vmem>>, vector<1x8x128xf32>,
    %557 = vector.shape_cast %548 : vector<8x1xi1> to vector<8x1xi1>
    %558 = vector.broadcast %557 : vector<8x1xi1> to vector<8x128xi1>
    %559 = arith.select %558, %545, %512 : vector<8x128xi1>, vector<8x128xf32>
    %c3_i32_149 = arith.constant 3 : i32
    %560 = arith.index_cast %c3_i32_149 : i32 to index
    %c0_150 = arith.constant 0 : index
    %c0_151 = arith.constant 0 : index
    %561 = vector.load %arg12[%560, %c0_150, %c0_151] : memref<8x8x384xbf16, #tpu.memory_space<vmem>>, vector<1x8x384xbf16>
    %562 = vector.shape_cast %561 : vector<1x8x384xbf16> to vector<8x384xbf16>
    %563 = arith.extf %562 : vector<8x384xbf16> to vector<8x384xf32>
    %cst_152 = arith.constant dense<0.000000e+00> : vector<8x384xf32>
    %564 = tpu.matmul %559, %414, %cst_152 {dimension_numbers = #tpu.dot_dimension_numbers<[1], [0], [0], [1], [0, 0, 1, 1], [], []>} : vector<8x128xf32>, vector<128x384xf32>, vector<8x384xf32> -> vector<8x384xf32>
    %565 = vector.extract_strided_slice %563 {offsets = [0, 0], sizes = [8, 128], strides = [1, 1]} : vector<8x384xf32> to vector<8x128xf32>
    %566 = vector.extract_strided_slice %564 {offsets = [0, 0], sizes = [8, 128], strides = [1, 1]} : vector<8x384xf32> to vector<8x128xf32>
    %567 = arith.addf %565, %566 : vector<8x128xf32>
    %568 = arith.negf %567 : vector<8x128xf32>
    %569 = math.exp %568 : vector<8x128xf32>
    %cst_153 = arith.constant 1.000000e+00 : f32
    %570 = vector.broadcast %cst_153 : f32 to vector<8x128xf32>
    %571 = arith.addf %570, %569 : vector<8x128xf32>
    %572 = arith.divf %570, %571 : vector<8x128xf32>
    %573 = vector.extract_strided_slice %563 {offsets = [0, 128], sizes = [8, 128], strides = [1, 1]} : vector<8x384xf32> to vector<8x128xf32>
    %574 = vector.extract_strided_slice %564 {offsets = [0, 128], sizes = [8, 128], strides = [1, 1]} : vector<8x384xf32> to vector<8x128xf32>
    %575 = arith.addf %573, %574 : vector<8x128xf32>
    %576 = arith.negf %575 : vector<8x128xf32>
    %577 = math.exp %576 : vector<8x128xf32>
    %cst_154 = arith.constant 1.000000e+00 : f32
    %578 = vector.broadcast %cst_154 : f32 to vector<8x128xf32>
    %579 = arith.addf %578, %577 : vector<8x128xf32>
    %580 = arith.divf %578, %579 : vector<8x128xf32>
    %581 = vector.extract_strided_slice %563 {offsets = [0, 256], sizes = [8, 128], strides = [1, 1]} : vector<8x384xf32> to vector<8x128xf32>
    %582 = vector.extract_strided_slice %564 {offsets = [0, 256], sizes = [8, 128], strides = [1, 1]} : vector<8x384xf32> to vector<8x128xf32>
    %583 = vector.broadcast %416 : vector<1x128xf32> to vector<8x128xf32>
    %584 = arith.addf %582, %583 : vector<8x128xf32>
    %585 = arith.mulf %572, %584 : vector<8x128xf32>
    %586 = arith.addf %581, %585 : vector<8x128xf32>
    %587 = math.tanh %586 : vector<8x128xf32>
    %cst_155 = arith.constant 1.000000e+00 : f32
    %588 = vector.broadcast %cst_155 : f32 to vector<8x128xf32>
    %589 = arith.subf %588, %580 : vector<8x128xf32>
    %590 = arith.mulf %589, %587 : vector<8x128xf32>
    %591 = arith.mulf %580, %559 : vector<8x128xf32>
    %592 = arith.addf %590, %591 : vector<8x128xf32>
    %593 = arith.addi %4, %c3_i32_149 : i32
    %594 = vector.broadcast %593 : i32 to vector<8x1xi32>
    %595 = arith.cmpi slt, %594, %3 : vector<8x1xi32>
    %cst_156 = arith.constant 0.000000e+00 : f32
    %596 = vector.shape_cast %595 : vector<8x1xi1> to vector<8x1xi1>
    %597 = vector.broadcast %596 : vector<8x1xi1> to vector<8x128xi1>
    %598 = vector.broadcast %cst_156 : f32 to vector<8x128xf32>
    %599 = arith.select %597, %592, %598 : vector<8x128xi1>, vector<8x128xf32>
    %600 = arith.index_cast %c3_i32_149 : i32 to index
    %c0_157 = arith.constant 0 : index
    %c0_158 = arith.constant 0 : index
    %601 = vector.load %arg9[%600, %c0_157, %c0_158] : memref<8x8x128xf32, #tpu.memory_space<vmem>>, vector<1x8x128xf32>
    %602 = vector.shape_cast %601 : vector<1x8x128xf32> to vector<8x128xf32>
    %603 = vector.shape_cast %599 : vector<8x128xf32> to vector<1x8x128xf32>
    tpu.vector_store %arg9[%600, %c0_157, %c0_158], %603 {strides = array<i32>} : memref<8x8x128xf32, #tpu.memory_space<vmem>>, vector<1x8x128xf32>,
    %604 = vector.shape_cast %595 : vector<8x1xi1> to vector<8x1xi1>
    %605 = vector.broadcast %604 : vector<8x1xi1> to vector<8x128xi1>
    %606 = arith.select %605, %592, %559 : vector<8x128xi1>, vector<8x128xf32>
    %c4_i32_159 = arith.constant 4 : i32
    %607 = arith.index_cast %c4_i32_159 : i32 to index
    %c0_160 = arith.constant 0 : index
    %c0_161 = arith.constant 0 : index
    %608 = vector.load %arg12[%607, %c0_160, %c0_161] : memref<8x8x384xbf16, #tpu.memory_space<vmem>>, vector<1x8x384xbf16>
    %609 = vector.shape_cast %608 : vector<1x8x384xbf16> to vector<8x384xbf16>
    %610 = arith.extf %609 : vector<8x384xbf16> to vector<8x384xf32>
    %cst_162 = arith.constant dense<0.000000e+00> : vector<8x384xf32>
    %611 = tpu.matmul %606, %414, %cst_162 {dimension_numbers = #tpu.dot_dimension_numbers<[1], [0], [0], [1], [0, 0, 1, 1], [], []>} : vector<8x128xf32>, vector<128x384xf32>, vector<8x384xf32> -> vector<8x384xf32>
    %612 = vector.extract_strided_slice %610 {offsets = [0, 0], sizes = [8, 128], strides = [1, 1]} : vector<8x384xf32> to vector<8x128xf32>
    %613 = vector.extract_strided_slice %611 {offsets = [0, 0], sizes = [8, 128], strides = [1, 1]} : vector<8x384xf32> to vector<8x128xf32>
    %614 = arith.addf %612, %613 : vector<8x128xf32>
    %615 = arith.negf %614 : vector<8x128xf32>
    %616 = math.exp %615 : vector<8x128xf32>
    %cst_163 = arith.constant 1.000000e+00 : f32
    %617 = vector.broadcast %cst_163 : f32 to vector<8x128xf32>
    %618 = arith.addf %617, %616 : vector<8x128xf32>
    %619 = arith.divf %617, %618 : vector<8x128xf32>
    %620 = vector.extract_strided_slice %610 {offsets = [0, 128], sizes = [8, 128], strides = [1, 1]} : vector<8x384xf32> to vector<8x128xf32>
    %621 = vector.extract_strided_slice %611 {offsets = [0, 128], sizes = [8, 128], strides = [1, 1]} : vector<8x384xf32> to vector<8x128xf32>
    %622 = arith.addf %620, %621 : vector<8x128xf32>
    %623 = arith.negf %622 : vector<8x128xf32>
    %624 = math.exp %623 : vector<8x128xf32>
    %cst_164 = arith.constant 1.000000e+00 : f32
    %625 = vector.broadcast %cst_164 : f32 to vector<8x128xf32>
    %626 = arith.addf %625, %624 : vector<8x128xf32>
    %627 = arith.divf %625, %626 : vector<8x128xf32>
    %628 = vector.extract_strided_slice %610 {offsets = [0, 256], sizes = [8, 128], strides = [1, 1]} : vector<8x384xf32> to vector<8x128xf32>
    %629 = vector.extract_strided_slice %611 {offsets = [0, 256], sizes = [8, 128], strides = [1, 1]} : vector<8x384xf32> to vector<8x128xf32>
    %630 = vector.broadcast %416 : vector<1x128xf32> to vector<8x128xf32>
    %631 = arith.addf %629, %630 : vector<8x128xf32>
    %632 = arith.mulf %619, %631 : vector<8x128xf32>
    %633 = arith.addf %628, %632 : vector<8x128xf32>
    %634 = math.tanh %633 : vector<8x128xf32>
    %cst_165 = arith.constant 1.000000e+00 : f32
    %635 = vector.broadcast %cst_165 : f32 to vector<8x128xf32>
    %636 = arith.subf %635, %627 : vector<8x128xf32>
    %637 = arith.mulf %636, %634 : vector<8x128xf32>
    %638 = arith.mulf %627, %606 : vector<8x128xf32>
    %639 = arith.addf %637, %638 : vector<8x128xf32>
    %640 = arith.addi %4, %c4_i32_159 : i32
    %641 = vector.broadcast %640 : i32 to vector<8x1xi32>
    %642 = arith.cmpi slt, %641, %3 : vector<8x1xi32>
    %cst_166 = arith.constant 0.000000e+00 : f32
    %643 = vector.shape_cast %642 : vector<8x1xi1> to vector<8x1xi1>
    %644 = vector.broadcast %643 : vector<8x1xi1> to vector<8x128xi1>
    %645 = vector.broadcast %cst_166 : f32 to vector<8x128xf32>
    %646 = arith.select %644, %639, %645 : vector<8x128xi1>, vector<8x128xf32>
    %647 = arith.index_cast %c4_i32_159 : i32 to index
    %c0_167 = arith.constant 0 : index
    %c0_168 = arith.constant 0 : index
    %648 = vector.load %arg9[%647, %c0_167, %c0_168] : memref<8x8x128xf32, #tpu.memory_space<vmem>>, vector<1x8x128xf32>
    %649 = vector.shape_cast %648 : vector<1x8x128xf32> to vector<8x128xf32>
    %650 = vector.shape_cast %646 : vector<8x128xf32> to vector<1x8x128xf32>
    tpu.vector_store %arg9[%647, %c0_167, %c0_168], %650 {strides = array<i32>} : memref<8x8x128xf32, #tpu.memory_space<vmem>>, vector<1x8x128xf32>,
    %651 = vector.shape_cast %642 : vector<8x1xi1> to vector<8x1xi1>
    %652 = vector.broadcast %651 : vector<8x1xi1> to vector<8x128xi1>
    %653 = arith.select %652, %639, %606 : vector<8x128xi1>, vector<8x128xf32>
    %c5_i32_169 = arith.constant 5 : i32
    %654 = arith.index_cast %c5_i32_169 : i32 to index
    %c0_170 = arith.constant 0 : index
    %c0_171 = arith.constant 0 : index
    %655 = vector.load %arg12[%654, %c0_170, %c0_171] : memref<8x8x384xbf16, #tpu.memory_space<vmem>>, vector<1x8x384xbf16>
    %656 = vector.shape_cast %655 : vector<1x8x384xbf16> to vector<8x384xbf16>
    %657 = arith.extf %656 : vector<8x384xbf16> to vector<8x384xf32>
    %cst_172 = arith.constant dense<0.000000e+00> : vector<8x384xf32>
    %658 = tpu.matmul %653, %414, %cst_172 {dimension_numbers = #tpu.dot_dimension_numbers<[1], [0], [0], [1], [0, 0, 1, 1], [], []>} : vector<8x128xf32>, vector<128x384xf32>, vector<8x384xf32> -> vector<8x384xf32>
    %659 = vector.extract_strided_slice %657 {offsets = [0, 0], sizes = [8, 128], strides = [1, 1]} : vector<8x384xf32> to vector<8x128xf32>
    %660 = vector.extract_strided_slice %658 {offsets = [0, 0], sizes = [8, 128], strides = [1, 1]} : vector<8x384xf32> to vector<8x128xf32>
    %661 = arith.addf %659, %660 : vector<8x128xf32>
    %662 = arith.negf %661 : vector<8x128xf32>
    %663 = math.exp %662 : vector<8x128xf32>
    %cst_173 = arith.constant 1.000000e+00 : f32
    %664 = vector.broadcast %cst_173 : f32 to vector<8x128xf32>
    %665 = arith.addf %664, %663 : vector<8x128xf32>
    %666 = arith.divf %664, %665 : vector<8x128xf32>
    %667 = vector.extract_strided_slice %657 {offsets = [0, 128], sizes = [8, 128], strides = [1, 1]} : vector<8x384xf32> to vector<8x128xf32>
    %668 = vector.extract_strided_slice %658 {offsets = [0, 128], sizes = [8, 128], strides = [1, 1]} : vector<8x384xf32> to vector<8x128xf32>
    %669 = arith.addf %667, %668 : vector<8x128xf32>
    %670 = arith.negf %669 : vector<8x128xf32>
    %671 = math.exp %670 : vector<8x128xf32>
    %cst_174 = arith.constant 1.000000e+00 : f32
    %672 = vector.broadcast %cst_174 : f32 to vector<8x128xf32>
    %673 = arith.addf %672, %671 : vector<8x128xf32>
    %674 = arith.divf %672, %673 : vector<8x128xf32>
    %675 = vector.extract_strided_slice %657 {offsets = [0, 256], sizes = [8, 128], strides = [1, 1]} : vector<8x384xf32> to vector<8x128xf32>
    %676 = vector.extract_strided_slice %658 {offsets = [0, 256], sizes = [8, 128], strides = [1, 1]} : vector<8x384xf32> to vector<8x128xf32>
    %677 = vector.broadcast %416 : vector<1x128xf32> to vector<8x128xf32>
    %678 = arith.addf %676, %677 : vector<8x128xf32>
    %679 = arith.mulf %666, %678 : vector<8x128xf32>
    %680 = arith.addf %675, %679 : vector<8x128xf32>
    %681 = math.tanh %680 : vector<8x128xf32>
    %cst_175 = arith.constant 1.000000e+00 : f32
    %682 = vector.broadcast %cst_175 : f32 to vector<8x128xf32>
    %683 = arith.subf %682, %674 : vector<8x128xf32>
    %684 = arith.mulf %683, %681 : vector<8x128xf32>
    %685 = arith.mulf %674, %653 : vector<8x128xf32>
    %686 = arith.addf %684, %685 : vector<8x128xf32>
    %687 = arith.addi %4, %c5_i32_169 : i32
    %688 = vector.broadcast %687 : i32 to vector<8x1xi32>
    %689 = arith.cmpi slt, %688, %3 : vector<8x1xi32>
    %cst_176 = arith.constant 0.000000e+00 : f32
    %690 = vector.shape_cast %689 : vector<8x1xi1> to vector<8x1xi1>
    %691 = vector.broadcast %690 : vector<8x1xi1> to vector<8x128xi1>
    %692 = vector.broadcast %cst_176 : f32 to vector<8x128xf32>
    %693 = arith.select %691, %686, %692 : vector<8x128xi1>, vector<8x128xf32>
    %694 = arith.index_cast %c5_i32_169 : i32 to index
    %c0_177 = arith.constant 0 : index
    %c0_178 = arith.constant 0 : index
    %695 = vector.load %arg9[%694, %c0_177, %c0_178] : memref<8x8x128xf32, #tpu.memory_space<vmem>>, vector<1x8x128xf32>
    %696 = vector.shape_cast %695 : vector<1x8x128xf32> to vector<8x128xf32>
    %697 = vector.shape_cast %693 : vector<8x128xf32> to vector<1x8x128xf32>
    tpu.vector_store %arg9[%694, %c0_177, %c0_178], %697 {strides = array<i32>} : memref<8x8x128xf32, #tpu.memory_space<vmem>>, vector<1x8x128xf32>,
    %698 = vector.shape_cast %689 : vector<8x1xi1> to vector<8x1xi1>
    %699 = vector.broadcast %698 : vector<8x1xi1> to vector<8x128xi1>
    %700 = arith.select %699, %686, %653 : vector<8x128xi1>, vector<8x128xf32>
    %c6_i32_179 = arith.constant 6 : i32
    %701 = arith.index_cast %c6_i32_179 : i32 to index
    %c0_180 = arith.constant 0 : index
    %c0_181 = arith.constant 0 : index
    %702 = vector.load %arg12[%701, %c0_180, %c0_181] : memref<8x8x384xbf16, #tpu.memory_space<vmem>>, vector<1x8x384xbf16>
    %703 = vector.shape_cast %702 : vector<1x8x384xbf16> to vector<8x384xbf16>
    %704 = arith.extf %703 : vector<8x384xbf16> to vector<8x384xf32>
    %cst_182 = arith.constant dense<0.000000e+00> : vector<8x384xf32>
    %705 = tpu.matmul %700, %414, %cst_182 {dimension_numbers = #tpu.dot_dimension_numbers<[1], [0], [0], [1], [0, 0, 1, 1], [], []>} : vector<8x128xf32>, vector<128x384xf32>, vector<8x384xf32> -> vector<8x384xf32>
    %706 = vector.extract_strided_slice %704 {offsets = [0, 0], sizes = [8, 128], strides = [1, 1]} : vector<8x384xf32> to vector<8x128xf32>
    %707 = vector.extract_strided_slice %705 {offsets = [0, 0], sizes = [8, 128], strides = [1, 1]} : vector<8x384xf32> to vector<8x128xf32>
    %708 = arith.addf %706, %707 : vector<8x128xf32>
    %709 = arith.negf %708 : vector<8x128xf32>
    %710 = math.exp %709 : vector<8x128xf32>
    %cst_183 = arith.constant 1.000000e+00 : f32
    %711 = vector.broadcast %cst_183 : f32 to vector<8x128xf32>
    %712 = arith.addf %711, %710 : vector<8x128xf32>
    %713 = arith.divf %711, %712 : vector<8x128xf32>
    %714 = vector.extract_strided_slice %704 {offsets = [0, 128], sizes = [8, 128], strides = [1, 1]} : vector<8x384xf32> to vector<8x128xf32>
    %715 = vector.extract_strided_slice %705 {offsets = [0, 128], sizes = [8, 128], strides = [1, 1]} : vector<8x384xf32> to vector<8x128xf32>
    %716 = arith.addf %714, %715 : vector<8x128xf32>
    %717 = arith.negf %716 : vector<8x128xf32>
    %718 = math.exp %717 : vector<8x128xf32>
    %cst_184 = arith.constant 1.000000e+00 : f32
    %719 = vector.broadcast %cst_184 : f32 to vector<8x128xf32>
    %720 = arith.addf %719, %718 : vector<8x128xf32>
    %721 = arith.divf %719, %720 : vector<8x128xf32>
    %722 = vector.extract_strided_slice %704 {offsets = [0, 256], sizes = [8, 128], strides = [1, 1]} : vector<8x384xf32> to vector<8x128xf32>
    %723 = vector.extract_strided_slice %705 {offsets = [0, 256], sizes = [8, 128], strides = [1, 1]} : vector<8x384xf32> to vector<8x128xf32>
    %724 = vector.broadcast %416 : vector<1x128xf32> to vector<8x128xf32>
    %725 = arith.addf %723, %724 : vector<8x128xf32>
    %726 = arith.mulf %713, %725 : vector<8x128xf32>
    %727 = arith.addf %722, %726 : vector<8x128xf32>
    %728 = math.tanh %727 : vector<8x128xf32>
    %cst_185 = arith.constant 1.000000e+00 : f32
    %729 = vector.broadcast %cst_185 : f32 to vector<8x128xf32>
    %730 = arith.subf %729, %721 : vector<8x128xf32>
    %731 = arith.mulf %730, %728 : vector<8x128xf32>
    %732 = arith.mulf %721, %700 : vector<8x128xf32>
    %733 = arith.addf %731, %732 : vector<8x128xf32>
    %734 = arith.addi %4, %c6_i32_179 : i32
    %735 = vector.broadcast %734 : i32 to vector<8x1xi32>
    %736 = arith.cmpi slt, %735, %3 : vector<8x1xi32>
    %cst_186 = arith.constant 0.000000e+00 : f32
    %737 = vector.shape_cast %736 : vector<8x1xi1> to vector<8x1xi1>
    %738 = vector.broadcast %737 : vector<8x1xi1> to vector<8x128xi1>
    %739 = vector.broadcast %cst_186 : f32 to vector<8x128xf32>
    %740 = arith.select %738, %733, %739 : vector<8x128xi1>, vector<8x128xf32>
    %741 = arith.index_cast %c6_i32_179 : i32 to index
    %c0_187 = arith.constant 0 : index
    %c0_188 = arith.constant 0 : index
    %742 = vector.load %arg9[%741, %c0_187, %c0_188] : memref<8x8x128xf32, #tpu.memory_space<vmem>>, vector<1x8x128xf32>
    %743 = vector.shape_cast %742 : vector<1x8x128xf32> to vector<8x128xf32>
    %744 = vector.shape_cast %740 : vector<8x128xf32> to vector<1x8x128xf32>
    tpu.vector_store %arg9[%741, %c0_187, %c0_188], %744 {strides = array<i32>} : memref<8x8x128xf32, #tpu.memory_space<vmem>>, vector<1x8x128xf32>,
    %745 = vector.shape_cast %736 : vector<8x1xi1> to vector<8x1xi1>
    %746 = vector.broadcast %745 : vector<8x1xi1> to vector<8x128xi1>
    %747 = arith.select %746, %733, %700 : vector<8x128xi1>, vector<8x128xf32>
    %c7_i32_189 = arith.constant 7 : i32
    %748 = arith.index_cast %c7_i32_189 : i32 to index
    %c0_190 = arith.constant 0 : index
    %c0_191 = arith.constant 0 : index
    %749 = vector.load %arg12[%748, %c0_190, %c0_191] : memref<8x8x384xbf16, #tpu.memory_space<vmem>>, vector<1x8x384xbf16>
    %750 = vector.shape_cast %749 : vector<1x8x384xbf16> to vector<8x384xbf16>
    %751 = arith.extf %750 : vector<8x384xbf16> to vector<8x384xf32>
    %cst_192 = arith.constant dense<0.000000e+00> : vector<8x384xf32>
    %752 = tpu.matmul %747, %414, %cst_192 {dimension_numbers = #tpu.dot_dimension_numbers<[1], [0], [0], [1], [0, 0, 1, 1], [], []>} : vector<8x128xf32>, vector<128x384xf32>, vector<8x384xf32> -> vector<8x384xf32>
    %753 = vector.extract_strided_slice %751 {offsets = [0, 0], sizes = [8, 128], strides = [1, 1]} : vector<8x384xf32> to vector<8x128xf32>
    %754 = vector.extract_strided_slice %752 {offsets = [0, 0], sizes = [8, 128], strides = [1, 1]} : vector<8x384xf32> to vector<8x128xf32>
    %755 = arith.addf %753, %754 : vector<8x128xf32>
    %756 = arith.negf %755 : vector<8x128xf32>
    %757 = math.exp %756 : vector<8x128xf32>
    %cst_193 = arith.constant 1.000000e+00 : f32
    %758 = vector.broadcast %cst_193 : f32 to vector<8x128xf32>
    %759 = arith.addf %758, %757 : vector<8x128xf32>
    %760 = arith.divf %758, %759 : vector<8x128xf32>
    %761 = vector.extract_strided_slice %751 {offsets = [0, 128], sizes = [8, 128], strides = [1, 1]} : vector<8x384xf32> to vector<8x128xf32>
    %762 = vector.extract_strided_slice %752 {offsets = [0, 128], sizes = [8, 128], strides = [1, 1]} : vector<8x384xf32> to vector<8x128xf32>
    %763 = arith.addf %761, %762 : vector<8x128xf32>
    %764 = arith.negf %763 : vector<8x128xf32>
    %765 = math.exp %764 : vector<8x128xf32>
    %cst_194 = arith.constant 1.000000e+00 : f32
    %766 = vector.broadcast %cst_194 : f32 to vector<8x128xf32>
    %767 = arith.addf %766, %765 : vector<8x128xf32>
    %768 = arith.divf %766, %767 : vector<8x128xf32>
    %769 = vector.extract_strided_slice %751 {offsets = [0, 256], sizes = [8, 128], strides = [1, 1]} : vector<8x384xf32> to vector<8x128xf32>
    %770 = vector.extract_strided_slice %752 {offsets = [0, 256], sizes = [8, 128], strides = [1, 1]} : vector<8x384xf32> to vector<8x128xf32>
    %771 = vector.broadcast %416 : vector<1x128xf32> to vector<8x128xf32>
    %772 = arith.addf %770, %771 : vector<8x128xf32>
    %773 = arith.mulf %760, %772 : vector<8x128xf32>
    %774 = arith.addf %769, %773 : vector<8x128xf32>
    %775 = math.tanh %774 : vector<8x128xf32>
    %cst_195 = arith.constant 1.000000e+00 : f32
    %776 = vector.broadcast %cst_195 : f32 to vector<8x128xf32>
    %777 = arith.subf %776, %768 : vector<8x128xf32>
    %778 = arith.mulf %777, %775 : vector<8x128xf32>
    %779 = arith.mulf %768, %747 : vector<8x128xf32>
    %780 = arith.addf %778, %779 : vector<8x128xf32>
    %781 = arith.addi %4, %c7_i32_189 : i32
    %782 = vector.broadcast %781 : i32 to vector<8x1xi32>
    %783 = arith.cmpi slt, %782, %3 : vector<8x1xi32>
    %cst_196 = arith.constant 0.000000e+00 : f32
    %784 = vector.shape_cast %783 : vector<8x1xi1> to vector<8x1xi1>
    %785 = vector.broadcast %784 : vector<8x1xi1> to vector<8x128xi1>
    %786 = vector.broadcast %cst_196 : f32 to vector<8x128xf32>
    %787 = arith.select %785, %780, %786 : vector<8x128xi1>, vector<8x128xf32>
    %788 = arith.index_cast %c7_i32_189 : i32 to index
    %c0_197 = arith.constant 0 : index
    %c0_198 = arith.constant 0 : index
    %789 = vector.load %arg9[%788, %c0_197, %c0_198] : memref<8x8x128xf32, #tpu.memory_space<vmem>>, vector<1x8x128xf32>
    %790 = vector.shape_cast %789 : vector<1x8x128xf32> to vector<8x128xf32>
    %791 = vector.shape_cast %787 : vector<8x128xf32> to vector<1x8x128xf32>
    tpu.vector_store %arg9[%788, %c0_197, %c0_198], %791 {strides = array<i32>} : memref<8x8x128xf32, #tpu.memory_space<vmem>>, vector<1x8x128xf32>,
    %792 = vector.shape_cast %783 : vector<8x1xi1> to vector<8x1xi1>
    %793 = vector.broadcast %792 : vector<8x1xi1> to vector<8x128xi1>
    %794 = arith.select %793, %780, %747 : vector<8x128xi1>, vector<8x128xf32>
    %c8_i32_199 = arith.constant 8 : i32
    %c1_200 = arith.constant 1 : index
    %c0_201 = arith.constant 0 : index
    %c0_202 = arith.constant 0 : index
    %795 = vector.load %arg10[%c1_200, %c0_201, %c0_202] : memref<2x8x128xf32, #tpu.memory_space<vmem>>, vector<1x8x128xf32>
    %796 = vector.shape_cast %795 : vector<1x8x128xf32> to vector<8x128xf32>
    %797 = vector.shape_cast %794 : vector<8x128xf32> to vector<1x8x128xf32>
    tpu.vector_store %arg10[%c1_200, %c0_201, %c0_202], %797 {strides = array<i32>} : memref<2x8x128xf32, #tpu.memory_space<vmem>>, vector<1x8x128xf32>,
    return
  }
  func.func @transform_0(%arg0: i32) -> (i32, i32) {
    %c0_i32 = arith.constant 0 : i32
    %c0_i32_0 = arith.constant 0 : i32
    %c0_i32_1 = arith.constant 0 : i32
    return %c0_i32, %c0_i32_0 : i32, i32
  }
  func.func @transform_1(%arg0: i32) -> (i32, i32) {
    %c0_i32 = arith.constant 0 : i32
    %c0_i32_0 = arith.constant 0 : i32
    return %arg0, %c0_i32 : i32, i32
  }
  func.func @transform_2(%arg0: i32) -> (i32, i32) {
    %c0_i32 = arith.constant 0 : i32
    %c0_i32_0 = arith.constant 0 : i32
    %c0_i32_1 = arith.constant 0 : i32
    return %c0_i32, %c0_i32_0 : i32, i32
  }
  func.func @transform_3(%arg0: i32) -> (i32, i32, i32) {
    %c0_i32 = arith.constant 0 : i32
    %c0_i32_0 = arith.constant 0 : i32
    %c0_i32_1 = arith.constant 0 : i32
    %c0_i32_2 = arith.constant 0 : i32
    return %c0_i32, %c0_i32_0, %c0_i32_1 : i32, i32, i32
  }
  func.func @transform_4(%arg0: i32) -> (i32, i32, i32) {
    %c0_i32 = arith.constant 0 : i32
    %c0_i32_0 = arith.constant 0 : i32
    %c0_i32_1 = arith.constant 0 : i32
    %c0_i32_2 = arith.constant 0 : i32
    return %c0_i32, %c0_i32_0, %c0_i32_1 : i32, i32, i32
  }
  func.func @transform_5(%arg0: i32) -> (i32, i32, i32) {
    %c0_i32 = arith.constant 0 : i32
    %c0_i32_0 = arith.constant 0 : i32
    %c0_i32_1 = arith.constant 0 : i32
    %c0_i32_2 = arith.constant 0 : i32
    return %c0_i32, %c0_i32_0, %c0_i32_1 : i32, i32, i32
  }
  func.func @transform_6(%arg0: i32) -> (i32, i32, i32) {
    %c0_i32 = arith.constant 0 : i32
    %c0_i32_0 = arith.constant 0 : i32
    %c0_i32_1 = arith.constant 0 : i32
    %c0_i32_2 = arith.constant 0 : i32
    return %c0_i32, %c0_i32_0, %c0_i32_1 : i32, i32, i32
  }
  func.func @transform_7(%arg0: i32) -> (i32, i32, i32) {
    %c0_i32 = arith.constant 0 : i32
    %c0_i32_0 = arith.constant 0 : i32
    %c0_i32_1 = arith.constant 0 : i32
    %c0_i32_2 = arith.constant 0 : i32
    return %c0_i32, %c0_i32_0, %c0_i32_1 : i32, i32, i32
  }
  func.func @transform_8(%arg0: i32) -> (i32, i32, i32) {
    %c0_i32 = arith.constant 0 : i32
    %c0_i32_0 = arith.constant 0 : i32
    %c0_i32_1 = arith.constant 0 : i32
    return %arg0, %c0_i32, %c0_i32_0 : i32, i32, i32
  }
  func.func @transform_9(%arg0: i32) -> (i32, i32, i32) {
    %c0_i32 = arith.constant 0 : i32
    %c0_i32_0 = arith.constant 0 : i32
    %c0_i32_1 = arith.constant 0 : i32
    %c0_i32_2 = arith.constant 0 : i32
    return %c0_i32, %c0_i32_0, %c0_i32_1 : i32, i32, i32
  }
}

</mosaic_0001>

<llo_original>
// kernel: tpu_custom_call.1
$region0: #{tpu_custom_call.1}
  #allocation0 [shape = 'u32[]', space=smem, size = 0x4, offset = 0x4, fixed_abs, tag = 'smem constant byte address 0x4 - core index']
  #allocation1 [shape = 'u32[144,128]{1,0:T(1,128)}', space=vmem, size = 0x12000, scoped, tag = 'internal scratch']
  #allocation2 [shape = 'f32[8,8,128]{2,1,0:T(8,128)}', space=vmem, size = 0x8000, scoped, tag = 'scratch operand']
  #allocation3 [shape = 'bf16[8,8,384]{2,1,0:T(8,128)(2,1)}', space=vmem, size = 0xc000, scoped, tag = 'scratch operand']
  %s0 = inlined_call_operand.vmem [shape: s32[8,1], index: 0, kind: input, shape index: {}]
  %s1 = inlined_call_operand.hbm [shape: bf16[64,128], index: 1, kind: input, shape index: {}]
  %s2 = inlined_call_operand.hbm [shape: bf16[128,384], index: 2, kind: input, shape index: {}]
  %s3 = inlined_call_operand.hbm [shape: bf16[1,128,384], index: 3, kind: input, shape index: {}]
  %s4 = inlined_call_operand.hbm [shape: f32[2,128,384], index: 4, kind: input, shape index: {}]
  %s5 = inlined_call_operand.hbm [shape: f32[2,1,384], index: 5, kind: input, shape index: {}]
  %s6 = inlined_call_operand.vmem [shape: f32[2,1,128], index: 6, kind: input, shape index: {}]
  %s7 = inlined_call_operand.vmem [shape: f32[2,8,128], index: 7, kind: input, shape index: {}]
  %s8 = inlined_call_operand.hbm [shape: f32[8,8,128], index: 8, kind: output, shape index: {0}]
  %s9 = inlined_call_operand.hbm [shape: f32[2,8,128], index: 9, kind: output, shape index: {1}]
  %10 = xla_tuple %s8, %s9
  %s11 = sld [smem:[#allocation0]]
  $region74: #{tpu_custom_call.1} parent=0
    _
  %s13 = ssub.s32 1, %s11
  %s14 = scalar_select 0, %s13, %s11
  $region1: #{tpu_custom_call.1} parent=0
    #allocation4 [shape = 'u8[16384]{0}', space=vmem, size = 0x4000, scoped, tag = 'input window, operand 1, single buffered']
    #allocation5 [shape = 's32[1]{0}', space=sflag, size = 0x4, scoped, tag = 'scoped memory for tpu_custom_call.1']
    #allocation6 [shape = 's32[1]{0}', space=sflag, size = 0x4, scoped, tag = 'scoped memory for tpu_custom_call.1']
    #allocation7 [shape = 'u8[98304]{0}', space=vmem, size = 0x18000, scoped, tag = 'input window, operand 2, single buffered']
    #allocation8 [shape = 's32[1]{0}', space=sflag, size = 0x4, scoped, tag = 'scoped memory for tpu_custom_call.1']
    #allocation9 [shape = 'u8[98304]{0}', space=vmem, size = 0x18000, scoped, tag = 'input window, operand 3, single buffered']
    #allocation10 [shape = 'u8[393216]{0}', space=vmem, size = 0x60000, scoped, tag = 'input window, operand 4, single buffered']
    #allocation11 [shape = 's32[1]{0}', space=sflag, size = 0x4, scoped, tag = 'scoped memory for tpu_custom_call.1']
    #allocation12 [shape = 'u8[3072]{0}', space=vmem, size = 0xc00, scoped, tag = 'input window, operand 5, single buffered']
    #allocation13 [shape = 'u8[32768]{0}', space=vmem, size = 0x8000, scoped, tag = 'output window, operand 0, single buffered']
    #allocation14 [shape = 'u8[8192]{0}', space=vmem, size = 0x2000, scoped, tag = 'output window, operand 1, single buffered']
    #allocation15 [shape = 's32[1]{0}', space=sflag, size = 0x4, scoped, tag = 'scoped memory for tpu_custom_call.1']
    %15 = vsyncpa [#allocation5], 0
    %16 = vsyncpa [#allocation8], 0
    %17 = vsyncpa [#allocation11], 0
    %18 = vsyncpa [#allocation6], 0
    %19 = vsyncpa [#allocation15], 0
    // Predicated region
    $region2: #{tpu_custom_call.1} parent=1 // pred_check
      _
    $region3: #{tpu_custom_call.1} parent=1 // pred_check_branch
      %21 = sbr.rel (0) target = $region5
    $region4: #{tpu_custom_call.1} parent=1 // pred_region
      _
    $region5: #{tpu_custom_call.1} parent=1 // pred_fallthru
      _
    // Predicated region
    $region6: #{tpu_custom_call.1} parent=1 // pred_check
      _
    $region7: #{tpu_custom_call.1} parent=1 // pred_check_branch
      %23 = sbr.rel (0) target = $region9
    $region8: #{tpu_custom_call.1} parent=1 // pred_region
      %s25 = ssub.s32 512, 512
      %26 = vsyncadd [#allocation5], %s25
      %s27 = sshll.u32 [#allocation4], 4
      %s28 = int_to_ptr.vmem [resolvable:$true] %s27
      %33 = dma.hbm_to_vmem [thread:$0]  %s1, 512, %s28, [#allocation5], 64, 64, 4
    $region9: #{tpu_custom_call.1} parent=1 // pred_fallthru
      _
    // Predicated region
    $region10: #{tpu_custom_call.1} parent=1 // pred_check
      _
    $region11: #{tpu_custom_call.1} parent=1 // pred_check_branch
      %35 = sbr.rel (0) target = $region13
    $region12: #{tpu_custom_call.1} parent=1 // pred_region
      %s37 = ssub.s32 3072, 3072
      %38 = vsyncadd [#allocation8], %s37
      %s39 = sshll.u32 [#allocation7], 4
      %s40 = int_to_ptr.vmem [resolvable:$true] %s39
      %45 = dma.hbm_to_vmem [thread:$0]  %s2, 3072, %s40, [#allocation8], 192, 192, 12
    $region13: #{tpu_custom_call.1} parent=1 // pred_fallthru
      _
    // Predicated region
    $region14: #{tpu_custom_call.1} parent=1 // pred_check
      _
    $region15: #{tpu_custom_call.1} parent=1 // pred_check_branch
      %47 = sbr.rel (0) target = $region17
    $region16: #{tpu_custom_call.1} parent=1 // pred_region
      %s49 = ssub.s32 3072, 3072
      %50 = vsyncadd [#allocation8], %s49
      %s51 = sshll.u32 [#allocation9], 4
      %s52 = int_to_ptr.vmem [resolvable:$true] %s51
      %57 = dma.hbm_to_vmem [thread:$0]  %s3, 3072, %s52, [#allocation8], 192, 192, 12
    $region17: #{tpu_custom_call.1} parent=1 // pred_fallthru
      _
    // Predicated region
    $region18: #{tpu_custom_call.1} parent=1 // pred_check
      _
    $region19: #{tpu_custom_call.1} parent=1 // pred_check_branch
      %59 = sbr.rel (0) target = $region21
    $region20: #{tpu_custom_call.1} parent=1 // pred_region
      %s61 = ssub.s32 12288, 12288
      %62 = vsyncadd [#allocation11], %s61
      %s63 = sshll.u32 [#allocation10], 4
      %s64 = int_to_ptr.vmem [resolvable:$true] %s63
      %69 = dma.hbm_to_vmem [thread:$0]  %s4, 12288, %s64, [#allocation11], 384, 384, 24
    $region21: #{tpu_custom_call.1} parent=1 // pred_fallthru
      _
    // Predicated region
    $region22: #{tpu_custom_call.1} parent=1 // pred_check
      _
    $region23: #{tpu_custom_call.1} parent=1 // pred_check_branch
      %71 = sbr.rel (0) target = $region25
    $region24: #{tpu_custom_call.1} parent=1 // pred_region
      %s73 = ssub.s32 96, 96
      %74 = vsyncadd [#allocation11], %s73
      %s75 = sshll.u32 [#allocation12], 4
      %s76 = int_to_ptr.vmem [resolvable:$true] %s75
      %81 = dma.hbm_to_vmem [thread:$0]  %s5, 96, %s76, [#allocation11], 48, 48, 3
    $region25: #{tpu_custom_call.1} parent=1 // pred_fallthru
      _
    // Predicated region
    $region26: #{tpu_custom_call.1} parent=1 // pred_check
      _
    $region27: #{tpu_custom_call.1} parent=1 // pred_check_branch
      %83 = sbr.rel (0) target = $region29
    $region28: #{tpu_custom_call.1} parent=1 // pred_region
      _
    $region29: #{tpu_custom_call.1} parent=1 // pred_fallthru
      _
    // Predicated region
    $region30: #{tpu_custom_call.1} parent=1 // pred_check
      _
    $region31: #{tpu_custom_call.1} parent=1 // pred_check_branch
      %85 = sbr.rel (0) target = $region33
    $region32: #{tpu_custom_call.1} parent=1 // pred_region
      _
    $region33: #{tpu_custom_call.1} parent=1 // pred_fallthru
      _
    // Predicated region
    $region34: #{tpu_custom_call.1} parent=1 // pred_check
      _
    $region35: #{tpu_custom_call.1} parent=1 // pred_check_branch
      %87 = sbr.rel (0) target = $region37
    $region36: #{tpu_custom_call.1} parent=1 // pred_region
      %88 = dma.done [#allocation5], 512
    $region37: #{tpu_custom_call.1} parent=1 // pred_fallthru
      _
    // Predicated region
    $region38: #{tpu_custom_call.1} parent=1 // pred_check
      _
    $region39: #{tpu_custom_call.1} parent=1 // pred_check_branch
      %90 = sbr.rel (0) target = $region41
    $region40: #{tpu_custom_call.1} parent=1 // pred_region
      %91 = dma.done [#allocation8], 3072
    $region41: #{tpu_custom_call.1} parent=1 // pred_fallthru
      _
    // Predicated region
    $region42: #{tpu_custom_call.1} parent=1 // pred_check
      _
    $region43: #{tpu_custom_call.1} parent=1 // pred_check_branch
      %93 = sbr.rel (0) target = $region45
    $region44: #{tpu_custom_call.1} parent=1 // pred_region
      %94 = dma.done [#allocation8], 3072
    $region45: #{tpu_custom_call.1} parent=1 // pred_fallthru
      _
    // Predicated region
    $region46: #{tpu_custom_call.1} parent=1 // pred_check
      _
    $region47: #{tpu_custom_call.1} parent=1 // pred_check_branch
      %96 = sbr.rel (0) target = $region49
    $region48: #{tpu_custom_call.1} parent=1 // pred_region
      %97 = dma.done [#allocation11], 12288
    $region49: #{tpu_custom_call.1} parent=1 // pred_fallthru
      _
    // Predicated region
    $region50: #{tpu_custom_call.1} parent=1 // pred_check
      _
    $region51: #{tpu_custom_call.1} parent=1 // pred_check_branch
      %99 = sbr.rel (0) target = $region53
    $region52: #{tpu_custom_call.1} parent=1 // pred_region
      %100 = dma.done [#allocation11], 96
    $region53: #{tpu_custom_call.1} parent=1 // pred_fallthru
      _
    %p102 = scmp.eq.s32.totalorder 0, 0
    // Predicated region
    $region54: #{tpu_custom_call.1} parent=1 // pred_check
      %p103 = pneg %p102
    $region55: #{tpu_custom_call.1} parent=1 // pred_check_branch
      %105 = sbr.rel (%p103) target = $region57
    $region56: #{tpu_custom_call.1} parent=1 // pred_region
      %v106 = vld [vmem:[%s7] sm:$0xff]
      %v107 = vld [vmem:[%s7 + $0x8] sm:$0xff]
      %108 = vst [vmem:[#allocation14] sm:$0xff] %v106
      %109 = vst [vmem:[#allocation14 + $0x8] sm:$0xff] %v107
    $region57: #{tpu_custom_call.1} parent=1 // pred_fallthru
      _
    %v110 = vld [vmem:[%s0] sm:$0xff]
    %s111 = smul.u32 0, 8
    %v112 = vld [vmem:[#allocation4] sm:$0xf]
    %v113 = vld [vmem:[#allocation4 + $0x4] sm:$0xf]
    %v114 = vld [vmem:[#allocation4 + $0x8] sm:$0xf]
    %v115 = vld [vmem:[#allocation4 + $0xc] sm:$0xf]
    %v116 = vld [vmem:[#allocation4 + $0x10] sm:$0xf]
    %v117 = vld [vmem:[#allocation4 + $0x14] sm:$0xf]
    %v118 = vld [vmem:[#allocation4 + $0x18] sm:$0xf]
    %v119 = vld [vmem:[#allocation4 + $0x1c] sm:$0xf]
    %v120 = vld [vmem:[#allocation7] sm:$0xff]
    %v121 = vld [vmem:[#allocation7 + $0x8] sm:$0xf]
    %v122 = vld [vmem:[#allocation7 + $0xc] sm:$0xff]
    %v123 = vld [vmem:[#allocation7 + $0x14] sm:$0xf]
    %v124 = vld [vmem:[#allocation7 + $0x18] sm:$0xff]
    %v125 = vld [vmem:[#allocation7 + $0x20] sm:$0xf]
    %v126 = vld [vmem:[#allocation7 + $0x24] sm:$0xff]
    %v127 = vld [vmem:[#allocation7 + $0x2c] sm:$0xf]
    %v128 = vld [vmem:[#allocation7 + $0x30] sm:$0xff]
    %v129 = vld [vmem:[#allocation7 + $0x38] sm:$0xf]
    %v130 = vld [vmem:[#allocation7 + $0x3c] sm:$0xff]
    %v131 = vld [vmem:[#allocation7 + $0x44] sm:$0xf]
    %v132 = vld [vmem:[#allocation7 + $0x48] sm:$0xff]
    %v133 = vld [vmem:[#allocation7 + $0x50] sm:$0xf]
    %v134 = vld [vmem:[#allocation7 + $0x54] sm:$0xff]
    %v135 = vld [vmem:[#allocation7 + $0x5c] sm:$0xf]
    %v136 = vld [vmem:[#allocation7 + $0x60] sm:$0xff]
    %v137 = vld [vmem:[#allocation7 + $0x68] sm:$0xf]
    %v138 = vld [vmem:[#allocation7 + $0x6c] sm:$0xff]
    %v139 = vld [vmem:[#allocation7 + $0x74] sm:$0xf]
    %v140 = vld [vmem:[#allocation7 + $0x78] sm:$0xff]
    %v141 = vld [vmem:[#allocation7 + $0x80] sm:$0xf]
    %v142 = vld [vmem:[#allocation7 + $0x84] sm:$0xff]
    %v143 = vld [vmem:[#allocation7 + $0x8c] sm:$0xf]
    %v144 = vld [vmem:[#allocation7 + $0x90] sm:$0xff]
    %v145 = vld [vmem:[#allocation7 + $0x98] sm:$0xf]
    %v146 = vld [vmem:[#allocation7 + $0x9c] sm:$0xff]
    %v147 = vld [vmem:[#allocation7 + $0xa4] sm:$0xf]
    %v148 = vld [vmem:[#allocation7 + $0xa8] sm:$0xff]
    %v149 = vld [vmem:[#allocation7 + $0xb0] sm:$0xf]
    %v150 = vld [vmem:[#allocation7 + $0xb4] sm:$0xff]
    %v151 = vld [vmem:[#allocation7 + $0xbc] sm:$0xf]
    %v152 = vld [vmem:[#allocation12] sm:$0x7]
    %v154 = vlaneseq
    %v155 = vshrl.u32 %v154, 7
    %v156 = vsub.s32 0, %v155
    %v157 = vrot.slane %v152, %v156
    %v158 = vlaneseq
    %v159 = vshrl.u32 %v158, 7
    %v160 = vsub.s32 1, %v159
    %v161 = vrot.slane %v152, %v160
    %v162 = vlaneseq
    %v163 = vshrl.u32 %v162, 7
    %v164 = vsub.s32 2, %v163
    %v165 = vrot.slane %v152, %v164
    %v177 = vunpack.c.l.b16 %v112
    %v178 = vunpack.c.l.b16 %v113
    %v179 = vunpack.c.l.b16 %v114
    %v180 = vunpack.c.l.b16 %v115
    %v181 = vunpack.c.l.b16 %v116
    %v182 = vunpack.c.l.b16 %v117
    %v183 = vunpack.c.l.b16 %v118
    %v184 = vunpack.c.l.b16 %v119
    %v185 = vpack.c.b16 %v178, %v177
    %v186 = vpack.c.b16 %v180, %v179
    %v187 = vpack.c.b16 %v182, %v181
    %v188 = vpack.c.b16 %v184, %v183
    %v225 = vunpack.c.l.b16 %v120
    %v226 = vunpack.c.h.b16 %v120
    %v227 = vunpack.c.l.b16 %v121
    %v228 = vunpack.c.l.b16 %v122
    %v229 = vunpack.c.h.b16 %v122
    %v230 = vunpack.c.l.b16 %v123
    %v231 = vunpack.c.l.b16 %v124
    %v232 = vunpack.c.h.b16 %v124
    %v233 = vunpack.c.l.b16 %v125
    %v234 = vunpack.c.l.b16 %v126
    %v235 = vunpack.c.h.b16 %v126
    %v236 = vunpack.c.l.b16 %v127
    %v237 = vunpack.c.l.b16 %v128
    %v238 = vunpack.c.h.b16 %v128
    %v239 = vunpack.c.l.b16 %v129
    %v240 = vunpack.c.l.b16 %v130
    %v241 = vunpack.c.h.b16 %v130
    %v242 = vunpack.c.l.b16 %v131
    %v243 = vunpack.c.l.b16 %v132
    %v244 = vunpack.c.h.b16 %v132
    %v245 = vunpack.c.l.b16 %v133
    %v246 = vunpack.c.l.b16 %v134
    %v247 = vunpack.c.h.b16 %v134
    %v248 = vunpack.c.l.b16 %v135
    %v249 = vunpack.c.l.b16 %v136
    %v250 = vunpack.c.h.b16 %v136
    %v251 = vunpack.c.l.b16 %v137
    %v252 = vunpack.c.l.b16 %v138
    %v253 = vunpack.c.h.b16 %v138
    %v254 = vunpack.c.l.b16 %v139
    %v255 = vunpack.c.l.b16 %v140
    %v256 = vunpack.c.h.b16 %v140
    %v257 = vunpack.c.l.b16 %v141
    %v258 = vunpack.c.l.b16 %v142
    %v259 = vunpack.c.h.b16 %v142
    %v260 = vunpack.c.l.b16 %v143
    %v261 = vunpack.c.l.b16 %v144
    %v262 = vunpack.c.h.b16 %v144
    %v263 = vunpack.c.l.b16 %v145
    %v264 = vunpack.c.l.b16 %v146
    %v265 = vunpack.c.h.b16 %v146
    %v266 = vunpack.c.l.b16 %v147
    %v267 = vunpack.c.l.b16 %v148
    %v268 = vunpack.c.h.b16 %v148
    %v269 = vunpack.c.l.b16 %v149
    %v270 = vunpack.c.l.b16 %v150
    %v271 = vunpack.c.h.b16 %v150
    %v272 = vunpack.c.l.b16 %v151
    %v273 = vpack.c.b16 %v228, %v225
    %v274 = vpack.c.b16 %v229, %v226
    %v275 = vpack.c.b16 %v230, %v227
    %v276 = vpack.c.b16 %v234, %v231
    %v277 = vpack.c.b16 %v235, %v232
    %v278 = vpack.c.b16 %v236, %v233
    %v279 = vpack.c.b16 %v240, %v237
    %v280 = vpack.c.b16 %v241, %v238
    %v281 = vpack.c.b16 %v242, %v239
    %v282 = vpack.c.b16 %v246, %v243
    %v283 = vpack.c.b16 %v247, %v244
    %v284 = vpack.c.b16 %v248, %v245
    %v285 = vpack.c.b16 %v252, %v249
    %v286 = vpack.c.b16 %v253, %v250
    %v287 = vpack.c.b16 %v254, %v251
    %v288 = vpack.c.b16 %v258, %v255
    %v289 = vpack.c.b16 %v259, %v256
    %v290 = vpack.c.b16 %v260, %v257
    %v291 = vpack.c.b16 %v264, %v261
    %v292 = vpack.c.b16 %v265, %v262
    %v293 = vpack.c.b16 %v266, %v263
    %v294 = vpack.c.b16 %v270, %v267
    %v295 = vpack.c.b16 %v271, %v268
    %v296 = vpack.c.b16 %v272, %v269
    %321 = vmatprep.subr.bf16.mxu0 %v295
    %322 = vmatpush1.bf16.msra.mxu0 %v294
    %323 = vmatprep.subr.bf16.mxu0 %v292
    %324 = vmatpush1.bf16.msra.mxu0 %v291
    %325 = vmatprep.subr.bf16.mxu0 %v289
    %326 = vmatpush1.bf16.msra.mxu0 %v288
    %327 = vmatprep.subr.bf16.mxu0 %v286
    %328 = vmatpush1.bf16.msra.mxu0 %v285
    %329 = vmatprep.subr.bf16.mxu0 %v283
    %330 = vmatpush1.bf16.msra.mxu0 %v282
    %331 = vmatprep.subr.bf16.mxu0 %v280
    %332 = vmatpush1.bf16.msra.mxu0 %v279
    %333 = vmatprep.subr.bf16.mxu0 %v277
    %334 = vmatpush1.bf16.msra.mxu0 %v276
    %335 = vmatprep.subr.bf16.mxu0 %v274
    %336 = vmatpush1.bf16.msra.mxu0 %v273
    %337 = vmatprep.subr.bf16.mxu0 0
    %338 = vmatpush2.bf16.msra.mxu0 0
    %339 = vmatprep.subr.bf16.mxu0 0
    %340 = vmatpush2.bf16.msra.mxu0 0
    %341 = vmatprep.subr.bf16.mxu0 0
    %342 = vmatpush2.bf16.msra.mxu0 0
    %343 = vmatprep.subr.bf16.mxu0 0
    %344 = vmatpush2.bf16.msra.mxu0 0
    %345 = vmatprep.subr.bf16.mxu0 0
    %346 = vmatpush2.bf16.msra.mxu0 0
    %347 = vmatprep.subr.bf16.mxu0 0
    %348 = vmatpush2.bf16.msra.mxu0 0
    %349 = vmatprep.subr.bf16.mxu0 0
    %350 = vmatpush2.bf16.msra.mxu0 0
    %351 = vmatprep.subr.bf16.mxu0 0
    %352 = vmatpush2.bf16.msra.mxu0 0
    %353 = vmatprep.mubr.bf16.mxu0 0
    %354 = vmatmul.mubr.bf16.gmra.mxu0 %v185
    %v355 = vpop.f32.mrf.mxu0
    %v356 = vadd.f32 %v157, %v355
    %v357 = vpop.f32.mrf.mxu0
    %v358 = vadd.f32 %v161, %v357
    %v359 = vpop.f32.mrf.mxu0
    %v360 = vadd.f32 %v157, %v359
    %v361 = vpop.f32.mrf.mxu0
    %v362 = vadd.f32 %v161, %v361
    %363 = vmatprep.mubr.bf16.mxu0 0
    %364 = vmatmul.mubr.bf16.gmra.mxu0 %v186
    %v365 = vpop.f32.mrf.mxu0
    %v366 = vadd.f32 %v157, %v365
    %v367 = vpop.f32.mrf.mxu0
    %v368 = vadd.f32 %v161, %v367
    %v369 = vpop.f32.mrf.mxu0
    %v370 = vadd.f32 %v157, %v369
    %v371 = vpop.f32.mrf.mxu0
    %v372 = vadd.f32 %v161, %v371
    %373 = vmatprep.mubr.bf16.mxu0 0
    %374 = vmatmul.mubr.bf16.gmra.mxu0 %v187
    %v375 = vpop.f32.mrf.mxu0
    %v376 = vadd.f32 %v157, %v375
    %v377 = vpop.f32.mrf.mxu0
    %v378 = vadd.f32 %v161, %v377
    %v379 = vpop.f32.mrf.mxu0
    %v380 = vadd.f32 %v157, %v379
    %v381 = vpop.f32.mrf.mxu0
    %v382 = vadd.f32 %v161, %v381
    %383 = vmatprep.mubr.bf16.mxu0 0
    %384 = vmatmul.mubr.bf16.gmra.mxu0 %v188
    %v385 = vpop.f32.mrf.mxu0
    %v386 = vadd.f32 %v157, %v385
    %v387 = vpop.f32.mrf.mxu0
    %v388 = vadd.f32 %v161, %v387
    %v389 = vpop.f32.mrf.mxu0
    %v390 = vadd.f32 %v157, %v389
    %v391 = vpop.f32.mrf.mxu0
    %v392 = vadd.f32 %v161, %v391
    %393 = vdwg.mxu0
    %394 = vmatprep.subr.bf16.mxu0 0
    %395 = vmatpush1.bf16.msra.mxu0 %v296
    %396 = vmatprep.subr.bf16.mxu0 0
    %397 = vmatpush1.bf16.msra.mxu0 %v293
    %398 = vmatprep.subr.bf16.mxu0 0
    %399 = vmatpush1.bf16.msra.mxu0 %v290
    %400 = vmatprep.subr.bf16.mxu0 0
    %401 = vmatpush1.bf16.msra.mxu0 %v287
    %402 = vmatprep.subr.bf16.mxu0 0
    %403 = vmatpush1.bf16.msra.mxu0 %v284
    %404 = vmatprep.subr.bf16.mxu0 0
    %405 = vmatpush1.bf16.msra.mxu0 %v281
    %406 = vmatprep.subr.bf16.mxu0 0
    %407 = vmatpush1.bf16.msra.mxu0 %v278
    %408 = vmatprep.subr.bf16.mxu0 0
    %409 = vmatpush1.bf16.msra.mxu0 %v275
    %410 = vmatprep.subr.bf16.mxu0 0
    %411 = vmatpush2.bf16.msra.mxu0 0
    %412 = vmatprep.subr.bf16.mxu0 0
    %413 = vmatpush2.bf16.msra.mxu0 0
    %414 = vmatprep.subr.bf16.mxu0 0
    %415 = vmatpush2.bf16.msra.mxu0 0
    %416 = vmatprep.subr.bf16.mxu0 0
    %417 = vmatpush2.bf16.msra.mxu0 0
    %418 = vmatprep.subr.bf16.mxu0 0
    %419 = vmatpush2.bf16.msra.mxu0 0
    %420 = vmatprep.subr.bf16.mxu0 0
    %421 = vmatpush2.bf16.msra.mxu0 0
    %422 = vmatprep.subr.bf16.mxu0 0
    %423 = vmatpush2.bf16.msra.mxu0 0
    %424 = vmatprep.subr.bf16.mxu0 0
    %425 = vmatpush2.bf16.msra.mxu0 0
    %426 = vmatprep.mubr.bf16.mxu0 0
    %427 = vmatmul.mubr.bf16.gmra.mxu0 %v185
    %v428 = vpop.f32.mrf.mxu0
    %v429 = vadd.f32 %v165, %v428
    %v430 = vpop.f32.mrf.mxu0
    %v431 = vpop.f32.mrf.mxu0
    %v432 = vadd.f32 %v165, %v431
    %v433 = vpop.f32.mrf.mxu0
    %434 = vmatprep.mubr.bf16.mxu0 0
    %435 = vmatmul.mubr.bf16.gmra.mxu0 %v186
    %v436 = vpop.f32.mrf.mxu0
    %v437 = vadd.f32 %v165, %v436
    %v438 = vpop.f32.mrf.mxu0
    %v439 = vpop.f32.mrf.mxu0
    %v440 = vadd.f32 %v165, %v439
    %v441 = vpop.f32.mrf.mxu0
    %442 = vmatprep.mubr.bf16.mxu0 0
    %443 = vmatmul.mubr.bf16.gmra.mxu0 %v187
    %v444 = vpop.f32.mrf.mxu0
    %v445 = vadd.f32 %v165, %v444
    %v446 = vpop.f32.mrf.mxu0
    %v447 = vpop.f32.mrf.mxu0
    %v448 = vadd.f32 %v165, %v447
    %v449 = vpop.f32.mrf.mxu0
    %450 = vmatprep.mubr.bf16.mxu0 0
    %451 = vmatmul.mubr.bf16.gmra.mxu0 %v188
    %v452 = vpop.f32.mrf.mxu0
    %v453 = vadd.f32 %v165, %v452
    %v454 = vpop.f32.mrf.mxu0
    %v455 = vpop.f32.mrf.mxu0
    %v456 = vadd.f32 %v165, %v455
    %v457 = vpop.f32.mrf.mxu0
    %458 = vdwg.mxu0
    %v459 = vpack.c.bf16 %v356, %v356
    %v460 = vpack.c.bf16 %v358, %v358
    %v461 = vpack.c.bf16 %v429, %v429
    %v462 = vpack.c.bf16 %v360, %v360
    %v463 = vpack.c.bf16 %v362, %v362
    %v464 = vpack.c.bf16 %v432, %v432
    %v465 = vpack.c.bf16 %v366, %v366
    %v466 = vpack.c.bf16 %v368, %v368
    %v467 = vpack.c.bf16 %v437, %v437
    %v468 = vpack.c.bf16 %v370, %v370
    %v469 = vpack.c.bf16 %v372, %v372
    %v470 = vpack.c.bf16 %v440, %v440
    %v471 = vpack.c.bf16 %v376, %v376
    %v472 = vpack.c.bf16 %v378, %v378
    %v473 = vpack.c.bf16 %v445, %v445
    %v474 = vpack.c.bf16 %v380, %v380
    %v475 = vpack.c.bf16 %v382, %v382
    %v476 = vpack.c.bf16 %v448, %v448
    %v477 = vpack.c.bf16 %v386, %v386
    %v478 = vpack.c.bf16 %v388, %v388
    %v479 = vpack.c.bf16 %v453, %v453
    %v480 = vpack.c.bf16 %v390, %v390
    %v481 = vpack.c.bf16 %v392, %v392
    %v482 = vpack.c.bf16 %v456, %v456
    %v507 = vunpack.c.l.b16 %v459
    %v508 = vunpack.c.l.b16 %v460
    %v509 = vunpack.c.l.b16 %v461
    %v510 = vunpack.c.l.b16 %v462
    %v511 = vunpack.c.l.b16 %v463
    %v512 = vunpack.c.l.b16 %v464
    %v513 = vunpack.c.l.b16 %v465
    %v514 = vunpack.c.l.b16 %v466
    %v515 = vunpack.c.l.b16 %v467
    %v516 = vunpack.c.l.b16 %v468
    %v517 = vunpack.c.l.b16 %v469
    %v518 = vunpack.c.l.b16 %v470
    %v519 = vunpack.c.l.b16 %v471
    %v520 = vunpack.c.l.b16 %v472
    %v521 = vunpack.c.l.b16 %v473
    %v522 = vunpack.c.l.b16 %v474
    %v523 = vunpack.c.l.b16 %v475
    %v524 = vunpack.c.l.b16 %v476
    %v525 = vunpack.c.l.b16 %v477
    %v526 = vunpack.c.l.b16 %v478
    %v527 = vunpack.c.l.b16 %v479
    %v528 = vunpack.c.l.b16 %v480
    %v529 = vunpack.c.l.b16 %v481
    %v530 = vunpack.c.l.b16 %v482
    %v531 = vpack.c.b16 %v508, %v507
    %v532 = vpack.c.b16 %v509, %v509
    %v533 = vpack.c.b16 %v511, %v510
    %v534 = vpack.c.b16 %v512, %v512
    %v535 = vpack.c.b16 %v514, %v513
    %v536 = vpack.c.b16 %v515, %v515
    %v537 = vpack.c.b16 %v517, %v516
    %v538 = vpack.c.b16 %v518, %v518
    %v539 = vpack.c.b16 %v520, %v519
    %v540 = vpack.c.b16 %v521, %v521
    %v541 = vpack.c.b16 %v523, %v522
    %v542 = vpack.c.b16 %v524, %v524
    %v543 = vpack.c.b16 %v526, %v525
    %v544 = vpack.c.b16 %v527, %v527
    %v545 = vpack.c.b16 %v529, %v528
    %v546 = vpack.c.b16 %v530, %v530
    %563 = vst [vmem:[#allocation3] sm:$0xff] %v531
    %564 = vst [vmem:[#allocation3 + $0x8] sm:$0xf] %v532
    %565 = vst [vmem:[#allocation3 + $0xc] sm:$0xff] %v533
    %566 = vst [vmem:[#allocation3 + $0x14] sm:$0xf] %v534
    %567 = vst [vmem:[#allocation3 + $0x18] sm:$0xff] %v535
    %568 = vst [vmem:[#allocation3 + $0x20] sm:$0xf] %v536
    %569 = vst [vmem:[#allocation3 + $0x24] sm:$0xff] %v537
    %570 = vst [vmem:[#allocation3 + $0x2c] sm:$0xf] %v538
    %571 = vst [vmem:[#allocation3 + $0x30] sm:$0xff] %v539
    %572 = vst [vmem:[#allocation3 + $0x38] sm:$0xf] %v540
    %573 = vst [vmem:[#allocation3 + $0x3c] sm:$0xff] %v541
    %574 = vst [vmem:[#allocation3 + $0x44] sm:$0xf] %v542
    %575 = vst [vmem:[#allocation3 + $0x48] sm:$0xff] %v543
    %576 = vst [vmem:[#allocation3 + $0x50] sm:$0xf] %v544
    %577 = vst [vmem:[#allocation3 + $0x54] sm:$0xff] %v545
    %578 = vst [vmem:[#allocation3 + $0x5c] sm:$0xf] %v546
    %v579 = vld [vmem:[#allocation10] sm:$0xff]
    %v580 = vld [vmem:[#allocation10 + $0x8] sm:$0xff]
    %v581 = vld [vmem:[#allocation10 + $0x10] sm:$0xff]
    %v582 = vld [vmem:[#allocation10 + $0x18] sm:$0xff]
    %v583 = vld [vmem:[#allocation10 + $0x20] sm:$0xff]
    %v584 = vld [vmem:[#allocation10 + $0x28] sm:$0xff]
    %v585 = vld [vmem:[#allocation10 + $0x30] sm:$0xff]
    %v586 = vld [vmem:[#allocation10 + $0x38] sm:$0xff]
    %v587 = vld [vmem:[#allocation10 + $0x40] sm:$0xff]
    %v588 = vld [vmem:[#allocation10 + $0x48] sm:$0xff]
    %v589 = vld [vmem:[#allocation10 + $0x50] sm:$0xff]
    %v590 = vld [vmem:[#allocation10 + $0x58] sm:$0xff]
    %v591 = vld [vmem:[#allocation10 + $0x60] sm:$0xff]
    %v592 = vld [vmem:[#allocation10 + $0x68] sm:$0xff]
    %v593 = vld [vmem:[#allocation10 + $0x70] sm:$0xff]
    %v594 = vld [vmem:[#allocation10 + $0x78] sm:$0xff]
    %v595 = vld [vmem:[#allocation10 + $0x80] sm:$0xff]
    %v596 = vld [vmem:[#allocation10 + $0x88] sm:$0xff]
    %v597 = vld [vmem:[#allocation10 + $0x90] sm:$0xff]
    %v598 = vld [vmem:[#allocation10 + $0x98] sm:$0xff]
    %v599 = vld [vmem:[#allocation10 + $0xa0] sm:$0xff]
    %v600 = vld [vmem:[#allocation10 + $0xa8] sm:$0xff]
    %v601 = vld [vmem:[#allocation10 + $0xb0] sm:$0xff]
    %v602 = vld [vmem:[#allocation10 + $0xb8] sm:$0xff]
    %v603 = vld [vmem:[#allocation10 + $0xc0] sm:$0xff]
    %v604 = vld [vmem:[#allocation10 + $0xc8] sm:$0xff]
    %v605 = vld [vmem:[#allocation10 + $0xd0] sm:$0xff]
    %v606 = vld [vmem:[#allocation10 + $0xd8] sm:$0xff]
    %v607 = vld [vmem:[#allocation10 + $0xe0] sm:$0xff]
    %v608 = vld [vmem:[#allocation10 + $0xe8] sm:$0xff]
    %v609 = vld [vmem:[#allocation10 + $0xf0] sm:$0xff]
    %v610 = vld [vmem:[#allocation10 + $0xf8] sm:$0xff]
    %v611 = vld [vmem:[#allocation10 + $0x100] sm:$0xff]
    %v612 = vld [vmem:[#allocation10 + $0x108] sm:$0xff]
    %v613 = vld [vmem:[#allocation10 + $0x110] sm:$0xff]
    %v614 = vld [vmem:[#allocation10 + $0x118] sm:$0xff]
    %v615 = vld [vmem:[#allocation10 + $0x120] sm:$0xff]
    %v616 = vld [vmem:[#allocation10 + $0x128] sm:$0xff]
    %v617 = vld [vmem:[#allocation10 + $0x130] sm:$0xff]
    %v618 = vld [vmem:[#allocation10 + $0x138] sm:$0xff]
    %v619 = vld [vmem:[#allocation10 + $0x140] sm:$0xff]
    %v620 = vld [vmem:[#allocation10 + $0x148] sm:$0xff]
    %v621 = vld [vmem:[#allocation10 + $0x150] sm:$0xff]
    %v622 = vld [vmem:[#allocation10 + $0x158] sm:$0xff]
    %v623 = vld [vmem:[#allocation10 + $0x160] sm:$0xff]
    %v624 = vld [vmem:[#allocation10 + $0x168] sm:$0xff]
    %v625 = vld [vmem:[#allocation10 + $0x170] sm:$0xff]
    %v626 = vld [vmem:[#allocation10 + $0x178] sm:$0xff]
    %v627 = vld [vmem:[%s6] sm:$0x1]
    %v628 = vld [vmem:[#allocation14] sm:$0xff]
    %v629 = vld [vmem:[#allocation3] sm:$0xff]
    %v630 = vld [vmem:[#allocation3 + $0x8] sm:$0xf]
    %v631 = vunpack.c.l.bf16 %v629
    %v632 = vunpack.c.h.bf16 %v629
    %v633 = vunpack.c.l.bf16 %v630
    %634 = vmatprep.subr.mxu0 %v625
    %635 = vmatpush1.msra.mxu0 %v624
    %636 = vmatprep.subr.mxu0 %v622
    %637 = vmatpush1.msra.mxu0 %v621
    %638 = vmatprep.subr.mxu0 %v619
    %639 = vmatpush1.msra.mxu0 %v618
    %640 = vmatprep.subr.mxu0 %v616
    %641 = vmatpush1.msra.mxu0 %v615
    %642 = vmatprep.subr.mxu0 %v613
    %643 = vmatpush1.msra.mxu0 %v612
    %644 = vmatprep.subr.mxu0 %v610
    %645 = vmatpush1.msra.mxu0 %v609
    %646 = vmatprep.subr.mxu0 %v607
    %647 = vmatpush1.msra.mxu0 %v606
    %648 = vmatprep.subr.mxu0 %v604
    %649 = vmatpush1.msra.mxu0 %v603
    %650 = vmatprep.subr.mxu0 %v601
    %651 = vmatpush1.msra.mxu0 %v600
    %652 = vmatprep.subr.mxu0 %v598
    %653 = vmatpush1.msra.mxu0 %v597
    %654 = vmatprep.subr.mxu0 %v595
    %655 = vmatpush1.msra.mxu0 %v594
    %656 = vmatprep.subr.mxu0 %v592
    %657 = vmatpush1.msra.mxu0 %v591
    %658 = vmatprep.subr.mxu0 %v589
    %659 = vmatpush1.msra.mxu0 %v588
    %660 = vmatprep.subr.mxu0 %v586
    %661 = vmatpush1.msra.mxu0 %v585
    %662 = vmatprep.subr.mxu0 %v583
    %663 = vmatpush1.msra.mxu0 %v582
    %664 = vmatprep.subr.mxu0 %v580
    %665 = vmatpush1.msra.mxu0 %v579
    %666 = vmatprep.subr.mxu0 0.0
    %667 = vmatpush2.msra.mxu0 0.0
    %668 = vmatprep.subr.mxu0 0.0
    %669 = vmatpush2.msra.mxu0 0.0
    %670 = vmatprep.subr.mxu0 0.0
    %671 = vmatpush2.msra.mxu0 0.0
    %672 = vmatprep.subr.mxu0 0.0
    %673 = vmatpush2.msra.mxu0 0.0
    %674 = vmatprep.subr.mxu0 0.0
    %675 = vmatpush2.msra.mxu0 0.0
    %676 = vmatprep.subr.mxu0 0.0
    %677 = vmatpush2.msra.mxu0 0.0
    %678 = vmatprep.subr.mxu0 0.0
    %679 = vmatpush2.msra.mxu0 0.0
    %680 = vmatprep.subr.mxu0 0.0
    %681 = vmatpush2.msra.mxu0 0.0
    %682 = vmatprep.subr.mxu0 0.0
    %683 = vmatpush2.msra.mxu0 0.0
    %684 = vmatprep.subr.mxu0 0.0
    %685 = vmatpush2.msra.mxu0 0.0
    %686 = vmatprep.subr.mxu0 0.0
    %687 = vmatpush2.msra.mxu0 0.0
    %688 = vmatprep.subr.mxu0 0.0
    %689 = vmatpush2.msra.mxu0 0.0
    %690 = vmatprep.subr.mxu0 0.0
    %691 = vmatpush2.msra.mxu0 0.0
    %692 = vmatprep.subr.mxu0 0.0
    %693 = vmatpush2.msra.mxu0 0.0
    %694 = vmatprep.subr.mxu0 0.0
    %695 = vmatpush2.msra.mxu0 0.0
    %696 = vmatprep.subr.mxu0 0.0
    %697 = vmatpush2.msra.mxu0 0.0
    %698 = vmatprep.mubr.f32.mxu0 0.0
    %699 = vmatmul.mubr.f32.gmra.mxu0 %v628
    %v700 = vpop.f32.mrf.mxu0
    %v701 = vadd.f32 0.0, %v700
    %v702 = vpop.f32.mrf.mxu0
    %v703 = vadd.f32 0.0, %v702
    %704 = vdwg.mxu0
    %705 = vmatprep.subr.mxu0 0.0
    %706 = vmatpush1.msra.mxu0 %v626
    %707 = vmatprep.subr.mxu0 0.0
    %708 = vmatpush1.msra.mxu0 %v623
    %709 = vmatprep.subr.mxu0 0.0
    %710 = vmatpush1.msra.mxu0 %v620
    %711 = vmatprep.subr.mxu0 0.0
    %712 = vmatpush1.msra.mxu0 %v617
    %713 = vmatprep.subr.mxu0 0.0
    %714 = vmatpush1.msra.mxu0 %v614
    %715 = vmatprep.subr.mxu0 0.0
    %716 = vmatpush1.msra.mxu0 %v611
    %717 = vmatprep.subr.mxu0 0.0
    %718 = vmatpush1.msra.mxu0 %v608
    %719 = vmatprep.subr.mxu0 0.0
    %720 = vmatpush1.msra.mxu0 %v605
    %721 = vmatprep.subr.mxu0 0.0
    %722 = vmatpush1.msra.mxu0 %v602
    %723 = vmatprep.subr.mxu0 0.0
    %724 = vmatpush1.msra.mxu0 %v599
    %725 = vmatprep.subr.mxu0 0.0
    %726 = vmatpush1.msra.mxu0 %v596
    %727 = vmatprep.subr.mxu0 0.0
    %728 = vmatpush1.msra.mxu0 %v593
    %729 = vmatprep.subr.mxu0 0.0
    %730 = vmatpush1.msra.mxu0 %v590
    %731 = vmatprep.subr.mxu0 0.0
    %732 = vmatpush1.msra.mxu0 %v587
    %733 = vmatprep.subr.mxu0 0.0
    %734 = vmatpush1.msra.mxu0 %v584
    %735 = vmatprep.subr.mxu0 0.0
    %736 = vmatpush1.msra.mxu0 %v581
    %737 = vmatprep.subr.mxu0 0.0
    %738 = vmatpush2.msra.mxu0 0.0
    %739 = vmatprep.subr.mxu0 0.0
    %740 = vmatpush2.msra.mxu0 0.0
    %741 = vmatprep.subr.mxu0 0.0
    %742 = vmatpush2.msra.mxu0 0.0
    %743 = vmatprep.subr.mxu0 0.0
    %744 = vmatpush2.msra.mxu0 0.0
    %745 = vmatprep.subr.mxu0 0.0
    %746 = vmatpush2.msra.mxu0 0.0
    %747 = vmatprep.subr.mxu0 0.0
    %748 = vmatpush2.msra.mxu0 0.0
    %749 = vmatprep.subr.mxu0 0.0
    %750 = vmatpush2.msra.mxu0 0.0
    %751 = vmatprep.subr.mxu0 0.0
    %752 = vmatpush2.msra.mxu0 0.0
    %753 = vmatprep.subr.mxu0 0.0
    %754 = vmatpush2.msra.mxu0 0.0
    %755 = vmatprep.subr.mxu0 0.0
    %756 = vmatpush2.msra.mxu0 0.0
    %757 = vmatprep.subr.mxu0 0.0
    %758 = vmatpush2.msra.mxu0 0.0
    %759 = vmatprep.subr.mxu0 0.0
    %760 = vmatpush2.msra.mxu0 0.0
    %761 = vmatprep.subr.mxu0 0.0
    %762 = vmatpush2.msra.mxu0 0.0
    %763 = vmatprep.subr.mxu0 0.0
    %764 = vmatpush2.msra.mxu0 0.0
    %765 = vmatprep.subr.mxu0 0.0
    %766 = vmatpush2.msra.mxu0 0.0
    %767 = vmatprep.subr.mxu0 0.0
    %768 = vmatpush2.msra.mxu0 0.0
    %769 = vmatprep.mubr.f32.mxu0 0.0
    %770 = vmatmul.mubr.f32.gmra.mxu0 %v628
    %v771 = vpop.f32.mrf.mxu0
    %v772 = vadd.f32 0.0, %v771
    %v773 = vpop.f32.mrf.mxu0
    %774 = vdwg.mxu0
    %v775 = vadd.f32 %v631, %v701
    %v776 = vxor.u32 %v775, 2147483648
    %v777 = vmul.f32 %v776, 1.442695
    %v778 = vpow.pop %v777
    %v779 = vadd.f32 %v778, 1.0
    %v780 = vrcp.pop %v779
    %v781 = vmul.f32 1.0, %v780
    %v782 = vadd.f32 %v632, %v703
    %v783 = vxor.u32 %v782, 2147483648
    %v784 = vmul.f32 %v783, 1.442695
    %v785 = vpow.pop %v784
    %v786 = vadd.f32 %v785, 1.0
    %v787 = vrcp.pop %v786
    %v788 = vmul.f32 1.0, %v787
    %v790 = vlaneseq
    %v791 = vshrl.u32 %v790, 7
    %v792 = vsub.s32 0, %v791
    %v793 = vrot.slane %v627, %v792
    %v795 = vadd.f32 %v772, %v793
    %v796 = vmul.f32 %v781, %v795
    %v797 = vadd.f32 %v633, %v796
    %v798 = vtanh.pop %v797
    %v799 = vsub.f32 1.0, %v788
    %v800 = vmul.f32 %v799, %v798
    %v801 = vmul.f32 %v788, %v628
    %v802 = vadd.f32 %v800, %v801
    %v803 = vstv %s111
    %vm804 = vcmp.lt.s32.totalorder %v803, %v110
    %v805 = vsel %vm804, 1, 0
    %806 = vset.pattern.permute.xlu0 0
    %807 = vperm.xlu0 %806, %v805
    %v808 = vpop.permute.xlu0 %807
    %vm809 = vcmp.eq.s32.totalorder %v808, 1
    %v810 = vsel %vm809, %v802, 0.0
    %811 = vst [vmem:[#allocation2] sm:$0xff] %v810
    %v812 = vsel %vm809, %v802, %v628
    %s813 = scalar_lea.vmem [#allocation3], 12
    %v814 = vld [vmem:[%s813] sm:$0xff]
    %v815 = vld [vmem:[%s813 + $0x8] sm:$0xf]
    %v816 = vunpack.c.l.bf16 %v814
    %v817 = vunpack.c.h.bf16 %v814
    %v818 = vunpack.c.l.bf16 %v815
    %819 = vmatprep.subr.mxu0 %v625
    %820 = vmatpush1.msra.mxu0 %v624
    %821 = vmatprep.subr.mxu0 %v622
    %822 = vmatpush1.msra.mxu0 %v621
    %823 = vmatprep.subr.mxu0 %v619
    %824 = vmatpush1.msra.mxu0 %v618
    %825 = vmatprep.subr.mxu0 %v616
    %826 = vmatpush1.msra.mxu0 %v615
    %827 = vmatprep.subr.mxu0 %v613
    %828 = vmatpush1.msra.mxu0 %v612
    %829 = vmatprep.subr.mxu0 %v610
    %830 = vmatpush1.msra.mxu0 %v609
    %831 = vmatprep.subr.mxu0 %v607
    %832 = vmatpush1.msra.mxu0 %v606
    %833 = vmatprep.subr.mxu0 %v604
    %834 = vmatpush1.msra.mxu0 %v603
    %835 = vmatprep.subr.mxu0 %v601
    %836 = vmatpush1.msra.mxu0 %v600
    %837 = vmatprep.subr.mxu0 %v598
    %838 = vmatpush1.msra.mxu0 %v597
    %839 = vmatprep.subr.mxu0 %v595
    %840 = vmatpush1.msra.mxu0 %v594
    %841 = vmatprep.subr.mxu0 %v592
    %842 = vmatpush1.msra.mxu0 %v591
    %843 = vmatprep.subr.mxu0 %v589
    %844 = vmatpush1.msra.mxu0 %v588
    %845 = vmatprep.subr.mxu0 %v586
    %846 = vmatpush1.msra.mxu0 %v585
    %847 = vmatprep.subr.mxu0 %v583
    %848 = vmatpush1.msra.mxu0 %v582
    %849 = vmatprep.subr.mxu0 %v580
    %850 = vmatpush1.msra.mxu0 %v579
    %851 = vmatprep.subr.mxu0 0.0
    %852 = vmatpush2.msra.mxu0 0.0
    %853 = vmatprep.subr.mxu0 0.0
    %854 = vmatpush2.msra.mxu0 0.0
    %855 = vmatprep.subr.mxu0 0.0
    %856 = vmatpush2.msra.mxu0 0.0
    %857 = vmatprep.subr.mxu0 0.0
    %858 = vmatpush2.msra.mxu0 0.0
    %859 = vmatprep.subr.mxu0 0.0
    %860 = vmatpush2.msra.mxu0 0.0
    %861 = vmatprep.subr.mxu0 0.0
    %862 = vmatpush2.msra.mxu0 0.0
    %863 = vmatprep.subr.mxu0 0.0
    %864 = vmatpush2.msra.mxu0 0.0
    %865 = vmatprep.subr.mxu0 0.0
    %866 = vmatpush2.msra.mxu0 0.0
    %867 = vmatprep.subr.mxu0 0.0
    %868 = vmatpush2.msra.mxu0 0.0
    %869 = vmatprep.subr.mxu0 0.0
    %870 = vmatpush2.msra.mxu0 0.0
    %871 = vmatprep.subr.mxu0 0.0
    %872 = vmatpush2.msra.mxu0 0.0
    %873 = vmatprep.subr.mxu0 0.0
    %874 = vmatpush2.msra.mxu0 0.0
    %875 = vmatprep.subr.mxu0 0.0
    %876 = vmatpush2.msra.mxu0 0.0
    %877 = vmatprep.subr.mxu0 0.0
    %878 = vmatpush2.msra.mxu0 0.0
    %879 = vmatprep.subr.mxu0 0.0
    %880 = vmatpush2.msra.mxu0 0.0
    %881 = vmatprep.subr.mxu0 0.0
    %882 = vmatpush2.msra.mxu0 0.0
    %883 = vmatprep.mubr.f32.mxu0 0.0
    %884 = vmatmul.mubr.f32.gmra.mxu0 %v812
    %v885 = vpop.f32.mrf.mxu0
    %v886 = vadd.f32 0.0, %v885
    %v887 = vpop.f32.mrf.mxu0
    %v888 = vadd.f32 0.0, %v887
    %889 = vdwg.mxu0
    %890 = vmatprep.subr.mxu0 0.0
    %891 = vmatpush1.msra.mxu0 %v626
    %892 = vmatprep.subr.mxu0 0.0
    %893 = vmatpush1.msra.mxu0 %v623
    %894 = vmatprep.subr.mxu0 0.0
    %895 = vmatpush1.msra.mxu0 %v620
    %896 = vmatprep.subr.mxu0 0.0
    %897 = vmatpush1.msra.mxu0 %v617
    %898 = vmatprep.subr.mxu0 0.0
    %899 = vmatpush1.msra.mxu0 %v614
    %900 = vmatprep.subr.mxu0 0.0
    %901 = vmatpush1.msra.mxu0 %v611
    %902 = vmatprep.subr.mxu0 0.0
    %903 = vmatpush1.msra.mxu0 %v608
    %904 = vmatprep.subr.mxu0 0.0
    %905 = vmatpush1.msra.mxu0 %v605
    %906 = vmatprep.subr.mxu0 0.0
    %907 = vmatpush1.msra.mxu0 %v602
    %908 = vmatprep.subr.mxu0 0.0
    %909 = vmatpush1.msra.mxu0 %v599
    %910 = vmatprep.subr.mxu0 0.0
    %911 = vmatpush1.msra.mxu0 %v596
    %912 = vmatprep.subr.mxu0 0.0
    %913 = vmatpush1.msra.mxu0 %v593
    %914 = vmatprep.subr.mxu0 0.0
    %915 = vmatpush1.msra.mxu0 %v590
    %916 = vmatprep.subr.mxu0 0.0
    %917 = vmatpush1.msra.mxu0 %v587
    %918 = vmatprep.subr.mxu0 0.0
    %919 = vmatpush1.msra.mxu0 %v584
    %920 = vmatprep.subr.mxu0 0.0
    %921 = vmatpush1.msra.mxu0 %v581
    %922 = vmatprep.subr.mxu0 0.0
    %923 = vmatpush2.msra.mxu0 0.0
    %924 = vmatprep.subr.mxu0 0.0
    %925 = vmatpush2.msra.mxu0 0.0
    %926 = vmatprep.subr.mxu0 0.0
    %927 = vmatpush2.msra.mxu0 0.0
    %928 = vmatprep.subr.mxu0 0.0
    %929 = vmatpush2.msra.mxu0 0.0
    %930 = vmatprep.subr.mxu0 0.0
    %931 = vmatpush2.msra.mxu0 0.0
    %932 = vmatprep.subr.mxu0 0.0
    %933 = vmatpush2.msra.mxu0 0.0
    %934 = vmatprep.subr.mxu0 0.0
    %935 = vmatpush2.msra.mxu0 0.0
    %936 = vmatprep.subr.mxu0 0.0
    %937 = vmatpush2.msra.mxu0 0.0
    %938 = vmatprep.subr.mxu0 0.0
    %939 = vmatpush2.msra.mxu0 0.0
    %940 = vmatprep.subr.mxu0 0.0
    %941 = vmatpush2.msra.mxu0 0.0
    %942 = vmatprep.subr.mxu0 0.0
    %943 = vmatpush2.msra.mxu0 0.0
    %944 = vmatprep.subr.mxu0 0.0
    %945 = vmatpush2.msra.mxu0 0.0
    %946 = vmatprep.subr.mxu0 0.0
    %947 = vmatpush2.msra.mxu0 0.0
    %948 = vmatprep.subr.mxu0 0.0
    %949 = vmatpush2.msra.mxu0 0.0
    %950 = vmatprep.subr.mxu0 0.0
    %951 = vmatpush2.msra.mxu0 0.0
    %952 = vmatprep.subr.mxu0 0.0
    %953 = vmatpush2.msra.mxu0 0.0
    %954 = vmatprep.mubr.f32.mxu0 0.0
    %955 = vmatmul.mubr.f32.gmra.mxu0 %v812
    %v956 = vpop.f32.mrf.mxu0
    %v957 = vadd.f32 0.0, %v956
    %v958 = vpop.f32.mrf.mxu0
    %959 = vdwg.mxu0
    %v960 = vadd.f32 %v816, %v886
    %v961 = vxor.u32 %v960, 2147483648
    %v962 = vmul.f32 %v961, 1.442695
    %v963 = vpow.pop %v962
    %v964 = vadd.f32 %v963, 1.0
    %v965 = vrcp.pop %v964
    %v966 = vmul.f32 1.0, %v965
    %v967 = vadd.f32 %v817, %v888
    %v968 = vxor.u32 %v967, 2147483648
    %v969 = vmul.f32 %v968, 1.442695
    %v970 = vpow.pop %v969
    %v971 = vadd.f32 %v970, 1.0
    %v972 = vrcp.pop %v971
    %v973 = vmul.f32 1.0, %v972
    %v974 = vadd.f32 %v957, %v793
    %v975 = vmul.f32 %v966, %v974
    %v976 = vadd.f32 %v818, %v975
    %v977 = vtanh.pop %v976
    %v978 = vsub.f32 1.0, %v973
    %v979 = vmul.f32 %v978, %v977
    %v980 = vmul.f32 %v973, %v812
    %v981 = vadd.f32 %v979, %v980
    %s982 = sadd.s32 %s111, 1
    %v983 = vstv %s982
    %vm984 = vcmp.lt.s32.totalorder %v983, %v110
    %v985 = vsel %vm984, 1, 0
    %986 = vset.pattern.permute.xlu0 0
    %987 = vperm.xlu0 %986, %v985
    %v988 = vpop.permute.xlu0 %987
    %vm989 = vcmp.eq.s32.totalorder %v988, 1
    %v990 = vsel %vm989, %v981, 0.0
    %s991 = scalar_lea.vmem [#allocation2], 8
    %992 = vst [vmem:[%s991] sm:$0xff] %v990
    %v993 = vsel %vm989, %v981, %v812
    %s994 = scalar_lea.vmem [#allocation3], 24
    %v995 = vld [vmem:[%s994] sm:$0xff]
    %v996 = vld [vmem:[%s994 + $0x8] sm:$0xf]
    %v997 = vunpack.c.l.bf16 %v995
    %v998 = vunpack.c.h.bf16 %v995
    %v999 = vunpack.c.l.bf16 %v996
    %1000 = vmatprep.subr.mxu0 %v625
    %1001 = vmatpush1.msra.mxu0 %v624
    %1002 = vmatprep.subr.mxu0 %v622
    %1003 = vmatpush1.msra.mxu0 %v621
    %1004 = vmatprep.subr.mxu0 %v619
    %1005 = vmatpush1.msra.mxu0 %v618
    %1006 = vmatprep.subr.mxu0 %v616
    %1007 = vmatpush1.msra.mxu0 %v615
    %1008 = vmatprep.subr.mxu0 %v613
    %1009 = vmatpush1.msra.mxu0 %v612
    %1010 = vmatprep.subr.mxu0 %v610
    %1011 = vmatpush1.msra.mxu0 %v609
    %1012 = vmatprep.subr.mxu0 %v607
    %1013 = vmatpush1.msra.mxu0 %v606
    %1014 = vmatprep.subr.mxu0 %v604
    %1015 = vmatpush1.msra.mxu0 %v603
    %1016 = vmatprep.subr.mxu0 %v601
    %1017 = vmatpush1.msra.mxu0 %v600
    %1018 = vmatprep.subr.mxu0 %v598
    %1019 = vmatpush1.msra.mxu0 %v597
    %1020 = vmatprep.subr.mxu0 %v595
    %1021 = vmatpush1.msra.mxu0 %v594
    %1022 = vmatprep.subr.mxu0 %v592
    %1023 = vmatpush1.msra.mxu0 %v591
    %1024 = vmatprep.subr.mxu0 %v589
    %1025 = vmatpush1.msra.mxu0 %v588
    %1026 = vmatprep.subr.mxu0 %v586
    %1027 = vmatpush1.msra.mxu0 %v585
    %1028 = vmatprep.subr.mxu0 %v583
    %1029 = vmatpush1.msra.mxu0 %v582
    %1030 = vmatprep.subr.mxu0 %v580
    %1031 = vmatpush1.msra.mxu0 %v579
    %1032 = vmatprep.subr.mxu0 0.0
    %1033 = vmatpush2.msra.mxu0 0.0
    %1034 = vmatprep.subr.mxu0 0.0
    %1035 = vmatpush2.msra.mxu0 0.0
    %1036 = vmatprep.subr.mxu0 0.0
    %1037 = vmatpush2.msra.mxu0 0.0
    %1038 = vmatprep.subr.mxu0 0.0
    %1039 = vmatpush2.msra.mxu0 0.0
    %1040 = vmatprep.subr.mxu0 0.0
    %1041 = vmatpush2.msra.mxu0 0.0
    %1042 = vmatprep.subr.mxu0 0.0
    %1043 = vmatpush2.msra.mxu0 0.0
    %1044 = vmatprep.subr.mxu0 0.0
    %1045 = vmatpush2.msra.mxu0 0.0
    %1046 = vmatprep.subr.mxu0 0.0
    %1047 = vmatpush2.msra.mxu0 0.0
    %1048 = vmatprep.subr.mxu0 0.0
    %1049 = vmatpush2.msra.mxu0 0.0
    %1050 = vmatprep.subr.mxu0 0.0
    %1051 = vmatpush2.msra.mxu0 0.0
    %1052 = vmatprep.subr.mxu0 0.0
    %1053 = vmatpush2.msra.mxu0 0.0
    %1054 = vmatprep.subr.mxu0 0.0
    %1055 = vmatpush2.msra.mxu0 0.0
    %1056 = vmatprep.subr.mxu0 0.0
    %1057 = vmatpush2.msra.mxu0 0.0
    %1058 = vmatprep.subr.mxu0 0.0
    %1059 = vmatpush2.msra.mxu0 0.0
    %1060 = vmatprep.subr.mxu0 0.0
    %1061 = vmatpush2.msra.mxu0 0.0
    %1062 = vmatprep.subr.mxu0 0.0
    %1063 = vmatpush2.msra.mxu0 0.0
    %1064 = vmatprep.mubr.f32.mxu0 0.0
    %1065 = vmatmul.mubr.f32.gmra.mxu0 %v993
    %v1066 = vpop.f32.mrf.mxu0
    %v1067 = vadd.f32 0.0, %v1066
    %v1068 = vpop.f32.mrf.mxu0
    %v1069 = vadd.f32 0.0, %v1068
    %1070 = vdwg.mxu0
    %1071 = vmatprep.subr.mxu0 0.0
    %1072 = vmatpush1.msra.mxu0 %v626
    %1073 = vmatprep.subr.mxu0 0.0
    %1074 = vmatpush1.msra.mxu0 %v623
    %1075 = vmatprep.subr.mxu0 0.0
    %1076 = vmatpush1.msra.mxu0 %v620
    %1077 = vmatprep.subr.mxu0 0.0
    %1078 = vmatpush1.msra.mxu0 %v617
    %1079 = vmatprep.subr.mxu0 0.0
    %1080 = vmatpush1.msra.mxu0 %v614
    %1081 = vmatprep.subr.mxu0 0.0
    %1082 = vmatpush1.msra.mxu0 %v611
    %1083 = vmatprep.subr.mxu0 0.0
    %1084 = vmatpush1.msra.mxu0 %v608
    %1085 = vmatprep.subr.mxu0 0.0
    %1086 = vmatpush1.msra.mxu0 %v605
    %1087 = vmatprep.subr.mxu0 0.0
    %1088 = vmatpush1.msra.mxu0 %v602
    %1089 = vmatprep.subr.mxu0 0.0
    %1090 = vmatpush1.msra.mxu0 %v599
    %1091 = vmatprep.subr.mxu0 0.0
    %1092 = vmatpush1.msra.mxu0 %v596
    %1093 = vmatprep.subr.mxu0 0.0
    %1094 = vmatpush1.msra.mxu0 %v593
    %1095 = vmatprep.subr.mxu0 0.0
    %1096 = vmatpush1.msra.mxu0 %v590
    %1097 = vmatprep.subr.mxu0 0.0
    %1098 = vmatpush1.msra.mxu0 %v587
    %1099 = vmatprep.subr.mxu0 0.0
    %1100 = vmatpush1.msra.mxu0 %v584
    %1101 = vmatprep.subr.mxu0 0.0
    %1102 = vmatpush1.msra.mxu0 %v581
    %1103 = vmatprep.subr.mxu0 0.0
    %1104 = vmatpush2.msra.mxu0 0.0
    %1105 = vmatprep.subr.mxu0 0.0
    %1106 = vmatpush2.msra.mxu0 0.0
    %1107 = vmatprep.subr.mxu0 0.0
    %1108 = vmatpush2.msra.mxu0 0.0
    %1109 = vmatprep.subr.mxu0 0.0
    %1110 = vmatpush2.msra.mxu0 0.0
    %1111 = vmatprep.subr.mxu0 0.0
    %1112 = vmatpush2.msra.mxu0 0.0
    %1113 = vmatprep.subr.mxu0 0.0
    %1114 = vmatpush2.msra.mxu0 0.0
    %1115 = vmatprep.subr.mxu0 0.0
    %1116 = vmatpush2.msra.mxu0 0.0
    %1117 = vmatprep.subr.mxu0 0.0
    %1118 = vmatpush2.msra.mxu0 0.0
    %1119 = vmatprep.subr.mxu0 0.0
    %1120 = vmatpush2.msra.mxu0 0.0
    %1121 = vmatprep.subr.mxu0 0.0
    %1122 = vmatpush2.msra.mxu0 0.0
    %1123 = vmatprep.subr.mxu0 0.0
    %1124 = vmatpush2.msra.mxu0 0.0
    %1125 = vmatprep.subr.mxu0 0.0
    %1126 = vmatpush2.msra.mxu0 0.0
    %1127 = vmatprep.subr.mxu0 0.0
    %1128 = vmatpush2.msra.mxu0 0.0
    %1129 = vmatprep.subr.mxu0 0.0
    %1130 = vmatpush2.msra.mxu0 0.0
    %1131 = vmatprep.subr.mxu0 0.0
    %1132 = vmatpush2.msra.mxu0 0.0
    %1133 = vmatprep.subr.mxu0 0.0
    %1134 = vmatpush2.msra.mxu0 0.0
    %1135 = vmatprep.mubr.f32.mxu0 0.0
    %1136 = vmatmul.mubr.f32.gmra.mxu0 %v993
    %v1137 = vpop.f32.mrf.mxu0
    %v1138 = vadd.f32 0.0, %v1137
    %v1139 = vpop.f32.mrf.mxu0
    %1140 = vdwg.mxu0
    %v1141 = vadd.f32 %v997, %v1067
    %v1142 = vxor.u32 %v1141, 2147483648
    %v1143 = vmul.f32 %v1142, 1.442695
    %v1144 = vpow.pop %v1143
    %v1145 = vadd.f32 %v1144, 1.0
    %v1146 = vrcp.pop %v1145
    %v1147 = vmul.f32 1.0, %v1146
    %v1148 = vadd.f32 %v998, %v1069
    %v1149 = vxor.u32 %v1148, 2147483648
    %v1150 = vmul.f32 %v1149, 1.442695
    %v1151 = vpow.pop %v1150
    %v1152 = vadd.f32 %v1151, 1.0
    %v1153 = vrcp.pop %v1152
    %v1154 = vmul.f32 1.0, %v1153
    %v1155 = vadd.f32 %v1138, %v793
    %v1156 = vmul.f32 %v1147, %v1155
    %v1157 = vadd.f32 %v999, %v1156
    %v1158 = vtanh.pop %v1157
    %v1159 = vsub.f32 1.0, %v1154
    %v1160 = vmul.f32 %v1159, %v1158
    %v1161 = vmul.f32 %v1154, %v993
    %v1162 = vadd.f32 %v1160, %v1161
    %s1163 = sadd.s32 %s111, 2
    %v1164 = vstv %s1163
    %vm1165 = vcmp.lt.s32.totalorder %v1164, %v110
    %v1166 = vsel %vm1165, 1, 0
    %1167 = vset.pattern.permute.xlu0 0
    %1168 = vperm.xlu0 %1167, %v1166
    %v1169 = vpop.permute.xlu0 %1168
    %vm1170 = vcmp.eq.s32.totalorder %v1169, 1
    %v1171 = vsel %vm1170, %v1162, 0.0
    %s1172 = scalar_lea.vmem [#allocation2], 16
    %1173 = vst [vmem:[%s1172] sm:$0xff] %v1171
    %v1174 = vsel %vm1170, %v1162, %v993
    %s1175 = scalar_lea.vmem [#allocation3], 36
    %v1176 = vld [vmem:[%s1175] sm:$0xff]
    %v1177 = vld [vmem:[%s1175 + $0x8] sm:$0xf]
    %v1178 = vunpack.c.l.bf16 %v1176
    %v1179 = vunpack.c.h.bf16 %v1176
    %v1180 = vunpack.c.l.bf16 %v1177
    %1181 = vmatprep.subr.mxu0 %v625
    %1182 = vmatpush1.msra.mxu0 %v624
    %1183 = vmatprep.subr.mxu0 %v622
    %1184 = vmatpush1.msra.mxu0 %v621
    %1185 = vmatprep.subr.mxu0 %v619
    %1186 = vmatpush1.msra.mxu0 %v618
    %1187 = vmatprep.subr.mxu0 %v616
    %1188 = vmatpush1.msra.mxu0 %v615
    %1189 = vmatprep.subr.mxu0 %v613
    %1190 = vmatpush1.msra.mxu0 %v612
    %1191 = vmatprep.subr.mxu0 %v610
    %1192 = vmatpush1.msra.mxu0 %v609
    %1193 = vmatprep.subr.mxu0 %v607
    %1194 = vmatpush1.msra.mxu0 %v606
    %1195 = vmatprep.subr.mxu0 %v604
    %1196 = vmatpush1.msra.mxu0 %v603
    %1197 = vmatprep.subr.mxu0 %v601
    %1198 = vmatpush1.msra.mxu0 %v600
    %1199 = vmatprep.subr.mxu0 %v598
    %1200 = vmatpush1.msra.mxu0 %v597
    %1201 = vmatprep.subr.mxu0 %v595
    %1202 = vmatpush1.msra.mxu0 %v594
    %1203 = vmatprep.subr.mxu0 %v592
    %1204 = vmatpush1.msra.mxu0 %v591
    %1205 = vmatprep.subr.mxu0 %v589
    %1206 = vmatpush1.msra.mxu0 %v588
    %1207 = vmatprep.subr.mxu0 %v586
    %1208 = vmatpush1.msra.mxu0 %v585
    %1209 = vmatprep.subr.mxu0 %v583
    %1210 = vmatpush1.msra.mxu0 %v582
    %1211 = vmatprep.subr.mxu0 %v580
    %1212 = vmatpush1.msra.mxu0 %v579
    %1213 = vmatprep.subr.mxu0 0.0
    %1214 = vmatpush2.msra.mxu0 0.0
    %1215 = vmatprep.subr.mxu0 0.0
    %1216 = vmatpush2.msra.mxu0 0.0
    %1217 = vmatprep.subr.mxu0 0.0
    %1218 = vmatpush2.msra.mxu0 0.0
    %1219 = vmatprep.subr.mxu0 0.0
    %1220 = vmatpush2.msra.mxu0 0.0
    %1221 = vmatprep.subr.mxu0 0.0
    %1222 = vmatpush2.msra.mxu0 0.0
    %1223 = vmatprep.subr.mxu0 0.0
    %1224 = vmatpush2.msra.mxu0 0.0
    %1225 = vmatprep.subr.mxu0 0.0
    %1226 = vmatpush2.msra.mxu0 0.0
    %1227 = vmatprep.subr.mxu0 0.0
    %1228 = vmatpush2.msra.mxu0 0.0
    %1229 = vmatprep.subr.mxu0 0.0
    %1230 = vmatpush2.msra.mxu0 0.0
    %1231 = vmatprep.subr.mxu0 0.0
    %1232 = vmatpush2.msra.mxu0 0.0
    %1233 = vmatprep.subr.mxu0 0.0
    %1234 = vmatpush2.msra.mxu0 0.0
    %1235 = vmatprep.subr.mxu0 0.0
    %1236 = vmatpush2.msra.mxu0 0.0
    %1237 = vmatprep.subr.mxu0 0.0
    %1238 = vmatpush2.msra.mxu0 0.0
    %1239 = vmatprep.subr.mxu0 0.0
    %1240 = vmatpush2.msra.mxu0 0.0
    %1241 = vmatprep.subr.mxu0 0.0
    %1242 = vmatpush2.msra.mxu0 0.0
    %1243 = vmatprep.subr.mxu0 0.0
    %1244 = vmatpush2.msra.mxu0 0.0
    %1245 = vmatprep.mubr.f32.mxu0 0.0
    %1246 = vmatmul.mubr.f32.gmra.mxu0 %v1174
    %v1247 = vpop.f32.mrf.mxu0
    %v1248 = vadd.f32 0.0, %v1247
    %v1249 = vpop.f32.mrf.mxu0
    %v1250 = vadd.f32 0.0, %v1249
    %1251 = vdwg.mxu0
    %1252 = vmatprep.subr.mxu0 0.0
    %1253 = vmatpush1.msra.mxu0 %v626
    %1254 = vmatprep.subr.mxu0 0.0
    %1255 = vmatpush1.msra.mxu0 %v623
    %1256 = vmatprep.subr.mxu0 0.0
    %1257 = vmatpush1.msra.mxu0 %v620
    %1258 = vmatprep.subr.mxu0 0.0
    %1259 = vmatpush1.msra.mxu0 %v617
    %1260 = vmatprep.subr.mxu0 0.0
    %1261 = vmatpush1.msra.mxu0 %v614
    %1262 = vmatprep.subr.mxu0 0.0
    %1263 = vmatpush1.msra.mxu0 %v611
    %1264 = vmatprep.subr.mxu0 0.0
    %1265 = vmatpush1.msra.mxu0 %v608
    %1266 = vmatprep.subr.mxu0 0.0
    %1267 = vmatpush1.msra.mxu0 %v605
    %1268 = vmatprep.subr.mxu0 0.0
    %1269 = vmatpush1.msra.mxu0 %v602
    %1270 = vmatprep.subr.mxu0 0.0
    %1271 = vmatpush1.msra.mxu0 %v599
    %1272 = vmatprep.subr.mxu0 0.0
    %1273 = vmatpush1.msra.mxu0 %v596
    %1274 = vmatprep.subr.mxu0 0.0
    %1275 = vmatpush1.msra.mxu0 %v593
    %1276 = vmatprep.subr.mxu0 0.0
    %1277 = vmatpush1.msra.mxu0 %v590
    %1278 = vmatprep.subr.mxu0 0.0
    %1279 = vmatpush1.msra.mxu0 %v587
    %1280 = vmatprep.subr.mxu0 0.0
    %1281 = vmatpush1.msra.mxu0 %v584
    %1282 = vmatprep.subr.mxu0 0.0
    %1283 = vmatpush1.msra.mxu0 %v581
    %1284 = vmatprep.subr.mxu0 0.0
    %1285 = vmatpush2.msra.mxu0 0.0
    %1286 = vmatprep.subr.mxu0 0.0
    %1287 = vmatpush2.msra.mxu0 0.0
    %1288 = vmatprep.subr.mxu0 0.0
    %1289 = vmatpush2.msra.mxu0 0.0
    %1290 = vmatprep.subr.mxu0 0.0
    %1291 = vmatpush2.msra.mxu0 0.0
    %1292 = vmatprep.subr.mxu0 0.0
    %1293 = vmatpush2.msra.mxu0 0.0
    %1294 = vmatprep.subr.mxu0 0.0
    %1295 = vmatpush2.msra.mxu0 0.0
    %1296 = vmatprep.subr.mxu0 0.0
    %1297 = vmatpush2.msra.mxu0 0.0
    %1298 = vmatprep.subr.mxu0 0.0
    %1299 = vmatpush2.msra.mxu0 0.0
    %1300 = vmatprep.subr.mxu0 0.0
    %1301 = vmatpush2.msra.mxu0 0.0
    %1302 = vmatprep.subr.mxu0 0.0
    %1303 = vmatpush2.msra.mxu0 0.0
    %1304 = vmatprep.subr.mxu0 0.0
    %1305 = vmatpush2.msra.mxu0 0.0
    %1306 = vmatprep.subr.mxu0 0.0
    %1307 = vmatpush2.msra.mxu0 0.0
    %1308 = vmatprep.subr.mxu0 0.0
    %1309 = vmatpush2.msra.mxu0 0.0
    %1310 = vmatprep.subr.mxu0 0.0
    %1311 = vmatpush2.msra.mxu0 0.0
    %1312 = vmatprep.subr.mxu0 0.0
    %1313 = vmatpush2.msra.mxu0 0.0
    %1314 = vmatprep.subr.mxu0 0.0
    %1315 = vmatpush2.msra.mxu0 0.0
    %1316 = vmatprep.mubr.f32.mxu0 0.0
    %1317 = vmatmul.mubr.f32.gmra.mxu0 %v1174
    %v1318 = vpop.f32.mrf.mxu0
    %v1319 = vadd.f32 0.0, %v1318
    %v1320 = vpop.f32.mrf.mxu0
    %1321 = vdwg.mxu0
    %v1322 = vadd.f32 %v1178, %v1248
    %v1323 = vxor.u32 %v1322, 2147483648
    %v1324 = vmul.f32 %v1323, 1.442695
    %v1325 = vpow.pop %v1324
    %v1326 = vadd.f32 %v1325, 1.0
    %v1327 = vrcp.pop %v1326
    %v1328 = vmul.f32 1.0, %v1327
    %v1329 = vadd.f32 %v1179, %v1250
    %v1330 = vxor.u32 %v1329, 2147483648
    %v1331 = vmul.f32 %v1330, 1.442695
    %v1332 = vpow.pop %v1331
    %v1333 = vadd.f32 %v1332, 1.0
    %v1334 = vrcp.pop %v1333
    %v1335 = vmul.f32 1.0, %v1334
    %v1336 = vadd.f32 %v1319, %v793
    %v1337 = vmul.f32 %v1328, %v1336
    %v1338 = vadd.f32 %v1180, %v1337
    %v1339 = vtanh.pop %v1338
    %v1340 = vsub.f32 1.0, %v1335
    %v1341 = vmul.f32 %v1340, %v1339
    %v1342 = vmul.f32 %v1335, %v1174
    %v1343 = vadd.f32 %v1341, %v1342
    %s1344 = sadd.s32 %s111, 3
    %v1345 = vstv %s1344
    %vm1346 = vcmp.lt.s32.totalorder %v1345, %v110
    %v1347 = vsel %vm1346, 1, 0
    %1348 = vset.pattern.permute.xlu0 0
    %1349 = vperm.xlu0 %1348, %v1347
    %v1350 = vpop.permute.xlu0 %1349
    %vm1351 = vcmp.eq.s32.totalorder %v1350, 1
    %v1352 = vsel %vm1351, %v1343, 0.0
    %s1353 = scalar_lea.vmem [#allocation2], 24
    %1354 = vst [vmem:[%s1353] sm:$0xff] %v1352
    %v1355 = vsel %vm1351, %v1343, %v1174
    %s1356 = scalar_lea.vmem [#allocation3], 48
    %v1357 = vld [vmem:[%s1356] sm:$0xff]
    %v1358 = vld [vmem:[%s1356 + $0x8] sm:$0xf]
    %v1359 = vunpack.c.l.bf16 %v1357
    %v1360 = vunpack.c.h.bf16 %v1357
    %v1361 = vunpack.c.l.bf16 %v1358
    %1362 = vmatprep.subr.mxu0 %v625
    %1363 = vmatpush1.msra.mxu0 %v624
    %1364 = vmatprep.subr.mxu0 %v622
    %1365 = vmatpush1.msra.mxu0 %v621
    %1366 = vmatprep.subr.mxu0 %v619
    %1367 = vmatpush1.msra.mxu0 %v618
    %1368 = vmatprep.subr.mxu0 %v616
    %1369 = vmatpush1.msra.mxu0 %v615
    %1370 = vmatprep.subr.mxu0 %v613
    %1371 = vmatpush1.msra.mxu0 %v612
    %1372 = vmatprep.subr.mxu0 %v610
    %1373 = vmatpush1.msra.mxu0 %v609
    %1374 = vmatprep.subr.mxu0 %v607
    %1375 = vmatpush1.msra.mxu0 %v606
    %1376 = vmatprep.subr.mxu0 %v604
    %1377 = vmatpush1.msra.mxu0 %v603
    %1378 = vmatprep.subr.mxu0 %v601
    %1379 = vmatpush1.msra.mxu0 %v600
    %1380 = vmatprep.subr.mxu0 %v598
    %1381 = vmatpush1.msra.mxu0 %v597
    %1382 = vmatprep.subr.mxu0 %v595
    %1383 = vmatpush1.msra.mxu0 %v594
    %1384 = vmatprep.subr.mxu0 %v592
    %1385 = vmatpush1.msra.mxu0 %v591
    %1386 = vmatprep.subr.mxu0 %v589
    %1387 = vmatpush1.msra.mxu0 %v588
    %1388 = vmatprep.subr.mxu0 %v586
    %1389 = vmatpush1.msra.mxu0 %v585
    %1390 = vmatprep.subr.mxu0 %v583
    %1391 = vmatpush1.msra.mxu0 %v582
    %1392 = vmatprep.subr.mxu0 %v580
    %1393 = vmatpush1.msra.mxu0 %v579
    %1394 = vmatprep.subr.mxu0 0.0
    %1395 = vmatpush2.msra.mxu0 0.0
    %1396 = vmatprep.subr.mxu0 0.0
    %1397 = vmatpush2.msra.mxu0 0.0
    %1398 = vmatprep.subr.mxu0 0.0
    %1399 = vmatpush2.msra.mxu0 0.0
    %1400 = vmatprep.subr.mxu0 0.0
    %1401 = vmatpush2.msra.mxu0 0.0
    %1402 = vmatprep.subr.mxu0 0.0
    %1403 = vmatpush2.msra.mxu0 0.0
    %1404 = vmatprep.subr.mxu0 0.0
    %1405 = vmatpush2.msra.mxu0 0.0
    %1406 = vmatprep.subr.mxu0 0.0
    %1407 = vmatpush2.msra.mxu0 0.0
    %1408 = vmatprep.subr.mxu0 0.0
    %1409 = vmatpush2.msra.mxu0 0.0
    %1410 = vmatprep.subr.mxu0 0.0
    %1411 = vmatpush2.msra.mxu0 0.0
    %1412 = vmatprep.subr.mxu0 0.0
    %1413 = vmatpush2.msra.mxu0 0.0
    %1414 = vmatprep.subr.mxu0 0.0
    %1415 = vmatpush2.msra.mxu0 0.0
    %1416 = vmatprep.subr.mxu0 0.0
    %1417 = vmatpush2.msra.mxu0 0.0
    %1418 = vmatprep.subr.mxu0 0.0
    %1419 = vmatpush2.msra.mxu0 0.0
    %1420 = vmatprep.subr.mxu0 0.0
    %1421 = vmatpush2.msra.mxu0 0.0
    %1422 = vmatprep.subr.mxu0 0.0
    %1423 = vmatpush2.msra.mxu0 0.0
    %1424 = vmatprep.subr.mxu0 0.0
    %1425 = vmatpush2.msra.mxu0 0.0
    %1426 = vmatprep.mubr.f32.mxu0 0.0
    %1427 = vmatmul.mubr.f32.gmra.mxu0 %v1355
    %v1428 = vpop.f32.mrf.mxu0
    %v1429 = vadd.f32 0.0, %v1428
    %v1430 = vpop.f32.mrf.mxu0
    %v1431 = vadd.f32 0.0, %v1430
    %1432 = vdwg.mxu0
    %1433 = vmatprep.subr.mxu0 0.0
    %1434 = vmatpush1.msra.mxu0 %v626
    %1435 = vmatprep.subr.mxu0 0.0
    %1436 = vmatpush1.msra.mxu0 %v623
    %1437 = vmatprep.subr.mxu0 0.0
    %1438 = vmatpush1.msra.mxu0 %v620
    %1439 = vmatprep.subr.mxu0 0.0
    %1440 = vmatpush1.msra.mxu0 %v617
    %1441 = vmatprep.subr.mxu0 0.0
    %1442 = vmatpush1.msra.mxu0 %v614
    %1443 = vmatprep.subr.mxu0 0.0
    %1444 = vmatpush1.msra.mxu0 %v611
    %1445 = vmatprep.subr.mxu0 0.0
    %1446 = vmatpush1.msra.mxu0 %v608
    %1447 = vmatprep.subr.mxu0 0.0
    %1448 = vmatpush1.msra.mxu0 %v605
    %1449 = vmatprep.subr.mxu0 0.0
    %1450 = vmatpush1.msra.mxu0 %v602
    %1451 = vmatprep.subr.mxu0 0.0
    %1452 = vmatpush1.msra.mxu0 %v599
    %1453 = vmatprep.subr.mxu0 0.0
    %1454 = vmatpush1.msra.mxu0 %v596
    %1455 = vmatprep.subr.mxu0 0.0
    %1456 = vmatpush1.msra.mxu0 %v593
    %1457 = vmatprep.subr.mxu0 0.0
    %1458 = vmatpush1.msra.mxu0 %v590
    %1459 = vmatprep.subr.mxu0 0.0
    %1460 = vmatpush1.msra.mxu0 %v587
    %1461 = vmatprep.subr.mxu0 0.0
    %1462 = vmatpush1.msra.mxu0 %v584
    %1463 = vmatprep.subr.mxu0 0.0
    %1464 = vmatpush1.msra.mxu0 %v581
    %1465 = vmatprep.subr.mxu0 0.0
    %1466 = vmatpush2.msra.mxu0 0.0
    %1467 = vmatprep.subr.mxu0 0.0
    %1468 = vmatpush2.msra.mxu0 0.0
    %1469 = vmatprep.subr.mxu0 0.0
    %1470 = vmatpush2.msra.mxu0 0.0
    %1471 = vmatprep.subr.mxu0 0.0
    %1472 = vmatpush2.msra.mxu0 0.0
    %1473 = vmatprep.subr.mxu0 0.0
    %1474 = vmatpush2.msra.mxu0 0.0
    %1475 = vmatprep.subr.mxu0 0.0
    %1476 = vmatpush2.msra.mxu0 0.0
    %1477 = vmatprep.subr.mxu0 0.0
    %1478 = vmatpush2.msra.mxu0 0.0
    %1479 = vmatprep.subr.mxu0 0.0
    %1480 = vmatpush2.msra.mxu0 0.0
    %1481 = vmatprep.subr.mxu0 0.0
    %1482 = vmatpush2.msra.mxu0 0.0
    %1483 = vmatprep.subr.mxu0 0.0
    %1484 = vmatpush2.msra.mxu0 0.0
    %1485 = vmatprep.subr.mxu0 0.0
    %1486 = vmatpush2.msra.mxu0 0.0
    %1487 = vmatprep.subr.mxu0 0.0
    %1488 = vmatpush2.msra.mxu0 0.0
    %1489 = vmatprep.subr.mxu0 0.0
    %1490 = vmatpush2.msra.mxu0 0.0
    %1491 = vmatprep.subr.mxu0 0.0
    %1492 = vmatpush2.msra.mxu0 0.0
    %1493 = vmatprep.subr.mxu0 0.0
    %1494 = vmatpush2.msra.mxu0 0.0
    %1495 = vmatprep.subr.mxu0 0.0
    %1496 = vmatpush2.msra.mxu0 0.0
    %1497 = vmatprep.mubr.f32.mxu0 0.0
    %1498 = vmatmul.mubr.f32.gmra.mxu0 %v1355
    %v1499 = vpop.f32.mrf.mxu0
    %v1500 = vadd.f32 0.0, %v1499
    %v1501 = vpop.f32.mrf.mxu0
    %1502 = vdwg.mxu0
    %v1503 = vadd.f32 %v1359, %v1429
    %v1504 = vxor.u32 %v1503, 2147483648
    %v1505 = vmul.f32 %v1504, 1.442695
    %v1506 = vpow.pop %v1505
    %v1507 = vadd.f32 %v1506, 1.0
    %v1508 = vrcp.pop %v1507
    %v1509 = vmul.f32 1.0, %v1508
    %v1510 = vadd.f32 %v1360, %v1431
    %v1511 = vxor.u32 %v1510, 2147483648
    %v1512 = vmul.f32 %v1511, 1.442695
    %v1513 = vpow.pop %v1512
    %v1514 = vadd.f32 %v1513, 1.0
    %v1515 = vrcp.pop %v1514
    %v1516 = vmul.f32 1.0, %v1515
    %v1517 = vadd.f32 %v1500, %v793
    %v1518 = vmul.f32 %v1509, %v1517
    %v1519 = vadd.f32 %v1361, %v1518
    %v1520 = vtanh.pop %v1519
    %v1521 = vsub.f32 1.0, %v1516
    %v1522 = vmul.f32 %v1521, %v1520
    %v1523 = vmul.f32 %v1516, %v1355
    %v1524 = vadd.f32 %v1522, %v1523
    %s1525 = sadd.s32 %s111, 4
    %v1526 = vstv %s1525
    %vm1527 = vcmp.lt.s32.totalorder %v1526, %v110
    %v1528 = vsel %vm1527, 1, 0
    %1529 = vset.pattern.permute.xlu0 0
    %1530 = vperm.xlu0 %1529, %v1528
    %v1531 = vpop.permute.xlu0 %1530
    %vm1532 = vcmp.eq.s32.totalorder %v1531, 1
    %v1533 = vsel %vm1532, %v1524, 0.0
    %s1534 = scalar_lea.vmem [#allocation2], 32
    %1535 = vst [vmem:[%s1534] sm:$0xff] %v1533
    %v1536 = vsel %vm1532, %v1524, %v1355
    %s1537 = scalar_lea.vmem [#allocation3], 60
    %v1538 = vld [vmem:[%s1537] sm:$0xff]
    %v1539 = vld [vmem:[%s1537 + $0x8] sm:$0xf]
    %v1540 = vunpack.c.l.bf16 %v1538
    %v1541 = vunpack.c.h.bf16 %v1538
    %v1542 = vunpack.c.l.bf16 %v1539
    %1543 = vmatprep.subr.mxu0 %v625
    %1544 = vmatpush1.msra.mxu0 %v624
    %1545 = vmatprep.subr.mxu0 %v622
    %1546 = vmatpush1.msra.mxu0 %v621
    %1547 = vmatprep.subr.mxu0 %v619
    %1548 = vmatpush1.msra.mxu0 %v618
    %1549 = vmatprep.subr.mxu0 %v616
    %1550 = vmatpush1.msra.mxu0 %v615
    %1551 = vmatprep.subr.mxu0 %v613
    %1552 = vmatpush1.msra.mxu0 %v612
    %1553 = vmatprep.subr.mxu0 %v610
    %1554 = vmatpush1.msra.mxu0 %v609
    %1555 = vmatprep.subr.mxu0 %v607
    %1556 = vmatpush1.msra.mxu0 %v606
    %1557 = vmatprep.subr.mxu0 %v604
    %1558 = vmatpush1.msra.mxu0 %v603
    %1559 = vmatprep.subr.mxu0 %v601
    %1560 = vmatpush1.msra.mxu0 %v600
    %1561 = vmatprep.subr.mxu0 %v598
    %1562 = vmatpush1.msra.mxu0 %v597
    %1563 = vmatprep.subr.mxu0 %v595
    %1564 = vmatpush1.msra.mxu0 %v594
    %1565 = vmatprep.subr.mxu0 %v592
    %1566 = vmatpush1.msra.mxu0 %v591
    %1567 = vmatprep.subr.mxu0 %v589
    %1568 = vmatpush1.msra.mxu0 %v588
    %1569 = vmatprep.subr.mxu0 %v586
    %1570 = vmatpush1.msra.mxu0 %v585
    %1571 = vmatprep.subr.mxu0 %v583
    %1572 = vmatpush1.msra.mxu0 %v582
    %1573 = vmatprep.subr.mxu0 %v580
    %1574 = vmatpush1.msra.mxu0 %v579
    %1575 = vmatprep.subr.mxu0 0.0
    %1576 = vmatpush2.msra.mxu0 0.0
    %1577 = vmatprep.subr.mxu0 0.0
    %1578 = vmatpush2.msra.mxu0 0.0
    %1579 = vmatprep.subr.mxu0 0.0
    %1580 = vmatpush2.msra.mxu0 0.0
    %1581 = vmatprep.subr.mxu0 0.0
    %1582 = vmatpush2.msra.mxu0 0.0
    %1583 = vmatprep.subr.mxu0 0.0
    %1584 = vmatpush2.msra.mxu0 0.0
    %1585 = vmatprep.subr.mxu0 0.0
    %1586 = vmatpush2.msra.mxu0 0.0
    %1587 = vmatprep.subr.mxu0 0.0
    %1588 = vmatpush2.msra.mxu0 0.0
    %1589 = vmatprep.subr.mxu0 0.0
    %1590 = vmatpush2.msra.mxu0 0.0
    %1591 = vmatprep.subr.mxu0 0.0
    %1592 = vmatpush2.msra.mxu0 0.0
    %1593 = vmatprep.subr.mxu0 0.0
    %1594 = vmatpush2.msra.mxu0 0.0
    %1595 = vmatprep.subr.mxu0 0.0
    %1596 = vmatpush2.msra.mxu0 0.0
    %1597 = vmatprep.subr.mxu0 0.0
    %1598 = vmatpush2.msra.mxu0 0.0
    %1599 = vmatprep.subr.mxu0 0.0
    %1600 = vmatpush2.msra.mxu0 0.0
    %1601 = vmatprep.subr.mxu0 0.0
    %1602 = vmatpush2.msra.mxu0 0.0
    %1603 = vmatprep.subr.mxu0 0.0
    %1604 = vmatpush2.msra.mxu0 0.0
    %1605 = vmatprep.subr.mxu0 0.0
    %1606 = vmatpush2.msra.mxu0 0.0
    %1607 = vmatprep.mubr.f32.mxu0 0.0
    %1608 = vmatmul.mubr.f32.gmra.mxu0 %v1536
    %v1609 = vpop.f32.mrf.mxu0
    %v1610 = vadd.f32 0.0, %v1609
    %v1611 = vpop.f32.mrf.mxu0
    %v1612 = vadd.f32 0.0, %v1611
    %1613 = vdwg.mxu0
    %1614 = vmatprep.subr.mxu0 0.0
    %1615 = vmatpush1.msra.mxu0 %v626
    %1616 = vmatprep.subr.mxu0 0.0
    %1617 = vmatpush1.msra.mxu0 %v623
    %1618 = vmatprep.subr.mxu0 0.0
    %1619 = vmatpush1.msra.mxu0 %v620
    %1620 = vmatprep.subr.mxu0 0.0
    %1621 = vmatpush1.msra.mxu0 %v617
    %1622 = vmatprep.subr.mxu0 0.0
    %1623 = vmatpush1.msra.mxu0 %v614
    %1624 = vmatprep.subr.mxu0 0.0
    %1625 = vmatpush1.msra.mxu0 %v611
    %1626 = vmatprep.subr.mxu0 0.0
    %1627 = vmatpush1.msra.mxu0 %v608
    %1628 = vmatprep.subr.mxu0 0.0
    %1629 = vmatpush1.msra.mxu0 %v605
    %1630 = vmatprep.subr.mxu0 0.0
    %1631 = vmatpush1.msra.mxu0 %v602
    %1632 = vmatprep.subr.mxu0 0.0
    %1633 = vmatpush1.msra.mxu0 %v599
    %1634 = vmatprep.subr.mxu0 0.0
    %1635 = vmatpush1.msra.mxu0 %v596
    %1636 = vmatprep.subr.mxu0 0.0
    %1637 = vmatpush1.msra.mxu0 %v593
    %1638 = vmatprep.subr.mxu0 0.0
    %1639 = vmatpush1.msra.mxu0 %v590
    %1640 = vmatprep.subr.mxu0 0.0
    %1641 = vmatpush1.msra.mxu0 %v587
    %1642 = vmatprep.subr.mxu0 0.0
    %1643 = vmatpush1.msra.mxu0 %v584
    %1644 = vmatprep.subr.mxu0 0.0
    %1645 = vmatpush1.msra.mxu0 %v581
    %1646 = vmatprep.subr.mxu0 0.0
    %1647 = vmatpush2.msra.mxu0 0.0
    %1648 = vmatprep.subr.mxu0 0.0
    %1649 = vmatpush2.msra.mxu0 0.0
    %1650 = vmatprep.subr.mxu0 0.0
    %1651 = vmatpush2.msra.mxu0 0.0
    %1652 = vmatprep.subr.mxu0 0.0
    %1653 = vmatpush2.msra.mxu0 0.0
    %1654 = vmatprep.subr.mxu0 0.0
    %1655 = vmatpush2.msra.mxu0 0.0
    %1656 = vmatprep.subr.mxu0 0.0
    %1657 = vmatpush2.msra.mxu0 0.0
    %1658 = vmatprep.subr.mxu0 0.0
    %1659 = vmatpush2.msra.mxu0 0.0
    %1660 = vmatprep.subr.mxu0 0.0
    %1661 = vmatpush2.msra.mxu0 0.0
    %1662 = vmatprep.subr.mxu0 0.0
    %1663 = vmatpush2.msra.mxu0 0.0
    %1664 = vmatprep.subr.mxu0 0.0
    %1665 = vmatpush2.msra.mxu0 0.0
    %1666 = vmatprep.subr.mxu0 0.0
    %1667 = vmatpush2.msra.mxu0 0.0
    %1668 = vmatprep.subr.mxu0 0.0
    %1669 = vmatpush2.msra.mxu0 0.0
    %1670 = vmatprep.subr.mxu0 0.0
    %1671 = vmatpush2.msra.mxu0 0.0
    %1672 = vmatprep.subr.mxu0 0.0
    %1673 = vmatpush2.msra.mxu0 0.0
    %1674 = vmatprep.subr.mxu0 0.0
    %1675 = vmatpush2.msra.mxu0 0.0
    %1676 = vmatprep.subr.mxu0 0.0
    %1677 = vmatpush2.msra.mxu0 0.0
    %1678 = vmatprep.mubr.f32.mxu0 0.0
    %1679 = vmatmul.mubr.f32.gmra.mxu0 %v1536
    %v1680 = vpop.f32.mrf.mxu0
    %v1681 = vadd.f32 0.0, %v1680
    %v1682 = vpop.f32.mrf.mxu0
    %1683 = vdwg.mxu0
    %v1684 = vadd.f32 %v1540, %v1610
    %v1685 = vxor.u32 %v1684, 2147483648
    %v1686 = vmul.f32 %v1685, 1.442695
    %v1687 = vpow.pop %v1686
    %v1688 = vadd.f32 %v1687, 1.0
    %v1689 = vrcp.pop %v1688
    %v1690 = vmul.f32 1.0, %v1689
    %v1691 = vadd.f32 %v1541, %v1612
    %v1692 = vxor.u32 %v1691, 2147483648
    %v1693 = vmul.f32 %v1692, 1.442695
    %v1694 = vpow.pop %v1693
    %v1695 = vadd.f32 %v1694, 1.0
    %v1696 = vrcp.pop %v1695
    %v1697 = vmul.f32 1.0, %v1696
    %v1698 = vadd.f32 %v1681, %v793
    %v1699 = vmul.f32 %v1690, %v1698
    %v1700 = vadd.f32 %v1542, %v1699
    %v1701 = vtanh.pop %v1700
    %v1702 = vsub.f32 1.0, %v1697
    %v1703 = vmul.f32 %v1702, %v1701
    %v1704 = vmul.f32 %v1697, %v1536
    %v1705 = vadd.f32 %v1703, %v1704
    %s1706 = sadd.s32 %s111, 5
    %v1707 = vstv %s1706
    %vm1708 = vcmp.lt.s32.totalorder %v1707, %v110
    %v1709 = vsel %vm1708, 1, 0
    %1710 = vset.pattern.permute.xlu0 0
    %1711 = vperm.xlu0 %1710, %v1709
    %v1712 = vpop.permute.xlu0 %1711
    %vm1713 = vcmp.eq.s32.totalorder %v1712, 1
    %v1714 = vsel %vm1713, %v1705, 0.0
    %s1715 = scalar_lea.vmem [#allocation2], 40
    %1716 = vst [vmem:[%s1715] sm:$0xff] %v1714
    %v1717 = vsel %vm1713, %v1705, %v1536
    %s1718 = scalar_lea.vmem [#allocation3], 72
    %v1719 = vld [vmem:[%s1718] sm:$0xff]
    %v1720 = vld [vmem:[%s1718 + $0x8] sm:$0xf]
    %v1721 = vunpack.c.l.bf16 %v1719
    %v1722 = vunpack.c.h.bf16 %v1719
    %v1723 = vunpack.c.l.bf16 %v1720
    %1724 = vmatprep.subr.mxu0 %v625
    %1725 = vmatpush1.msra.mxu0 %v624
    %1726 = vmatprep.subr.mxu0 %v622
    %1727 = vmatpush1.msra.mxu0 %v621
    %1728 = vmatprep.subr.mxu0 %v619
    %1729 = vmatpush1.msra.mxu0 %v618
    %1730 = vmatprep.subr.mxu0 %v616
    %1731 = vmatpush1.msra.mxu0 %v615
    %1732 = vmatprep.subr.mxu0 %v613
    %1733 = vmatpush1.msra.mxu0 %v612
    %1734 = vmatprep.subr.mxu0 %v610
    %1735 = vmatpush1.msra.mxu0 %v609
    %1736 = vmatprep.subr.mxu0 %v607
    %1737 = vmatpush1.msra.mxu0 %v606
    %1738 = vmatprep.subr.mxu0 %v604
    %1739 = vmatpush1.msra.mxu0 %v603
    %1740 = vmatprep.subr.mxu0 %v601
    %1741 = vmatpush1.msra.mxu0 %v600
    %1742 = vmatprep.subr.mxu0 %v598
    %1743 = vmatpush1.msra.mxu0 %v597
    %1744 = vmatprep.subr.mxu0 %v595
    %1745 = vmatpush1.msra.mxu0 %v594
    %1746 = vmatprep.subr.mxu0 %v592
    %1747 = vmatpush1.msra.mxu0 %v591
    %1748 = vmatprep.subr.mxu0 %v589
    %1749 = vmatpush1.msra.mxu0 %v588
    %1750 = vmatprep.subr.mxu0 %v586
    %1751 = vmatpush1.msra.mxu0 %v585
    %1752 = vmatprep.subr.mxu0 %v583
    %1753 = vmatpush1.msra.mxu0 %v582
    %1754 = vmatprep.subr.mxu0 %v580
    %1755 = vmatpush1.msra.mxu0 %v579
    %1756 = vmatprep.subr.mxu0 0.0
    %1757 = vmatpush2.msra.mxu0 0.0
    %1758 = vmatprep.subr.mxu0 0.0
    %1759 = vmatpush2.msra.mxu0 0.0
    %1760 = vmatprep.subr.mxu0 0.0
    %1761 = vmatpush2.msra.mxu0 0.0
    %1762 = vmatprep.subr.mxu0 0.0
    %1763 = vmatpush2.msra.mxu0 0.0
    %1764 = vmatprep.subr.mxu0 0.0
    %1765 = vmatpush2.msra.mxu0 0.0
    %1766 = vmatprep.subr.mxu0 0.0
    %1767 = vmatpush2.msra.mxu0 0.0
    %1768 = vmatprep.subr.mxu0 0.0
    %1769 = vmatpush2.msra.mxu0 0.0
    %1770 = vmatprep.subr.mxu0 0.0
    %1771 = vmatpush2.msra.mxu0 0.0
    %1772 = vmatprep.subr.mxu0 0.0
    %1773 = vmatpush2.msra.mxu0 0.0
    %1774 = vmatprep.subr.mxu0 0.0
    %1775 = vmatpush2.msra.mxu0 0.0
    %1776 = vmatprep.subr.mxu0 0.0
    %1777 = vmatpush2.msra.mxu0 0.0
    %1778 = vmatprep.subr.mxu0 0.0
    %1779 = vmatpush2.msra.mxu0 0.0
    %1780 = vmatprep.subr.mxu0 0.0
    %1781 = vmatpush2.msra.mxu0 0.0
    %1782 = vmatprep.subr.mxu0 0.0
    %1783 = vmatpush2.msra.mxu0 0.0
    %1784 = vmatprep.subr.mxu0 0.0
    %1785 = vmatpush2.msra.mxu0 0.0
    %1786 = vmatprep.subr.mxu0 0.0
    %1787 = vmatpush2.msra.mxu0 0.0
    %1788 = vmatprep.mubr.f32.mxu0 0.0
    %1789 = vmatmul.mubr.f32.gmra.mxu0 %v1717
    %v1790 = vpop.f32.mrf.mxu0
    %v1791 = vadd.f32 0.0, %v1790
    %v1792 = vpop.f32.mrf.mxu0
    %v1793 = vadd.f32 0.0, %v1792
    %1794 = vdwg.mxu0
    %1795 = vmatprep.subr.mxu0 0.0
    %1796 = vmatpush1.msra.mxu0 %v626
    %1797 = vmatprep.subr.mxu0 0.0
    %1798 = vmatpush1.msra.mxu0 %v623
    %1799 = vmatprep.subr.mxu0 0.0
    %1800 = vmatpush1.msra.mxu0 %v620
    %1801 = vmatprep.subr.mxu0 0.0
    %1802 = vmatpush1.msra.mxu0 %v617
    %1803 = vmatprep.subr.mxu0 0.0
    %1804 = vmatpush1.msra.mxu0 %v614
    %1805 = vmatprep.subr.mxu0 0.0
    %1806 = vmatpush1.msra.mxu0 %v611
    %1807 = vmatprep.subr.mxu0 0.0
    %1808 = vmatpush1.msra.mxu0 %v608
    %1809 = vmatprep.subr.mxu0 0.0
    %1810 = vmatpush1.msra.mxu0 %v605
    %1811 = vmatprep.subr.mxu0 0.0
    %1812 = vmatpush1.msra.mxu0 %v602
    %1813 = vmatprep.subr.mxu0 0.0
    %1814 = vmatpush1.msra.mxu0 %v599
    %1815 = vmatprep.subr.mxu0 0.0
    %1816 = vmatpush1.msra.mxu0 %v596
    %1817 = vmatprep.subr.mxu0 0.0
    %1818 = vmatpush1.msra.mxu0 %v593
    %1819 = vmatprep.subr.mxu0 0.0
    %1820 = vmatpush1.msra.mxu0 %v590
    %1821 = vmatprep.subr.mxu0 0.0
    %1822 = vmatpush1.msra.mxu0 %v587
    %1823 = vmatprep.subr.mxu0 0.0
    %1824 = vmatpush1.msra.mxu0 %v584
    %1825 = vmatprep.subr.mxu0 0.0
    %1826 = vmatpush1.msra.mxu0 %v581
    %1827 = vmatprep.subr.mxu0 0.0
    %1828 = vmatpush2.msra.mxu0 0.0
    %1829 = vmatprep.subr.mxu0 0.0
    %1830 = vmatpush2.msra.mxu0 0.0
    %1831 = vmatprep.subr.mxu0 0.0
    %1832 = vmatpush2.msra.mxu0 0.0
    %1833 = vmatprep.subr.mxu0 0.0
    %1834 = vmatpush2.msra.mxu0 0.0
    %1835 = vmatprep.subr.mxu0 0.0
    %1836 = vmatpush2.msra.mxu0 0.0
    %1837 = vmatprep.subr.mxu0 0.0
    %1838 = vmatpush2.msra.mxu0 0.0
    %1839 = vmatprep.subr.mxu0 0.0
    %1840 = vmatpush2.msra.mxu0 0.0
    %1841 = vmatprep.subr.mxu0 0.0
    %1842 = vmatpush2.msra.mxu0 0.0
    %1843 = vmatprep.subr.mxu0 0.0
    %1844 = vmatpush2.msra.mxu0 0.0
    %1845 = vmatprep.subr.mxu0 0.0
    %1846 = vmatpush2.msra.mxu0 0.0
    %1847 = vmatprep.subr.mxu0 0.0
    %1848 = vmatpush2.msra.mxu0 0.0
    %1849 = vmatprep.subr.mxu0 0.0
    %1850 = vmatpush2.msra.mxu0 0.0
    %1851 = vmatprep.subr.mxu0 0.0
    %1852 = vmatpush2.msra.mxu0 0.0
    %1853 = vmatprep.subr.mxu0 0.0
    %1854 = vmatpush2.msra.mxu0 0.0
    %1855 = vmatprep.subr.mxu0 0.0
    %1856 = vmatpush2.msra.mxu0 0.0
    %1857 = vmatprep.subr.mxu0 0.0
    %1858 = vmatpush2.msra.mxu0 0.0
    %1859 = vmatprep.mubr.f32.mxu0 0.0
    %1860 = vmatmul.mubr.f32.gmra.mxu0 %v1717
    %v1861 = vpop.f32.mrf.mxu0
    %v1862 = vadd.f32 0.0, %v1861
    %v1863 = vpop.f32.mrf.mxu0
    %1864 = vdwg.mxu0
    %v1865 = vadd.f32 %v1721, %v1791
    %v1866 = vxor.u32 %v1865, 2147483648
    %v1867 = vmul.f32 %v1866, 1.442695
    %v1868 = vpow.pop %v1867
    %v1869 = vadd.f32 %v1868, 1.0
    %v1870 = vrcp.pop %v1869
    %v1871 = vmul.f32 1.0, %v1870
    %v1872 = vadd.f32 %v1722, %v1793
    %v1873 = vxor.u32 %v1872, 2147483648
    %v1874 = vmul.f32 %v1873, 1.442695
    %v1875 = vpow.pop %v1874
    %v1876 = vadd.f32 %v1875, 1.0
    %v1877 = vrcp.pop %v1876
    %v1878 = vmul.f32 1.0, %v1877
    %v1879 = vadd.f32 %v1862, %v793
    %v1880 = vmul.f32 %v1871, %v1879
    %v1881 = vadd.f32 %v1723, %v1880
    %v1882 = vtanh.pop %v1881
    %v1883 = vsub.f32 1.0, %v1878
    %v1884 = vmul.f32 %v1883, %v1882
    %v1885 = vmul.f32 %v1878, %v1717
    %v1886 = vadd.f32 %v1884, %v1885
    %s1887 = sadd.s32 %s111, 6
    %v1888 = vstv %s1887
    %vm1889 = vcmp.lt.s32.totalorder %v1888, %v110
    %v1890 = vsel %vm1889, 1, 0
    %1891 = vset.pattern.permute.xlu0 0
    %1892 = vperm.xlu0 %1891, %v1890
    %v1893 = vpop.permute.xlu0 %1892
    %vm1894 = vcmp.eq.s32.totalorder %v1893, 1
    %v1895 = vsel %vm1894, %v1886, 0.0
    %s1896 = scalar_lea.vmem [#allocation2], 48
    %1897 = vst [vmem:[%s1896] sm:$0xff] %v1895
    %v1898 = vsel %vm1894, %v1886, %v1717
    %s1899 = scalar_lea.vmem [#allocation3], 84
    %v1900 = vld [vmem:[%s1899] sm:$0xff]
    %v1901 = vld [vmem:[%s1899 + $0x8] sm:$0xf]
    %v1902 = vunpack.c.l.bf16 %v1900
    %v1903 = vunpack.c.h.bf16 %v1900
    %v1904 = vunpack.c.l.bf16 %v1901
    %1905 = vmatprep.subr.mxu0 %v625
    %1906 = vmatpush1.msra.mxu0 %v624
    %1907 = vmatprep.subr.mxu0 %v622
    %1908 = vmatpush1.msra.mxu0 %v621
    %1909 = vmatprep.subr.mxu0 %v619
    %1910 = vmatpush1.msra.mxu0 %v618
    %1911 = vmatprep.subr.mxu0 %v616
    %1912 = vmatpush1.msra.mxu0 %v615
    %1913 = vmatprep.subr.mxu0 %v613
    %1914 = vmatpush1.msra.mxu0 %v612
    %1915 = vmatprep.subr.mxu0 %v610
    %1916 = vmatpush1.msra.mxu0 %v609
    %1917 = vmatprep.subr.mxu0 %v607
    %1918 = vmatpush1.msra.mxu0 %v606
    %1919 = vmatprep.subr.mxu0 %v604
    %1920 = vmatpush1.msra.mxu0 %v603
    %1921 = vmatprep.subr.mxu0 %v601
    %1922 = vmatpush1.msra.mxu0 %v600
    %1923 = vmatprep.subr.mxu0 %v598
    %1924 = vmatpush1.msra.mxu0 %v597
    %1925 = vmatprep.subr.mxu0 %v595
    %1926 = vmatpush1.msra.mxu0 %v594
    %1927 = vmatprep.subr.mxu0 %v592
    %1928 = vmatpush1.msra.mxu0 %v591
    %1929 = vmatprep.subr.mxu0 %v589
    %1930 = vmatpush1.msra.mxu0 %v588
    %1931 = vmatprep.subr.mxu0 %v586
    %1932 = vmatpush1.msra.mxu0 %v585
    %1933 = vmatprep.subr.mxu0 %v583
    %1934 = vmatpush1.msra.mxu0 %v582
    %1935 = vmatprep.subr.mxu0 %v580
    %1936 = vmatpush1.msra.mxu0 %v579
    %1937 = vmatprep.subr.mxu0 0.0
    %1938 = vmatpush2.msra.mxu0 0.0
    %1939 = vmatprep.subr.mxu0 0.0
    %1940 = vmatpush2.msra.mxu0 0.0
    %1941 = vmatprep.subr.mxu0 0.0
    %1942 = vmatpush2.msra.mxu0 0.0
    %1943 = vmatprep.subr.mxu0 0.0
    %1944 = vmatpush2.msra.mxu0 0.0
    %1945 = vmatprep.subr.mxu0 0.0
    %1946 = vmatpush2.msra.mxu0 0.0
    %1947 = vmatprep.subr.mxu0 0.0
    %1948 = vmatpush2.msra.mxu0 0.0
    %1949 = vmatprep.subr.mxu0 0.0
    %1950 = vmatpush2.msra.mxu0 0.0
    %1951 = vmatprep.subr.mxu0 0.0
    %1952 = vmatpush2.msra.mxu0 0.0
    %1953 = vmatprep.subr.mxu0 0.0
    %1954 = vmatpush2.msra.mxu0 0.0
    %1955 = vmatprep.subr.mxu0 0.0
    %1956 = vmatpush2.msra.mxu0 0.0
    %1957 = vmatprep.subr.mxu0 0.0
    %1958 = vmatpush2.msra.mxu0 0.0
    %1959 = vmatprep.subr.mxu0 0.0
    %1960 = vmatpush2.msra.mxu0 0.0
    %1961 = vmatprep.subr.mxu0 0.0
    %1962 = vmatpush2.msra.mxu0 0.0
    %1963 = vmatprep.subr.mxu0 0.0
    %1964 = vmatpush2.msra.mxu0 0.0
    %1965 = vmatprep.subr.mxu0 0.0
    %1966 = vmatpush2.msra.mxu0 0.0
    %1967 = vmatprep.subr.mxu0 0.0
    %1968 = vmatpush2.msra.mxu0 0.0
    %1969 = vmatprep.mubr.f32.mxu0 0.0
    %1970 = vmatmul.mubr.f32.gmra.mxu0 %v1898
    %v1971 = vpop.f32.mrf.mxu0
    %v1972 = vadd.f32 0.0, %v1971
    %v1973 = vpop.f32.mrf.mxu0
    %v1974 = vadd.f32 0.0, %v1973
    %1975 = vdwg.mxu0
    %1976 = vmatprep.subr.mxu0 0.0
    %1977 = vmatpush1.msra.mxu0 %v626
    %1978 = vmatprep.subr.mxu0 0.0
    %1979 = vmatpush1.msra.mxu0 %v623
    %1980 = vmatprep.subr.mxu0 0.0
    %1981 = vmatpush1.msra.mxu0 %v620
    %1982 = vmatprep.subr.mxu0 0.0
    %1983 = vmatpush1.msra.mxu0 %v617
    %1984 = vmatprep.subr.mxu0 0.0
    %1985 = vmatpush1.msra.mxu0 %v614
    %1986 = vmatprep.subr.mxu0 0.0
    %1987 = vmatpush1.msra.mxu0 %v611
    %1988 = vmatprep.subr.mxu0 0.0
    %1989 = vmatpush1.msra.mxu0 %v608
    %1990 = vmatprep.subr.mxu0 0.0
    %1991 = vmatpush1.msra.mxu0 %v605
    %1992 = vmatprep.subr.mxu0 0.0
    %1993 = vmatpush1.msra.mxu0 %v602
    %1994 = vmatprep.subr.mxu0 0.0
    %1995 = vmatpush1.msra.mxu0 %v599
    %1996 = vmatprep.subr.mxu0 0.0
    %1997 = vmatpush1.msra.mxu0 %v596
    %1998 = vmatprep.subr.mxu0 0.0
    %1999 = vmatpush1.msra.mxu0 %v593
    %2000 = vmatprep.subr.mxu0 0.0
    %2001 = vmatpush1.msra.mxu0 %v590
    %2002 = vmatprep.subr.mxu0 0.0
    %2003 = vmatpush1.msra.mxu0 %v587
    %2004 = vmatprep.subr.mxu0 0.0
    %2005 = vmatpush1.msra.mxu0 %v584
    %2006 = vmatprep.subr.mxu0 0.0
    %2007 = vmatpush1.msra.mxu0 %v581
    %2008 = vmatprep.subr.mxu0 0.0
    %2009 = vmatpush2.msra.mxu0 0.0
    %2010 = vmatprep.subr.mxu0 0.0
    %2011 = vmatpush2.msra.mxu0 0.0
    %2012 = vmatprep.subr.mxu0 0.0
    %2013 = vmatpush2.msra.mxu0 0.0
    %2014 = vmatprep.subr.mxu0 0.0
    %2015 = vmatpush2.msra.mxu0 0.0
    %2016 = vmatprep.subr.mxu0 0.0
    %2017 = vmatpush2.msra.mxu0 0.0
    %2018 = vmatprep.subr.mxu0 0.0
    %2019 = vmatpush2.msra.mxu0 0.0
    %2020 = vmatprep.subr.mxu0 0.0
    %2021 = vmatpush2.msra.mxu0 0.0
    %2022 = vmatprep.subr.mxu0 0.0
    %2023 = vmatpush2.msra.mxu0 0.0
    %2024 = vmatprep.subr.mxu0 0.0
    %2025 = vmatpush2.msra.mxu0 0.0
    %2026 = vmatprep.subr.mxu0 0.0
    %2027 = vmatpush2.msra.mxu0 0.0
    %2028 = vmatprep.subr.mxu0 0.0
    %2029 = vmatpush2.msra.mxu0 0.0
    %2030 = vmatprep.subr.mxu0 0.0
    %2031 = vmatpush2.msra.mxu0 0.0
    %2032 = vmatprep.subr.mxu0 0.0
    %2033 = vmatpush2.msra.mxu0 0.0
    %2034 = vmatprep.subr.mxu0 0.0
    %2035 = vmatpush2.msra.mxu0 0.0
    %2036 = vmatprep.subr.mxu0 0.0
    %2037 = vmatpush2.msra.mxu0 0.0
    %2038 = vmatprep.subr.mxu0 0.0
    %2039 = vmatpush2.msra.mxu0 0.0
    %2040 = vmatprep.mubr.f32.mxu0 0.0
    %2041 = vmatmul.mubr.f32.gmra.mxu0 %v1898
    %v2042 = vpop.f32.mrf.mxu0
    %v2043 = vadd.f32 0.0, %v2042
    %v2044 = vpop.f32.mrf.mxu0
    %2045 = vdwg.mxu0
    %v2046 = vadd.f32 %v1902, %v1972
    %v2047 = vxor.u32 %v2046, 2147483648
    %v2048 = vmul.f32 %v2047, 1.442695
    %v2049 = vpow.pop %v2048
    %v2050 = vadd.f32 %v2049, 1.0
    %v2051 = vrcp.pop %v2050
    %v2052 = vmul.f32 1.0, %v2051
    %v2053 = vadd.f32 %v1903, %v1974
    %v2054 = vxor.u32 %v2053, 2147483648
    %v2055 = vmul.f32 %v2054, 1.442695
    %v2056 = vpow.pop %v2055
    %v2057 = vadd.f32 %v2056, 1.0
    %v2058 = vrcp.pop %v2057
    %v2059 = vmul.f32 1.0, %v2058
    %v2060 = vadd.f32 %v2043, %v793
    %v2061 = vmul.f32 %v2052, %v2060
    %v2062 = vadd.f32 %v1904, %v2061
    %v2063 = vtanh.pop %v2062
    %v2064 = vsub.f32 1.0, %v2059
    %v2065 = vmul.f32 %v2064, %v2063
    %v2066 = vmul.f32 %v2059, %v1898
    %v2067 = vadd.f32 %v2065, %v2066
    %s2068 = sadd.s32 %s111, 7
    %v2069 = vstv %s2068
    %vm2070 = vcmp.lt.s32.totalorder %v2069, %v110
    %v2071 = vsel %vm2070, 1, 0
    %2072 = vset.pattern.permute.xlu0 0
    %2073 = vperm.xlu0 %2072, %v2071
    %v2074 = vpop.permute.xlu0 %2073
    %vm2075 = vcmp.eq.s32.totalorder %v2074, 1
    %v2076 = vsel %vm2075, %v2067, 0.0
    %s2077 = scalar_lea.vmem [#allocation2], 56
    %2078 = vst [vmem:[%s2077] sm:$0xff] %v2076
    %v2079 = vsel %vm2075, %v2067, %v1898
    %2080 = vst [vmem:[#allocation14] sm:$0xff] %v2079
    %v2081 = vld [vmem:[#allocation2] sm:$0xff]
    %v2082 = vld [vmem:[#allocation2 + $0x8] sm:$0xff]
    %v2083 = vld [vmem:[#allocation2 + $0x10] sm:$0xff]
    %v2084 = vld [vmem:[#allocation2 + $0x18] sm:$0xff]
    %v2085 = vld [vmem:[#allocation2 + $0x20] sm:$0xff]
    %v2086 = vld [vmem:[#allocation2 + $0x28] sm:$0xff]
    %v2087 = vld [vmem:[#allocation2 + $0x30] sm:$0xff]
    %v2088 = vld [vmem:[#allocation2 + $0x38] sm:$0xff]
    %v2089 = vpack.c.bf16 %v2082, %v2081
    %v2090 = vpack.c.bf16 %v2084, %v2083
    %v2091 = vpack.c.bf16 %v2086, %v2085
    %v2092 = vpack.c.bf16 %v2088, %v2087
    %v2093 = vld [vmem:[#allocation9] sm:$0xff]
    %v2094 = vld [vmem:[#allocation9 + $0x8] sm:$0xf]
    %v2095 = vld [vmem:[#allocation9 + $0xc] sm:$0xff]
    %v2096 = vld [vmem:[#allocation9 + $0x14] sm:$0xf]
    %v2097 = vld [vmem:[#allocation9 + $0x18] sm:$0xff]
    %v2098 = vld [vmem:[#allocation9 + $0x20] sm:$0xf]
    %v2099 = vld [vmem:[#allocation9 + $0x24] sm:$0xff]
    %v2100 = vld [vmem:[#allocation9 + $0x2c] sm:$0xf]
    %v2101 = vld [vmem:[#allocation9 + $0x30] sm:$0xff]
    %v2102 = vld [vmem:[#allocation9 + $0x38] sm:$0xf]
    %v2103 = vld [vmem:[#allocation9 + $0x3c] sm:$0xff]
    %v2104 = vld [vmem:[#allocation9 + $0x44] sm:$0xf]
    %v2105 = vld [vmem:[#allocation9 + $0x48] sm:$0xff]
    %v2106 = vld [vmem:[#allocation9 + $0x50] sm:$0xf]
    %v2107 = vld [vmem:[#allocation9 + $0x54] sm:$0xff]
    %v2108 = vld [vmem:[#allocation9 + $0x5c] sm:$0xf]
    %v2109 = vld [vmem:[#allocation9 + $0x60] sm:$0xff]
    %v2110 = vld [vmem:[#allocation9 + $0x68] sm:$0xf]
    %v2111 = vld [vmem:[#allocation9 + $0x6c] sm:$0xff]
    %v2112 = vld [vmem:[#allocation9 + $0x74] sm:$0xf]
    %v2113 = vld [vmem:[#allocation9 + $0x78] sm:$0xff]
    %v2114 = vld [vmem:[#allocation9 + $0x80] sm:$0xf]
    %v2115 = vld [vmem:[#allocation9 + $0x84] sm:$0xff]
    %v2116 = vld [vmem:[#allocation9 + $0x8c] sm:$0xf]
    %v2117 = vld [vmem:[#allocation9 + $0x90] sm:$0xff]
    %v2118 = vld [vmem:[#allocation9 + $0x98] sm:$0xf]
    %v2119 = vld [vmem:[#allocation9 + $0x9c] sm:$0xff]
    %v2120 = vld [vmem:[#allocation9 + $0xa4] sm:$0xf]
    %v2121 = vld [vmem:[#allocation9 + $0xa8] sm:$0xff]
    %v2122 = vld [vmem:[#allocation9 + $0xb0] sm:$0xf]
    %v2123 = vld [vmem:[#allocation9 + $0xb4] sm:$0xff]
    %v2124 = vld [vmem:[#allocation9 + $0xbc] sm:$0xf]
    %s2125 = scalar_lea.vmem [#allocation12], 3
    %v2126 = vld [vmem:[%s2125] sm:$0x7]
    %v2128 = vlaneseq
    %v2129 = vshrl.u32 %v2128, 7
    %v2130 = vsub.s32 0, %v2129
    %v2131 = vrot.slane %v2126, %v2130
    %v2132 = vlaneseq
    %v2133 = vshrl.u32 %v2132, 7
    %v2134 = vsub.s32 1, %v2133
    %v2135 = vrot.slane %v2126, %v2134
    %v2136 = vlaneseq
    %v2137 = vshrl.u32 %v2136, 7
    %v2138 = vsub.s32 2, %v2137
    %v2139 = vrot.slane %v2126, %v2138
    %v2175 = vunpack.c.l.b16 %v2093
    %v2176 = vunpack.c.h.b16 %v2093
    %v2177 = vunpack.c.l.b16 %v2094
    %v2178 = vunpack.c.l.b16 %v2095
    %v2179 = vunpack.c.h.b16 %v2095
    %v2180 = vunpack.c.l.b16 %v2096
    %v2181 = vunpack.c.l.b16 %v2097
    %v2182 = vunpack.c.h.b16 %v2097
    %v2183 = vunpack.c.l.b16 %v2098
    %v2184 = vunpack.c.l.b16 %v2099
    %v2185 = vunpack.c.h.b16 %v2099
    %v2186 = vunpack.c.l.b16 %v2100
    %v2187 = vunpack.c.l.b16 %v2101
    %v2188 = vunpack.c.h.b16 %v2101
    %v2189 = vunpack.c.l.b16 %v2102
    %v2190 = vunpack.c.l.b16 %v2103
    %v2191 = vunpack.c.h.b16 %v2103
    %v2192 = vunpack.c.l.b16 %v2104
    %v2193 = vunpack.c.l.b16 %v2105
    %v2194 = vunpack.c.h.b16 %v2105
    %v2195 = vunpack.c.l.b16 %v2106
    %v2196 = vunpack.c.l.b16 %v2107
    %v2197 = vunpack.c.h.b16 %v2107
    %v2198 = vunpack.c.l.b16 %v2108
    %v2199 = vunpack.c.l.b16 %v2109
    %v2200 = vunpack.c.h.b16 %v2109
    %v2201 = vunpack.c.l.b16 %v2110
    %v2202 = vunpack.c.l.b16 %v2111
    %v2203 = vunpack.c.h.b16 %v2111
    %v2204 = vunpack.c.l.b16 %v2112
    %v2205 = vunpack.c.l.b16 %v2113
    %v2206 = vunpack.c.h.b16 %v2113
    %v2207 = vunpack.c.l.b16 %v2114
    %v2208 = vunpack.c.l.b16 %v2115
    %v2209 = vunpack.c.h.b16 %v2115
    %v2210 = vunpack.c.l.b16 %v2116
    %v2211 = vunpack.c.l.b16 %v2117
    %v2212 = vunpack.c.h.b16 %v2117
    %v2213 = vunpack.c.l.b16 %v2118
    %v2214 = vunpack.c.l.b16 %v2119
    %v2215 = vunpack.c.h.b16 %v2119
    %v2216 = vunpack.c.l.b16 %v2120
    %v2217 = vunpack.c.l.b16 %v2121
    %v2218 = vunpack.c.h.b16 %v2121
    %v2219 = vunpack.c.l.b16 %v2122
    %v2220 = vunpack.c.l.b16 %v2123
    %v2221 = vunpack.c.h.b16 %v2123
    %v2222 = vunpack.c.l.b16 %v2124
    %v2223 = vpack.c.b16 %v2178, %v2175
    %v2224 = vpack.c.b16 %v2179, %v2176
    %v2225 = vpack.c.b16 %v2180, %v2177
    %v2226 = vpack.c.b16 %v2184, %v2181
    %v2227 = vpack.c.b16 %v2185, %v2182
    %v2228 = vpack.c.b16 %v2186, %v2183
    %v2229 = vpack.c.b16 %v2190, %v2187
    %v2230 = vpack.c.b16 %v2191, %v2188
    %v2231 = vpack.c.b16 %v2192, %v2189
    %v2232 = vpack.c.b16 %v2196, %v2193
    %v2233 = vpack.c.b16 %v2197, %v2194
    %v2234 = vpack.c.b16 %v2198, %v2195
    %v2235 = vpack.c.b16 %v2202, %v2199
    %v2236 = vpack.c.b16 %v2203, %v2200
    %v2237 = vpack.c.b16 %v2204, %v2201
    %v2238 = vpack.c.b16 %v2208, %v2205
    %v2239 = vpack.c.b16 %v2209, %v2206
    %v2240 = vpack.c.b16 %v2210, %v2207
    %v2241 = vpack.c.b16 %v2214, %v2211
    %v2242 = vpack.c.b16 %v2215, %v2212
    %v2243 = vpack.c.b16 %v2216, %v2213
    %v2244 = vpack.c.b16 %v2220, %v2217
    %v2245 = vpack.c.b16 %v2221, %v2218
    %v2246 = vpack.c.b16 %v2222, %v2219
    %2271 = vmatprep.subr.bf16.mxu0 %v2245
    %2272 = vmatpush1.bf16.msra.mxu0 %v2244
    %2273 = vmatprep.subr.bf16.mxu0 %v2242
    %2274 = vmatpush1.bf16.msra.mxu0 %v2241
    %2275 = vmatprep.subr.bf16.mxu0 %v2239
    %2276 = vmatpush1.bf16.msra.mxu0 %v2238
    %2277 = vmatprep.subr.bf16.mxu0 %v2236
    %2278 = vmatpush1.bf16.msra.mxu0 %v2235
    %2279 = vmatprep.subr.bf16.mxu0 %v2233
    %2280 = vmatpush1.bf16.msra.mxu0 %v2232
    %2281 = vmatprep.subr.bf16.mxu0 %v2230
    %2282 = vmatpush1.bf16.msra.mxu0 %v2229
    %2283 = vmatprep.subr.bf16.mxu0 %v2227
    %2284 = vmatpush1.bf16.msra.mxu0 %v2226
    %2285 = vmatprep.subr.bf16.mxu0 %v2224
    %2286 = vmatpush1.bf16.msra.mxu0 %v2223
    %2287 = vmatprep.subr.bf16.mxu0 0
    %2288 = vmatpush2.bf16.msra.mxu0 0
    %2289 = vmatprep.subr.bf16.mxu0 0
    %2290 = vmatpush2.bf16.msra.mxu0 0
    %2291 = vmatprep.subr.bf16.mxu0 0
    %2292 = vmatpush2.bf16.msra.mxu0 0
    %2293 = vmatprep.subr.bf16.mxu0 0
    %2294 = vmatpush2.bf16.msra.mxu0 0
    %2295 = vmatprep.subr.bf16.mxu0 0
    %2296 = vmatpush2.bf16.msra.mxu0 0
    %2297 = vmatprep.subr.bf16.mxu0 0
    %2298 = vmatpush2.bf16.msra.mxu0 0
    %2299 = vmatprep.subr.bf16.mxu0 0
    %2300 = vmatpush2.bf16.msra.mxu0 0
    %2301 = vmatprep.subr.bf16.mxu0 0
    %2302 = vmatpush2.bf16.msra.mxu0 0
    %2303 = vmatprep.mubr.bf16.mxu0 0
    %2304 = vmatmul.mubr.bf16.gmra.mxu0 %v2089
    %v2305 = vpop.f32.mrf.mxu0
    %v2306 = vadd.f32 %v2131, %v2305
    %v2307 = vpop.f32.mrf.mxu0
    %v2308 = vadd.f32 %v2135, %v2307
    %v2309 = vpop.f32.mrf.mxu0
    %v2310 = vadd.f32 %v2131, %v2309
    %v2311 = vpop.f32.mrf.mxu0
    %v2312 = vadd.f32 %v2135, %v2311
    %2313 = vmatprep.mubr.bf16.mxu0 0
    %2314 = vmatmul.mubr.bf16.gmra.mxu0 %v2090
    %v2315 = vpop.f32.mrf.mxu0
    %v2316 = vadd.f32 %v2131, %v2315
    %v2317 = vpop.f32.mrf.mxu0
    %v2318 = vadd.f32 %v2135, %v2317
    %v2319 = vpop.f32.mrf.mxu0
    %v2320 = vadd.f32 %v2131, %v2319
    %v2321 = vpop.f32.mrf.mxu0
    %v2322 = vadd.f32 %v2135, %v2321
    %2323 = vmatprep.mubr.bf16.mxu0 0
    %2324 = vmatmul.mubr.bf16.gmra.mxu0 %v2091
    %v2325 = vpop.f32.mrf.mxu0
    %v2326 = vadd.f32 %v2131, %v2325
    %v2327 = vpop.f32.mrf.mxu0
    %v2328 = vadd.f32 %v2135, %v2327
    %v2329 = vpop.f32.mrf.mxu0
    %v2330 = vadd.f32 %v2131, %v2329
    %v2331 = vpop.f32.mrf.mxu0
    %v2332 = vadd.f32 %v2135, %v2331
    %2333 = vmatprep.mubr.bf16.mxu0 0
    %2334 = vmatmul.mubr.bf16.gmra.mxu0 %v2092
    %v2335 = vpop.f32.mrf.mxu0
    %v2336 = vadd.f32 %v2131, %v2335
    %v2337 = vpop.f32.mrf.mxu0
    %v2338 = vadd.f32 %v2135, %v2337
    %v2339 = vpop.f32.mrf.mxu0
    %v2340 = vadd.f32 %v2131, %v2339
    %v2341 = vpop.f32.mrf.mxu0
    %v2342 = vadd.f32 %v2135, %v2341
    %2343 = vdwg.mxu0
    %2344 = vmatprep.subr.bf16.mxu0 0
    %2345 = vmatpush1.bf16.msra.mxu0 %v2246
    %2346 = vmatprep.subr.bf16.mxu0 0
    %2347 = vmatpush1.bf16.msra.mxu0 %v2243
    %2348 = vmatprep.subr.bf16.mxu0 0
    %2349 = vmatpush1.bf16.msra.mxu0 %v2240
    %2350 = vmatprep.subr.bf16.mxu0 0
    %2351 = vmatpush1.bf16.msra.mxu0 %v2237
    %2352 = vmatprep.subr.bf16.mxu0 0
    %2353 = vmatpush1.bf16.msra.mxu0 %v2234
    %2354 = vmatprep.subr.bf16.mxu0 0
    %2355 = vmatpush1.bf16.msra.mxu0 %v2231
    %2356 = vmatprep.subr.bf16.mxu0 0
    %2357 = vmatpush1.bf16.msra.mxu0 %v2228
    %2358 = vmatprep.subr.bf16.mxu0 0
    %2359 = vmatpush1.bf16.msra.mxu0 %v2225
    %2360 = vmatprep.subr.bf16.mxu0 0
    %2361 = vmatpush2.bf16.msra.mxu0 0
    %2362 = vmatprep.subr.bf16.mxu0 0
    %2363 = vmatpush2.bf16.msra.mxu0 0
    %2364 = vmatprep.subr.bf16.mxu0 0
    %2365 = vmatpush2.bf16.msra.mxu0 0
    %2366 = vmatprep.subr.bf16.mxu0 0
    %2367 = vmatpush2.bf16.msra.mxu0 0
    %2368 = vmatprep.subr.bf16.mxu0 0
    %2369 = vmatpush2.bf16.msra.mxu0 0
    %2370 = vmatprep.subr.bf16.mxu0 0
    %2371 = vmatpush2.bf16.msra.mxu0 0
    %2372 = vmatprep.subr.bf16.mxu0 0
    %2373 = vmatpush2.bf16.msra.mxu0 0
    %2374 = vmatprep.subr.bf16.mxu0 0
    %2375 = vmatpush2.bf16.msra.mxu0 0
    %2376 = vmatprep.mubr.bf16.mxu0 0
    %2377 = vmatmul.mubr.bf16.gmra.mxu0 %v2089
    %v2378 = vpop.f32.mrf.mxu0
    %v2379 = vadd.f32 %v2139, %v2378
    %v2380 = vpop.f32.mrf.mxu0
    %v2381 = vpop.f32.mrf.mxu0
    %v2382 = vadd.f32 %v2139, %v2381
    %v2383 = vpop.f32.mrf.mxu0
    %2384 = vmatprep.mubr.bf16.mxu0 0
    %2385 = vmatmul.mubr.bf16.gmra.mxu0 %v2090
    %v2386 = vpop.f32.mrf.mxu0
    %v2387 = vadd.f32 %v2139, %v2386
    %v2388 = vpop.f32.mrf.mxu0
    %v2389 = vpop.f32.mrf.mxu0
    %v2390 = vadd.f32 %v2139, %v2389
    %v2391 = vpop.f32.mrf.mxu0
    %2392 = vmatprep.mubr.bf16.mxu0 0
    %2393 = vmatmul.mubr.bf16.gmra.mxu0 %v2091
    %v2394 = vpop.f32.mrf.mxu0
    %v2395 = vadd.f32 %v2139, %v2394
    %v2396 = vpop.f32.mrf.mxu0
    %v2397 = vpop.f32.mrf.mxu0
    %v2398 = vadd.f32 %v2139, %v2397
    %v2399 = vpop.f32.mrf.mxu0
    %2400 = vmatprep.mubr.bf16.mxu0 0
    %2401 = vmatmul.mubr.bf16.gmra.mxu0 %v2092
    %v2402 = vpop.f32.mrf.mxu0
    %v2403 = vadd.f32 %v2139, %v2402
    %v2404 = vpop.f32.mrf.mxu0
    %v2405 = vpop.f32.mrf.mxu0
    %v2406 = vadd.f32 %v2139, %v2405
    %v2407 = vpop.f32.mrf.mxu0
    %2408 = vdwg.mxu0
    %v2409 = vpack.c.bf16 %v2306, %v2306
    %v2410 = vpack.c.bf16 %v2308, %v2308
    %v2411 = vpack.c.bf16 %v2379, %v2379
    %v2412 = vpack.c.bf16 %v2310, %v2310
    %v2413 = vpack.c.bf16 %v2312, %v2312
    %v2414 = vpack.c.bf16 %v2382, %v2382
    %v2415 = vpack.c.bf16 %v2316, %v2316
    %v2416 = vpack.c.bf16 %v2318, %v2318
    %v2417 = vpack.c.bf16 %v2387, %v2387
    %v2418 = vpack.c.bf16 %v2320, %v2320
    %v2419 = vpack.c.bf16 %v2322, %v2322
    %v2420 = vpack.c.bf16 %v2390, %v2390
    %v2421 = vpack.c.bf16 %v2326, %v2326
    %v2422 = vpack.c.bf16 %v2328, %v2328
    %v2423 = vpack.c.bf16 %v2395, %v2395
    %v2424 = vpack.c.bf16 %v2330, %v2330
    %v2425 = vpack.c.bf16 %v2332, %v2332
    %v2426 = vpack.c.bf16 %v2398, %v2398
    %v2427 = vpack.c.bf16 %v2336, %v2336
    %v2428 = vpack.c.bf16 %v2338, %v2338
    %v2429 = vpack.c.bf16 %v2403, %v2403
    %v2430 = vpack.c.bf16 %v2340, %v2340
    %v2431 = vpack.c.bf16 %v2342, %v2342
    %v2432 = vpack.c.bf16 %v2406, %v2406
    %v2457 = vunpack.c.l.b16 %v2409
    %v2458 = vunpack.c.l.b16 %v2410
    %v2459 = vunpack.c.l.b16 %v2411
    %v2460 = vunpack.c.l.b16 %v2412
    %v2461 = vunpack.c.l.b16 %v2413
    %v2462 = vunpack.c.l.b16 %v2414
    %v2463 = vunpack.c.l.b16 %v2415
    %v2464 = vunpack.c.l.b16 %v2416
    %v2465 = vunpack.c.l.b16 %v2417
    %v2466 = vunpack.c.l.b16 %v2418
    %v2467 = vunpack.c.l.b16 %v2419
    %v2468 = vunpack.c.l.b16 %v2420
    %v2469 = vunpack.c.l.b16 %v2421
    %v2470 = vunpack.c.l.b16 %v2422
    %v2471 = vunpack.c.l.b16 %v2423
    %v2472 = vunpack.c.l.b16 %v2424
    %v2473 = vunpack.c.l.b16 %v2425
    %v2474 = vunpack.c.l.b16 %v2426
    %v2475 = vunpack.c.l.b16 %v2427
    %v2476 = vunpack.c.l.b16 %v2428
    %v2477 = vunpack.c.l.b16 %v2429
    %v2478 = vunpack.c.l.b16 %v2430
    %v2479 = vunpack.c.l.b16 %v2431
    %v2480 = vunpack.c.l.b16 %v2432
    %v2481 = vpack.c.b16 %v2458, %v2457
    %v2482 = vpack.c.b16 %v2459, %v2459
    %v2483 = vpack.c.b16 %v2461, %v2460
    %v2484 = vpack.c.b16 %v2462, %v2462
    %v2485 = vpack.c.b16 %v2464, %v2463
    %v2486 = vpack.c.b16 %v2465, %v2465
    %v2487 = vpack.c.b16 %v2467, %v2466
    %v2488 = vpack.c.b16 %v2468, %v2468
    %v2489 = vpack.c.b16 %v2470, %v2469
    %v2490 = vpack.c.b16 %v2471, %v2471
    %v2491 = vpack.c.b16 %v2473, %v2472
    %v2492 = vpack.c.b16 %v2474, %v2474
    %v2493 = vpack.c.b16 %v2476, %v2475
    %v2494 = vpack.c.b16 %v2477, %v2477
    %v2495 = vpack.c.b16 %v2479, %v2478
    %v2496 = vpack.c.b16 %v2480, %v2480
    %2513 = vst [vmem:[#allocation3] sm:$0xff] %v2481
    %2514 = vst [vmem:[#allocation3 + $0x8] sm:$0xf] %v2482
    %2515 = vst [vmem:[#allocation3 + $0xc] sm:$0xff] %v2483
    %2516 = vst [vmem:[#allocation3 + $0x14] sm:$0xf] %v2484
    %2517 = vst [vmem:[#allocation3 + $0x18] sm:$0xff] %v2485
    %2518 = vst [vmem:[#allocation3 + $0x20] sm:$0xf] %v2486
    %2519 = vst [vmem:[#allocation3 + $0x24] sm:$0xff] %v2487
    %2520 = vst [vmem:[#allocation3 + $0x2c] sm:$0xf] %v2488
    %2521 = vst [vmem:[#allocation3 + $0x30] sm:$0xff] %v2489
    %2522 = vst [vmem:[#allocation3 + $0x38] sm:$0xf] %v2490
    %2523 = vst [vmem:[#allocation3 + $0x3c] sm:$0xff] %v2491
    %2524 = vst [vmem:[#allocation3 + $0x44] sm:$0xf] %v2492
    %2525 = vst [vmem:[#allocation3 + $0x48] sm:$0xff] %v2493
    %2526 = vst [vmem:[#allocation3 + $0x50] sm:$0xf] %v2494
    %2527 = vst [vmem:[#allocation3 + $0x54] sm:$0xff] %v2495
    %2528 = vst [vmem:[#allocation3 + $0x5c] sm:$0xf] %v2496
    %s2529 = scalar_lea.vmem [#allocation10], 384
    %v2530 = vld [vmem:[%s2529] sm:$0xff]
    %v2531 = vld [vmem:[%s2529 + $0x8] sm:$0xff]
    %v2532 = vld [vmem:[%s2529 + $0x10] sm:$0xff]
    %v2533 = vld [vmem:[%s2529 + $0x18] sm:$0xff]
    %v2534 = vld [vmem:[%s2529 + $0x20] sm:$0xff]
    %v2535 = vld [vmem:[%s2529 + $0x28] sm:$0xff]
    %v2536 = vld [vmem:[%s2529 + $0x30] sm:$0xff]
    %v2537 = vld [vmem:[%s2529 + $0x38] sm:$0xff]
    %v2538 = vld [vmem:[%s2529 + $0x40] sm:$0xff]
    %v2539 = vld [vmem:[%s2529 + $0x48] sm:$0xff]
    %v2540 = vld [vmem:[%s2529 + $0x50] sm:$0xff]
    %v2541 = vld [vmem:[%s2529 + $0x58] sm:$0xff]
    %v2542 = vld [vmem:[%s2529 + $0x60] sm:$0xff]
    %v2543 = vld [vmem:[%s2529 + $0x68] sm:$0xff]
    %v2544 = vld [vmem:[%s2529 + $0x70] sm:$0xff]
    %v2545 = vld [vmem:[%s2529 + $0x78] sm:$0xff]
    %v2546 = vld [vmem:[%s2529 + $0x80] sm:$0xff]
    %v2547 = vld [vmem:[%s2529 + $0x88] sm:$0xff]
    %v2548 = vld [vmem:[%s2529 + $0x90] sm:$0xff]
    %v2549 = vld [vmem:[%s2529 + $0x98] sm:$0xff]
    %v2550 = vld [vmem:[%s2529 + $0xa0] sm:$0xff]
    %v2551 = vld [vmem:[%s2529 + $0xa8] sm:$0xff]
    %v2552 = vld [vmem:[%s2529 + $0xb0] sm:$0xff]
    %v2553 = vld [vmem:[%s2529 + $0xb8] sm:$0xff]
    %v2554 = vld [vmem:[%s2529 + $0xc0] sm:$0xff]
    %v2555 = vld [vmem:[%s2529 + $0xc8] sm:$0xff]
    %v2556 = vld [vmem:[%s2529 + $0xd0] sm:$0xff]
    %v2557 = vld [vmem:[%s2529 + $0xd8] sm:$0xff]
    %v2558 = vld [vmem:[%s2529 + $0xe0] sm:$0xff]
    %v2559 = vld [vmem:[%s2529 + $0xe8] sm:$0xff]
    %v2560 = vld [vmem:[%s2529 + $0xf0] sm:$0xff]
    %v2561 = vld [vmem:[%s2529 + $0xf8] sm:$0xff]
    %v2562 = vld [vmem:[%s2529 + $0x100] sm:$0xff]
    %v2563 = vld [vmem:[%s2529 + $0x108] sm:$0xff]
    %v2564 = vld [vmem:[%s2529 + $0x110] sm:$0xff]
    %v2565 = vld [vmem:[%s2529 + $0x118] sm:$0xff]
    %v2566 = vld [vmem:[%s2529 + $0x120] sm:$0xff]
    %v2567 = vld [vmem:[%s2529 + $0x128] sm:$0xff]
    %v2568 = vld [vmem:[%s2529 + $0x130] sm:$0xff]
    %v2569 = vld [vmem:[%s2529 + $0x138] sm:$0xff]
    %v2570 = vld [vmem:[%s2529 + $0x140] sm:$0xff]
    %v2571 = vld [vmem:[%s2529 + $0x148] sm:$0xff]
    %v2572 = vld [vmem:[%s2529 + $0x150] sm:$0xff]
    %v2573 = vld [vmem:[%s2529 + $0x158] sm:$0xff]
    %v2574 = vld [vmem:[%s2529 + $0x160] sm:$0xff]
    %v2575 = vld [vmem:[%s2529 + $0x168] sm:$0xff]
    %v2576 = vld [vmem:[%s2529 + $0x170] sm:$0xff]
    %v2577 = vld [vmem:[%s2529 + $0x178] sm:$0xff]
    %s2578 = scalar_lea.vmem %s6, 1
    %v2579 = vld [vmem:[%s2578] sm:$0x1]
    %s2580 = scalar_lea.vmem [#allocation14], 8
    %v2581 = vld [vmem:[%s2580] sm:$0xff]
    %v2582 = vld [vmem:[#allocation3] sm:$0xff]
    %v2583 = vld [vmem:[#allocation3 + $0x8] sm:$0xf]
    %v2584 = vunpack.c.l.bf16 %v2582
    %v2585 = vunpack.c.h.bf16 %v2582
    %v2586 = vunpack.c.l.bf16 %v2583
    %2587 = vmatprep.subr.mxu0 %v2576
    %2588 = vmatpush1.msra.mxu0 %v2575
    %2589 = vmatprep.subr.mxu0 %v2573
    %2590 = vmatpush1.msra.mxu0 %v2572
    %2591 = vmatprep.subr.mxu0 %v2570
    %2592 = vmatpush1.msra.mxu0 %v2569
    %2593 = vmatprep.subr.mxu0 %v2567
    %2594 = vmatpush1.msra.mxu0 %v2566
    %2595 = vmatprep.subr.mxu0 %v2564
    %2596 = vmatpush1.msra.mxu0 %v2563
    %2597 = vmatprep.subr.mxu0 %v2561
    %2598 = vmatpush1.msra.mxu0 %v2560
    %2599 = vmatprep.subr.mxu0 %v2558
    %2600 = vmatpush1.msra.mxu0 %v2557
    %2601 = vmatprep.subr.mxu0 %v2555
    %2602 = vmatpush1.msra.mxu0 %v2554
    %2603 = vmatprep.subr.mxu0 %v2552
    %2604 = vmatpush1.msra.mxu0 %v2551
    %2605 = vmatprep.subr.mxu0 %v2549
    %2606 = vmatpush1.msra.mxu0 %v2548
    %2607 = vmatprep.subr.mxu0 %v2546
    %2608 = vmatpush1.msra.mxu0 %v2545
    %2609 = vmatprep.subr.mxu0 %v2543
    %2610 = vmatpush1.msra.mxu0 %v2542
    %2611 = vmatprep.subr.mxu0 %v2540
    %2612 = vmatpush1.msra.mxu0 %v2539
    %2613 = vmatprep.subr.mxu0 %v2537
    %2614 = vmatpush1.msra.mxu0 %v2536
    %2615 = vmatprep.subr.mxu0 %v2534
    %2616 = vmatpush1.msra.mxu0 %v2533
    %2617 = vmatprep.subr.mxu0 %v2531
    %2618 = vmatpush1.msra.mxu0 %v2530
    %2619 = vmatprep.subr.mxu0 0.0
    %2620 = vmatpush2.msra.mxu0 0.0
    %2621 = vmatprep.subr.mxu0 0.0
    %2622 = vmatpush2.msra.mxu0 0.0
    %2623 = vmatprep.subr.mxu0 0.0
    %2624 = vmatpush2.msra.mxu0 0.0
    %2625 = vmatprep.subr.mxu0 0.0
    %2626 = vmatpush2.msra.mxu0 0.0
    %2627 = vmatprep.subr.mxu0 0.0
    %2628 = vmatpush2.msra.mxu0 0.0
    %2629 = vmatprep.subr.mxu0 0.0
    %2630 = vmatpush2.msra.mxu0 0.0
    %2631 = vmatprep.subr.mxu0 0.0
    %2632 = vmatpush2.msra.mxu0 0.0
    %2633 = vmatprep.subr.mxu0 0.0
    %2634 = vmatpush2.msra.mxu0 0.0
    %2635 = vmatprep.subr.mxu0 0.0
    %2636 = vmatpush2.msra.mxu0 0.0
    %2637 = vmatprep.subr.mxu0 0.0
    %2638 = vmatpush2.msra.mxu0 0.0
    %2639 = vmatprep.subr.mxu0 0.0
    %2640 = vmatpush2.msra.mxu0 0.0
    %2641 = vmatprep.subr.mxu0 0.0
    %2642 = vmatpush2.msra.mxu0 0.0
    %2643 = vmatprep.subr.mxu0 0.0
    %2644 = vmatpush2.msra.mxu0 0.0
    %2645 = vmatprep.subr.mxu0 0.0
    %2646 = vmatpush2.msra.mxu0 0.0
    %2647 = vmatprep.subr.mxu0 0.0
    %2648 = vmatpush2.msra.mxu0 0.0
    %2649 = vmatprep.subr.mxu0 0.0
    %2650 = vmatpush2.msra.mxu0 0.0
    %2651 = vmatprep.mubr.f32.mxu0 0.0
    %2652 = vmatmul.mubr.f32.gmra.mxu0 %v2581
    %v2653 = vpop.f32.mrf.mxu0
    %v2654 = vadd.f32 0.0, %v2653
    %v2655 = vpop.f32.mrf.mxu0
    %v2656 = vadd.f32 0.0, %v2655
    %2657 = vdwg.mxu0
    %2658 = vmatprep.subr.mxu0 0.0
    %2659 = vmatpush1.msra.mxu0 %v2577
    %2660 = vmatprep.subr.mxu0 0.0
    %2661 = vmatpush1.msra.mxu0 %v2574
    %2662 = vmatprep.subr.mxu0 0.0
    %2663 = vmatpush1.msra.mxu0 %v2571
    %2664 = vmatprep.subr.mxu0 0.0
    %2665 = vmatpush1.msra.mxu0 %v2568
    %2666 = vmatprep.subr.mxu0 0.0
    %2667 = vmatpush1.msra.mxu0 %v2565
    %2668 = vmatprep.subr.mxu0 0.0
    %2669 = vmatpush1.msra.mxu0 %v2562
    %2670 = vmatprep.subr.mxu0 0.0
    %2671 = vmatpush1.msra.mxu0 %v2559
    %2672 = vmatprep.subr.mxu0 0.0
    %2673 = vmatpush1.msra.mxu0 %v2556
    %2674 = vmatprep.subr.mxu0 0.0
    %2675 = vmatpush1.msra.mxu0 %v2553
    %2676 = vmatprep.subr.mxu0 0.0
    %2677 = vmatpush1.msra.mxu0 %v2550
    %2678 = vmatprep.subr.mxu0 0.0
    %2679 = vmatpush1.msra.mxu0 %v2547
    %2680 = vmatprep.subr.mxu0 0.0
    %2681 = vmatpush1.msra.mxu0 %v2544
    %2682 = vmatprep.subr.mxu0 0.0
    %2683 = vmatpush1.msra.mxu0 %v2541
    %2684 = vmatprep.subr.mxu0 0.0
    %2685 = vmatpush1.msra.mxu0 %v2538
    %2686 = vmatprep.subr.mxu0 0.0
    %2687 = vmatpush1.msra.mxu0 %v2535
    %2688 = vmatprep.subr.mxu0 0.0
    %2689 = vmatpush1.msra.mxu0 %v2532
    %2690 = vmatprep.subr.mxu0 0.0
    %2691 = vmatpush2.msra.mxu0 0.0
    %2692 = vmatprep.subr.mxu0 0.0
    %2693 = vmatpush2.msra.mxu0 0.0
    %2694 = vmatprep.subr.mxu0 0.0
    %2695 = vmatpush2.msra.mxu0 0.0
    %2696 = vmatprep.subr.mxu0 0.0
    %2697 = vmatpush2.msra.mxu0 0.0
    %2698 = vmatprep.subr.mxu0 0.0
    %2699 = vmatpush2.msra.mxu0 0.0
    %2700 = vmatprep.subr.mxu0 0.0
    %2701 = vmatpush2.msra.mxu0 0.0
    %2702 = vmatprep.subr.mxu0 0.0
    %2703 = vmatpush2.msra.mxu0 0.0
    %2704 = vmatprep.subr.mxu0 0.0
    %2705 = vmatpush2.msra.mxu0 0.0
    %2706 = vmatprep.subr.mxu0 0.0
    %2707 = vmatpush2.msra.mxu0 0.0
    %2708 = vmatprep.subr.mxu0 0.0
    %2709 = vmatpush2.msra.mxu0 0.0
    %2710 = vmatprep.subr.mxu0 0.0
    %2711 = vmatpush2.msra.mxu0 0.0
    %2712 = vmatprep.subr.mxu0 0.0
    %2713 = vmatpush2.msra.mxu0 0.0
    %2714 = vmatprep.subr.mxu0 0.0
    %2715 = vmatpush2.msra.mxu0 0.0
    %2716 = vmatprep.subr.mxu0 0.0
    %2717 = vmatpush2.msra.mxu0 0.0
    %2718 = vmatprep.subr.mxu0 0.0
    %2719 = vmatpush2.msra.mxu0 0.0
    %2720 = vmatprep.subr.mxu0 0.0
    %2721 = vmatpush2.msra.mxu0 0.0
    %2722 = vmatprep.mubr.f32.mxu0 0.0
    %2723 = vmatmul.mubr.f32.gmra.mxu0 %v2581
    %v2724 = vpop.f32.mrf.mxu0
    %v2725 = vadd.f32 0.0, %v2724
    %v2726 = vpop.f32.mrf.mxu0
    %2727 = vdwg.mxu0
    %v2728 = vadd.f32 %v2584, %v2654
    %v2729 = vxor.u32 %v2728, 2147483648
    %v2730 = vmul.f32 %v2729, 1.442695
    %v2731 = vpow.pop %v2730
    %v2732 = vadd.f32 %v2731, 1.0
    %v2733 = vrcp.pop %v2732
    %v2734 = vmul.f32 1.0, %v2733
    %v2735 = vadd.f32 %v2585, %v2656
    %v2736 = vxor.u32 %v2735, 2147483648
    %v2737 = vmul.f32 %v2736, 1.442695
    %v2738 = vpow.pop %v2737
    %v2739 = vadd.f32 %v2738, 1.0
    %v2740 = vrcp.pop %v2739
    %v2741 = vmul.f32 1.0, %v2740
    %v2743 = vlaneseq
    %v2744 = vshrl.u32 %v2743, 7
    %v2745 = vsub.s32 0, %v2744
    %v2746 = vrot.slane %v2579, %v2745
    %v2748 = vadd.f32 %v2725, %v2746
    %v2749 = vmul.f32 %v2734, %v2748
    %v2750 = vadd.f32 %v2586, %v2749
    %v2751 = vtanh.pop %v2750
    %v2752 = vsub.f32 1.0, %v2741
    %v2753 = vmul.f32 %v2752, %v2751
    %v2754 = vmul.f32 %v2741, %v2581
    %v2755 = vadd.f32 %v2753, %v2754
    %v2756 = vsel %vm809, %v2755, 0.0
    %2757 = vst [vmem:[#allocation13] sm:$0xff] %v2756
    %v2758 = vsel %vm809, %v2755, %v2581
    %v2759 = vld [vmem:[%s813] sm:$0xff]
    %v2760 = vld [vmem:[%s813 + $0x8] sm:$0xf]
    %v2761 = vunpack.c.l.bf16 %v2759
    %v2762 = vunpack.c.h.bf16 %v2759
    %v2763 = vunpack.c.l.bf16 %v2760
    %2764 = vmatprep.subr.mxu0 %v2576
    %2765 = vmatpush1.msra.mxu0 %v2575
    %2766 = vmatprep.subr.mxu0 %v2573
    %2767 = vmatpush1.msra.mxu0 %v2572
    %2768 = vmatprep.subr.mxu0 %v2570
    %2769 = vmatpush1.msra.mxu0 %v2569
    %2770 = vmatprep.subr.mxu0 %v2567
    %2771 = vmatpush1.msra.mxu0 %v2566
    %2772 = vmatprep.subr.mxu0 %v2564
    %2773 = vmatpush1.msra.mxu0 %v2563
    %2774 = vmatprep.subr.mxu0 %v2561
    %2775 = vmatpush1.msra.mxu0 %v2560
    %2776 = vmatprep.subr.mxu0 %v2558
    %2777 = vmatpush1.msra.mxu0 %v2557
    %2778 = vmatprep.subr.mxu0 %v2555
    %2779 = vmatpush1.msra.mxu0 %v2554
    %2780 = vmatprep.subr.mxu0 %v2552
    %2781 = vmatpush1.msra.mxu0 %v2551
    %2782 = vmatprep.subr.mxu0 %v2549
    %2783 = vmatpush1.msra.mxu0 %v2548
    %2784 = vmatprep.subr.mxu0 %v2546
    %2785 = vmatpush1.msra.mxu0 %v2545
    %2786 = vmatprep.subr.mxu0 %v2543
    %2787 = vmatpush1.msra.mxu0 %v2542
    %2788 = vmatprep.subr.mxu0 %v2540
    %2789 = vmatpush1.msra.mxu0 %v2539
    %2790 = vmatprep.subr.mxu0 %v2537
    %2791 = vmatpush1.msra.mxu0 %v2536
    %2792 = vmatprep.subr.mxu0 %v2534
    %2793 = vmatpush1.msra.mxu0 %v2533
    %2794 = vmatprep.subr.mxu0 %v2531
    %2795 = vmatpush1.msra.mxu0 %v2530
    %2796 = vmatprep.subr.mxu0 0.0
    %2797 = vmatpush2.msra.mxu0 0.0
    %2798 = vmatprep.subr.mxu0 0.0
    %2799 = vmatpush2.msra.mxu0 0.0
    %2800 = vmatprep.subr.mxu0 0.0
    %2801 = vmatpush2.msra.mxu0 0.0
    %2802 = vmatprep.subr.mxu0 0.0
    %2803 = vmatpush2.msra.mxu0 0.0
    %2804 = vmatprep.subr.mxu0 0.0
    %2805 = vmatpush2.msra.mxu0 0.0
    %2806 = vmatprep.subr.mxu0 0.0
    %2807 = vmatpush2.msra.mxu0 0.0
    %2808 = vmatprep.subr.mxu0 0.0
    %2809 = vmatpush2.msra.mxu0 0.0
    %2810 = vmatprep.subr.mxu0 0.0
    %2811 = vmatpush2.msra.mxu0 0.0
    %2812 = vmatprep.subr.mxu0 0.0
    %2813 = vmatpush2.msra.mxu0 0.0
    %2814 = vmatprep.subr.mxu0 0.0
    %2815 = vmatpush2.msra.mxu0 0.0
    %2816 = vmatprep.subr.mxu0 0.0
    %2817 = vmatpush2.msra.mxu0 0.0
    %2818 = vmatprep.subr.mxu0 0.0
    %2819 = vmatpush2.msra.mxu0 0.0
    %2820 = vmatprep.subr.mxu0 0.0
    %2821 = vmatpush2.msra.mxu0 0.0
    %2822 = vmatprep.subr.mxu0 0.0
    %2823 = vmatpush2.msra.mxu0 0.0
    %2824 = vmatprep.subr.mxu0 0.0
    %2825 = vmatpush2.msra.mxu0 0.0
    %2826 = vmatprep.subr.mxu0 0.0
    %2827 = vmatpush2.msra.mxu0 0.0
    %2828 = vmatprep.mubr.f32.mxu0 0.0
    %2829 = vmatmul.mubr.f32.gmra.mxu0 %v2758
    %v2830 = vpop.f32.mrf.mxu0
    %v2831 = vadd.f32 0.0, %v2830
    %v2832 = vpop.f32.mrf.mxu0
    %v2833 = vadd.f32 0.0, %v2832
    %2834 = vdwg.mxu0
    %2835 = vmatprep.subr.mxu0 0.0
    %2836 = vmatpush1.msra.mxu0 %v2577
    %2837 = vmatprep.subr.mxu0 0.0
    %2838 = vmatpush1.msra.mxu0 %v2574
    %2839 = vmatprep.subr.mxu0 0.0
    %2840 = vmatpush1.msra.mxu0 %v2571
    %2841 = vmatprep.subr.mxu0 0.0
    %2842 = vmatpush1.msra.mxu0 %v2568
    %2843 = vmatprep.subr.mxu0 0.0
    %2844 = vmatpush1.msra.mxu0 %v2565
    %2845 = vmatprep.subr.mxu0 0.0
    %2846 = vmatpush1.msra.mxu0 %v2562
    %2847 = vmatprep.subr.mxu0 0.0
    %2848 = vmatpush1.msra.mxu0 %v2559
    %2849 = vmatprep.subr.mxu0 0.0
    %2850 = vmatpush1.msra.mxu0 %v2556
    %2851 = vmatprep.subr.mxu0 0.0
    %2852 = vmatpush1.msra.mxu0 %v2553
    %2853 = vmatprep.subr.mxu0 0.0
    %2854 = vmatpush1.msra.mxu0 %v2550
    %2855 = vmatprep.subr.mxu0 0.0
    %2856 = vmatpush1.msra.mxu0 %v2547
    %2857 = vmatprep.subr.mxu0 0.0
    %2858 = vmatpush1.msra.mxu0 %v2544
    %2859 = vmatprep.subr.mxu0 0.0
    %2860 = vmatpush1.msra.mxu0 %v2541
    %2861 = vmatprep.subr.mxu0 0.0
    %2862 = vmatpush1.msra.mxu0 %v2538
    %2863 = vmatprep.subr.mxu0 0.0
    %2864 = vmatpush1.msra.mxu0 %v2535
    %2865 = vmatprep.subr.mxu0 0.0
    %2866 = vmatpush1.msra.mxu0 %v2532
    %2867 = vmatprep.subr.mxu0 0.0
    %2868 = vmatpush2.msra.mxu0 0.0
    %2869 = vmatprep.subr.mxu0 0.0
    %2870 = vmatpush2.msra.mxu0 0.0
    %2871 = vmatprep.subr.mxu0 0.0
    %2872 = vmatpush2.msra.mxu0 0.0
    %2873 = vmatprep.subr.mxu0 0.0
    %2874 = vmatpush2.msra.mxu0 0.0
    %2875 = vmatprep.subr.mxu0 0.0
    %2876 = vmatpush2.msra.mxu0 0.0
    %2877 = vmatprep.subr.mxu0 0.0
    %2878 = vmatpush2.msra.mxu0 0.0
    %2879 = vmatprep.subr.mxu0 0.0
    %2880 = vmatpush2.msra.mxu0 0.0
    %2881 = vmatprep.subr.mxu0 0.0
    %2882 = vmatpush2.msra.mxu0 0.0
    %2883 = vmatprep.subr.mxu0 0.0
    %2884 = vmatpush2.msra.mxu0 0.0
    %2885 = vmatprep.subr.mxu0 0.0
    %2886 = vmatpush2.msra.mxu0 0.0
    %2887 = vmatprep.subr.mxu0 0.0
    %2888 = vmatpush2.msra.mxu0 0.0
    %2889 = vmatprep.subr.mxu0 0.0
    %2890 = vmatpush2.msra.mxu0 0.0
    %2891 = vmatprep.subr.mxu0 0.0
    %2892 = vmatpush2.msra.mxu0 0.0
    %2893 = vmatprep.subr.mxu0 0.0
    %2894 = vmatpush2.msra.mxu0 0.0
    %2895 = vmatprep.subr.mxu0 0.0
    %2896 = vmatpush2.msra.mxu0 0.0
    %2897 = vmatprep.subr.mxu0 0.0
    %2898 = vmatpush2.msra.mxu0 0.0
    %2899 = vmatprep.mubr.f32.mxu0 0.0
    %2900 = vmatmul.mubr.f32.gmra.mxu0 %v2758
    %v2901 = vpop.f32.mrf.mxu0
    %v2902 = vadd.f32 0.0, %v2901
    %v2903 = vpop.f32.mrf.mxu0
    %2904 = vdwg.mxu0
    %v2905 = vadd.f32 %v2761, %v2831
    %v2906 = vxor.u32 %v2905, 2147483648
    %v2907 = vmul.f32 %v2906, 1.442695
    %v2908 = vpow.pop %v2907
    %v2909 = vadd.f32 %v2908, 1.0
    %v2910 = vrcp.pop %v2909
    %v2911 = vmul.f32 1.0, %v2910
    %v2912 = vadd.f32 %v2762, %v2833
    %v2913 = vxor.u32 %v2912, 2147483648
    %v2914 = vmul.f32 %v2913, 1.442695
    %v2915 = vpow.pop %v2914
    %v2916 = vadd.f32 %v2915, 1.0
    %v2917 = vrcp.pop %v2916
    %v2918 = vmul.f32 1.0, %v2917
    %v2919 = vadd.f32 %v2902, %v2746
    %v2920 = vmul.f32 %v2911, %v2919
    %v2921 = vadd.f32 %v2763, %v2920
    %v2922 = vtanh.pop %v2921
    %v2923 = vsub.f32 1.0, %v2918
    %v2924 = vmul.f32 %v2923, %v2922
    %v2925 = vmul.f32 %v2918, %v2758
    %v2926 = vadd.f32 %v2924, %v2925
    %v2927 = vsel %vm989, %v2926, 0.0
    %s2928 = scalar_lea.vmem [#allocation13], 8
    %2929 = vst [vmem:[%s2928] sm:$0xff] %v2927
    %v2930 = vsel %vm989, %v2926, %v2758
    %v2931 = vld [vmem:[%s994] sm:$0xff]
    %v2932 = vld [vmem:[%s994 + $0x8] sm:$0xf]
    %v2933 = vunpack.c.l.bf16 %v2931
    %v2934 = vunpack.c.h.bf16 %v2931
    %v2935 = vunpack.c.l.bf16 %v2932
    %2936 = vmatprep.subr.mxu0 %v2576
    %2937 = vmatpush1.msra.mxu0 %v2575
    %2938 = vmatprep.subr.mxu0 %v2573
    %2939 = vmatpush1.msra.mxu0 %v2572
    %2940 = vmatprep.subr.mxu0 %v2570
    %2941 = vmatpush1.msra.mxu0 %v2569
    %2942 = vmatprep.subr.mxu0 %v2567
    %2943 = vmatpush1.msra.mxu0 %v2566
    %2944 = vmatprep.subr.mxu0 %v2564
    %2945 = vmatpush1.msra.mxu0 %v2563
    %2946 = vmatprep.subr.mxu0 %v2561
    %2947 = vmatpush1.msra.mxu0 %v2560
    %2948 = vmatprep.subr.mxu0 %v2558
    %2949 = vmatpush1.msra.mxu0 %v2557
    %2950 = vmatprep.subr.mxu0 %v2555
    %2951 = vmatpush1.msra.mxu0 %v2554
    %2952 = vmatprep.subr.mxu0 %v2552
    %2953 = vmatpush1.msra.mxu0 %v2551
    %2954 = vmatprep.subr.mxu0 %v2549
    %2955 = vmatpush1.msra.mxu0 %v2548
    %2956 = vmatprep.subr.mxu0 %v2546
    %2957 = vmatpush1.msra.mxu0 %v2545
    %2958 = vmatprep.subr.mxu0 %v2543
    %2959 = vmatpush1.msra.mxu0 %v2542
    %2960 = vmatprep.subr.mxu0 %v2540
    %2961 = vmatpush1.msra.mxu0 %v2539
    %2962 = vmatprep.subr.mxu0 %v2537
    %2963 = vmatpush1.msra.mxu0 %v2536
    %2964 = vmatprep.subr.mxu0 %v2534
    %2965 = vmatpush1.msra.mxu0 %v2533
    %2966 = vmatprep.subr.mxu0 %v2531
    %2967 = vmatpush1.msra.mxu0 %v2530
    %2968 = vmatprep.subr.mxu0 0.0
    %2969 = vmatpush2.msra.mxu0 0.0
    %2970 = vmatprep.subr.mxu0 0.0
    %2971 = vmatpush2.msra.mxu0 0.0
    %2972 = vmatprep.subr.mxu0 0.0
    %2973 = vmatpush2.msra.mxu0 0.0
    %2974 = vmatprep.subr.mxu0 0.0
    %2975 = vmatpush2.msra.mxu0 0.0
    %2976 = vmatprep.subr.mxu0 0.0
    %2977 = vmatpush2.msra.mxu0 0.0
    %2978 = vmatprep.subr.mxu0 0.0
    %2979 = vmatpush2.msra.mxu0 0.0
    %2980 = vmatprep.subr.mxu0 0.0
    %2981 = vmatpush2.msra.mxu0 0.0
    %2982 = vmatprep.subr.mxu0 0.0
    %2983 = vmatpush2.msra.mxu0 0.0
    %2984 = vmatprep.subr.mxu0 0.0
    %2985 = vmatpush2.msra.mxu0 0.0
    %2986 = vmatprep.subr.mxu0 0.0
    %2987 = vmatpush2.msra.mxu0 0.0
    %2988 = vmatprep.subr.mxu0 0.0
    %2989 = vmatpush2.msra.mxu0 0.0
    %2990 = vmatprep.subr.mxu0 0.0
    %2991 = vmatpush2.msra.mxu0 0.0
    %2992 = vmatprep.subr.mxu0 0.0
    %2993 = vmatpush2.msra.mxu0 0.0
    %2994 = vmatprep.subr.mxu0 0.0
    %2995 = vmatpush2.msra.mxu0 0.0
    %2996 = vmatprep.subr.mxu0 0.0
    %2997 = vmatpush2.msra.mxu0 0.0
    %2998 = vmatprep.subr.mxu0 0.0
    %2999 = vmatpush2.msra.mxu0 0.0
    %3000 = vmatprep.mubr.f32.mxu0 0.0
    %3001 = vmatmul.mubr.f32.gmra.mxu0 %v2930
    %v3002 = vpop.f32.mrf.mxu0
    %v3003 = vadd.f32 0.0, %v3002
    %v3004 = vpop.f32.mrf.mxu0
    %v3005 = vadd.f32 0.0, %v3004
    %3006 = vdwg.mxu0
    %3007 = vmatprep.subr.mxu0 0.0
    %3008 = vmatpush1.msra.mxu0 %v2577
    %3009 = vmatprep.subr.mxu0 0.0
    %3010 = vmatpush1.msra.mxu0 %v2574
    %3011 = vmatprep.subr.mxu0 0.0
    %3012 = vmatpush1.msra.mxu0 %v2571
    %3013 = vmatprep.subr.mxu0 0.0
    %3014 = vmatpush1.msra.mxu0 %v2568
    %3015 = vmatprep.subr.mxu0 0.0
    %3016 = vmatpush1.msra.mxu0 %v2565
    %3017 = vmatprep.subr.mxu0 0.0
    %3018 = vmatpush1.msra.mxu0 %v2562
    %3019 = vmatprep.subr.mxu0 0.0
    %3020 = vmatpush1.msra.mxu0 %v2559
    %3021 = vmatprep.subr.mxu0 0.0
    %3022 = vmatpush1.msra.mxu0 %v2556
    %3023 = vmatprep.subr.mxu0 0.0
    %3024 = vmatpush1.msra.mxu0 %v2553
    %3025 = vmatprep.subr.mxu0 0.0
    %3026 = vmatpush1.msra.mxu0 %v2550
    %3027 = vmatprep.subr.mxu0 0.0
    %3028 = vmatpush1.msra.mxu0 %v2547
    %3029 = vmatprep.subr.mxu0 0.0
    %3030 = vmatpush1.msra.mxu0 %v2544
    %3031 = vmatprep.subr.mxu0 0.0
    %3032 = vmatpush1.msra.mxu0 %v2541
    %3033 = vmatprep.subr.mxu0 0.0
    %3034 = vmatpush1.msra.mxu0 %v2538
    %3035 = vmatprep.subr.mxu0 0.0
    %3036 = vmatpush1.msra.mxu0 %v2535
    %3037 = vmatprep.subr.mxu0 0.0
    %3038 = vmatpush1.msra.mxu0 %v2532
    %3039 = vmatprep.subr.mxu0 0.0
    %3040 = vmatpush2.msra.mxu0 0.0
    %3041 = vmatprep.subr.mxu0 0.0
    %3042 = vmatpush2.msra.mxu0 0.0
    %3043 = vmatprep.subr.mxu0 0.0
    %3044 = vmatpush2.msra.mxu0 0.0
    %3045 = vmatprep.subr.mxu0 0.0
    %3046 = vmatpush2.msra.mxu0 0.0
    %3047 = vmatprep.subr.mxu0 0.0
    %3048 = vmatpush2.msra.mxu0 0.0
    %3049 = vmatprep.subr.mxu0 0.0
    %3050 = vmatpush2.msra.mxu0 0.0
    %3051 = vmatprep.subr.mxu0 0.0
    %3052 = vmatpush2.msra.mxu0 0.0
    %3053 = vmatprep.subr.mxu0 0.0
    %3054 = vmatpush2.msra.mxu0 0.0
    %3055 = vmatprep.subr.mxu0 0.0
    %3056 = vmatpush2.msra.mxu0 0.0
    %3057 = vmatprep.subr.mxu0 0.0
    %3058 = vmatpush2.msra.mxu0 0.0
    %3059 = vmatprep.subr.mxu0 0.0
    %3060 = vmatpush2.msra.mxu0 0.0
    %3061 = vmatprep.subr.mxu0 0.0
    %3062 = vmatpush2.msra.mxu0 0.0
    %3063 = vmatprep.subr.mxu0 0.0
    %3064 = vmatpush2.msra.mxu0 0.0
    %3065 = vmatprep.subr.mxu0 0.0
    %3066 = vmatpush2.msra.mxu0 0.0
    %3067 = vmatprep.subr.mxu0 0.0
    %3068 = vmatpush2.msra.mxu0 0.0
    %3069 = vmatprep.subr.mxu0 0.0
    %3070 = vmatpush2.msra.mxu0 0.0
    %3071 = vmatprep.mubr.f32.mxu0 0.0
    %3072 = vmatmul.mubr.f32.gmra.mxu0 %v2930
    %v3073 = vpop.f32.mrf.mxu0
    %v3074 = vadd.f32 0.0, %v3073
    %v3075 = vpop.f32.mrf.mxu0
    %3076 = vdwg.mxu0
    %v3077 = vadd.f32 %v2933, %v3003
    %v3078 = vxor.u32 %v3077, 2147483648
    %v3079 = vmul.f32 %v3078, 1.442695
    %v3080 = vpow.pop %v3079
    %v3081 = vadd.f32 %v3080, 1.0
    %v3082 = vrcp.pop %v3081
    %v3083 = vmul.f32 1.0, %v3082
    %v3084 = vadd.f32 %v2934, %v3005
    %v3085 = vxor.u32 %v3084, 2147483648
    %v3086 = vmul.f32 %v3085, 1.442695
    %v3087 = vpow.pop %v3086
    %v3088 = vadd.f32 %v3087, 1.0
    %v3089 = vrcp.pop %v3088
    %v3090 = vmul.f32 1.0, %v3089
    %v3091 = vadd.f32 %v3074, %v2746
    %v3092 = vmul.f32 %v3083, %v3091
    %v3093 = vadd.f32 %v2935, %v3092
    %v3094 = vtanh.pop %v3093
    %v3095 = vsub.f32 1.0, %v3090
    %v3096 = vmul.f32 %v3095, %v3094
    %v3097 = vmul.f32 %v3090, %v2930
    %v3098 = vadd.f32 %v3096, %v3097
    %v3099 = vsel %vm1170, %v3098, 0.0
    %s3100 = scalar_lea.vmem [#allocation13], 16
    %3101 = vst [vmem:[%s3100] sm:$0xff] %v3099
    %v3102 = vsel %vm1170, %v3098, %v2930
    %v3103 = vld [vmem:[%s1175] sm:$0xff]
    %v3104 = vld [vmem:[%s1175 + $0x8] sm:$0xf]
    %v3105 = vunpack.c.l.bf16 %v3103
    %v3106 = vunpack.c.h.bf16 %v3103
    %v3107 = vunpack.c.l.bf16 %v3104
    %3108 = vmatprep.subr.mxu0 %v2576
    %3109 = vmatpush1.msra.mxu0 %v2575
    %3110 = vmatprep.subr.mxu0 %v2573
    %3111 = vmatpush1.msra.mxu0 %v2572
    %3112 = vmatprep.subr.mxu0 %v2570
    %3113 = vmatpush1.msra.mxu0 %v2569
    %3114 = vmatprep.subr.mxu0 %v2567
    %3115 = vmatpush1.msra.mxu0 %v2566
    %3116 = vmatprep.subr.mxu0 %v2564
    %3117 = vmatpush1.msra.mxu0 %v2563
    %3118 = vmatprep.subr.mxu0 %v2561
    %3119 = vmatpush1.msra.mxu0 %v2560
    %3120 = vmatprep.subr.mxu0 %v2558
    %3121 = vmatpush1.msra.mxu0 %v2557
    %3122 = vmatprep.subr.mxu0 %v2555
    %3123 = vmatpush1.msra.mxu0 %v2554
    %3124 = vmatprep.subr.mxu0 %v2552
    %3125 = vmatpush1.msra.mxu0 %v2551
    %3126 = vmatprep.subr.mxu0 %v2549
    %3127 = vmatpush1.msra.mxu0 %v2548
    %3128 = vmatprep.subr.mxu0 %v2546
    %3129 = vmatpush1.msra.mxu0 %v2545
    %3130 = vmatprep.subr.mxu0 %v2543
    %3131 = vmatpush1.msra.mxu0 %v2542
    %3132 = vmatprep.subr.mxu0 %v2540
    %3133 = vmatpush1.msra.mxu0 %v2539
    %3134 = vmatprep.subr.mxu0 %v2537
    %3135 = vmatpush1.msra.mxu0 %v2536
    %3136 = vmatprep.subr.mxu0 %v2534
    %3137 = vmatpush1.msra.mxu0 %v2533
    %3138 = vmatprep.subr.mxu0 %v2531
    %3139 = vmatpush1.msra.mxu0 %v2530
    %3140 = vmatprep.subr.mxu0 0.0
    %3141 = vmatpush2.msra.mxu0 0.0
    %3142 = vmatprep.subr.mxu0 0.0
    %3143 = vmatpush2.msra.mxu0 0.0
    %3144 = vmatprep.subr.mxu0 0.0
    %3145 = vmatpush2.msra.mxu0 0.0
    %3146 = vmatprep.subr.mxu0 0.0
    %3147 = vmatpush2.msra.mxu0 0.0
    %3148 = vmatprep.subr.mxu0 0.0
    %3149 = vmatpush2.msra.mxu0 0.0
    %3150 = vmatprep.subr.mxu0 0.0
    %3151 = vmatpush2.msra.mxu0 0.0
    %3152 = vmatprep.subr.mxu0 0.0
    %3153 = vmatpush2.msra.mxu0 0.0
    %3154 = vmatprep.subr.mxu0 0.0
    %3155 = vmatpush2.msra.mxu0 0.0
    %3156 = vmatprep.subr.mxu0 0.0
    %3157 = vmatpush2.msra.mxu0 0.0
    %3158 = vmatprep.subr.mxu0 0.0
    %3159 = vmatpush2.msra.mxu0 0.0
    %3160 = vmatprep.subr.mxu0 0.0
    %3161 = vmatpush2.msra.mxu0 0.0
    %3162 = vmatprep.subr.mxu0 0.0
    %3163 = vmatpush2.msra.mxu0 0.0
    %3164 = vmatprep.subr.mxu0 0.0
    %3165 = vmatpush2.msra.mxu0 0.0
    %3166 = vmatprep.subr.mxu0 0.0
    %3167 = vmatpush2.msra.mxu0 0.0
    %3168 = vmatprep.subr.mxu0 0.0
    %3169 = vmatpush2.msra.mxu0 0.0
    %3170 = vmatprep.subr.mxu0 0.0
    %3171 = vmatpush2.msra.mxu0 0.0
    %3172 = vmatprep.mubr.f32.mxu0 0.0
    %3173 = vmatmul.mubr.f32.gmra.mxu0 %v3102
    %v3174 = vpop.f32.mrf.mxu0
    %v3175 = vadd.f32 0.0, %v3174
    %v3176 = vpop.f32.mrf.mxu0
    %v3177 = vadd.f32 0.0, %v3176
    %3178 = vdwg.mxu0
    %3179 = vmatprep.subr.mxu0 0.0
    %3180 = vmatpush1.msra.mxu0 %v2577
    %3181 = vmatprep.subr.mxu0 0.0
    %3182 = vmatpush1.msra.mxu0 %v2574
    %3183 = vmatprep.subr.mxu0 0.0
    %3184 = vmatpush1.msra.mxu0 %v2571
    %3185 = vmatprep.subr.mxu0 0.0
    %3186 = vmatpush1.msra.mxu0 %v2568
    %3187 = vmatprep.subr.mxu0 0.0
    %3188 = vmatpush1.msra.mxu0 %v2565
    %3189 = vmatprep.subr.mxu0 0.0
    %3190 = vmatpush1.msra.mxu0 %v2562
    %3191 = vmatprep.subr.mxu0 0.0
    %3192 = vmatpush1.msra.mxu0 %v2559
    %3193 = vmatprep.subr.mxu0 0.0
    %3194 = vmatpush1.msra.mxu0 %v2556
    %3195 = vmatprep.subr.mxu0 0.0
    %3196 = vmatpush1.msra.mxu0 %v2553
    %3197 = vmatprep.subr.mxu0 0.0
    %3198 = vmatpush1.msra.mxu0 %v2550
    %3199 = vmatprep.subr.mxu0 0.0
    %3200 = vmatpush1.msra.mxu0 %v2547
    %3201 = vmatprep.subr.mxu0 0.0
    %3202 = vmatpush1.msra.mxu0 %v2544
    %3203 = vmatprep.subr.mxu0 0.0
    %3204 = vmatpush1.msra.mxu0 %v2541
    %3205 = vmatprep.subr.mxu0 0.0
    %3206 = vmatpush1.msra.mxu0 %v2538
    %3207 = vmatprep.subr.mxu0 0.0
    %3208 = vmatpush1.msra.mxu0 %v2535
    %3209 = vmatprep.subr.mxu0 0.0
    %3210 = vmatpush1.msra.mxu0 %v2532
    %3211 = vmatprep.subr.mxu0 0.0
    %3212 = vmatpush2.msra.mxu0 0.0
    %3213 = vmatprep.subr.mxu0 0.0
    %3214 = vmatpush2.msra.mxu0 0.0
    %3215 = vmatprep.subr.mxu0 0.0
    %3216 = vmatpush2.msra.mxu0 0.0
    %3217 = vmatprep.subr.mxu0 0.0
    %3218 = vmatpush2.msra.mxu0 0.0
    %3219 = vmatprep.subr.mxu0 0.0
    %3220 = vmatpush2.msra.mxu0 0.0
    %3221 = vmatprep.subr.mxu0 0.0
    %3222 = vmatpush2.msra.mxu0 0.0
    %3223 = vmatprep.subr.mxu0 0.0
    %3224 = vmatpush2.msra.mxu0 0.0
    %3225 = vmatprep.subr.mxu0 0.0
    %3226 = vmatpush2.msra.mxu0 0.0
    %3227 = vmatprep.subr.mxu0 0.0
    %3228 = vmatpush2.msra.mxu0 0.0
    %3229 = vmatprep.subr.mxu0 0.0
    %3230 = vmatpush2.msra.mxu0 0.0
    %3231 = vmatprep.subr.mxu0 0.0
    %3232 = vmatpush2.msra.mxu0 0.0
    %3233 = vmatprep.subr.mxu0 0.0
    %3234 = vmatpush2.msra.mxu0 0.0
    %3235 = vmatprep.subr.mxu0 0.0
    %3236 = vmatpush2.msra.mxu0 0.0
    %3237 = vmatprep.subr.mxu0 0.0
    %3238 = vmatpush2.msra.mxu0 0.0
    %3239 = vmatprep.subr.mxu0 0.0
    %3240 = vmatpush2.msra.mxu0 0.0
    %3241 = vmatprep.subr.mxu0 0.0
    %3242 = vmatpush2.msra.mxu0 0.0
    %3243 = vmatprep.mubr.f32.mxu0 0.0
    %3244 = vmatmul.mubr.f32.gmra.mxu0 %v3102
    %v3245 = vpop.f32.mrf.mxu0
    %v3246 = vadd.f32 0.0, %v3245
    %v3247 = vpop.f32.mrf.mxu0
    %3248 = vdwg.mxu0
    %v3249 = vadd.f32 %v3105, %v3175
    %v3250 = vxor.u32 %v3249, 2147483648
    %v3251 = vmul.f32 %v3250, 1.442695
    %v3252 = vpow.pop %v3251
    %v3253 = vadd.f32 %v3252, 1.0
    %v3254 = vrcp.pop %v3253
    %v3255 = vmul.f32 1.0, %v3254
    %v3256 = vadd.f32 %v3106, %v3177
    %v3257 = vxor.u32 %v3256, 2147483648
    %v3258 = vmul.f32 %v3257, 1.442695
    %v3259 = vpow.pop %v3258
    %v3260 = vadd.f32 %v3259, 1.0
    %v3261 = vrcp.pop %v3260
    %v3262 = vmul.f32 1.0, %v3261
    %v3263 = vadd.f32 %v3246, %v2746
    %v3264 = vmul.f32 %v3255, %v3263
    %v3265 = vadd.f32 %v3107, %v3264
    %v3266 = vtanh.pop %v3265
    %v3267 = vsub.f32 1.0, %v3262
    %v3268 = vmul.f32 %v3267, %v3266
    %v3269 = vmul.f32 %v3262, %v3102
    %v3270 = vadd.f32 %v3268, %v3269
    %v3271 = vsel %vm1351, %v3270, 0.0
    %s3272 = scalar_lea.vmem [#allocation13], 24
    %3273 = vst [vmem:[%s3272] sm:$0xff] %v3271
    %v3274 = vsel %vm1351, %v3270, %v3102
    %v3275 = vld [vmem:[%s1356] sm:$0xff]
    %v3276 = vld [vmem:[%s1356 + $0x8] sm:$0xf]
    %v3277 = vunpack.c.l.bf16 %v3275
    %v3278 = vunpack.c.h.bf16 %v3275
    %v3279 = vunpack.c.l.bf16 %v3276
    %3280 = vmatprep.subr.mxu0 %v2576
    %3281 = vmatpush1.msra.mxu0 %v2575
    %3282 = vmatprep.subr.mxu0 %v2573
    %3283 = vmatpush1.msra.mxu0 %v2572
    %3284 = vmatprep.subr.mxu0 %v2570
    %3285 = vmatpush1.msra.mxu0 %v2569
    %3286 = vmatprep.subr.mxu0 %v2567
    %3287 = vmatpush1.msra.mxu0 %v2566
    %3288 = vmatprep.subr.mxu0 %v2564
    %3289 = vmatpush1.msra.mxu0 %v2563
    %3290 = vmatprep.subr.mxu0 %v2561
    %3291 = vmatpush1.msra.mxu0 %v2560
    %3292 = vmatprep.subr.mxu0 %v2558
    %3293 = vmatpush1.msra.mxu0 %v2557
    %3294 = vmatprep.subr.mxu0 %v2555
    %3295 = vmatpush1.msra.mxu0 %v2554
    %3296 = vmatprep.subr.mxu0 %v2552
    %3297 = vmatpush1.msra.mxu0 %v2551
    %3298 = vmatprep.subr.mxu0 %v2549
    %3299 = vmatpush1.msra.mxu0 %v2548
    %3300 = vmatprep.subr.mxu0 %v2546
    %3301 = vmatpush1.msra.mxu0 %v2545
    %3302 = vmatprep.subr.mxu0 %v2543
    %3303 = vmatpush1.msra.mxu0 %v2542
    %3304 = vmatprep.subr.mxu0 %v2540
    %3305 = vmatpush1.msra.mxu0 %v2539
    %3306 = vmatprep.subr.mxu0 %v2537
    %3307 = vmatpush1.msra.mxu0 %v2536
    %3308 = vmatprep.subr.mxu0 %v2534
    %3309 = vmatpush1.msra.mxu0 %v2533
    %3310 = vmatprep.subr.mxu0 %v2531
    %3311 = vmatpush1.msra.mxu0 %v2530
    %3312 = vmatprep.subr.mxu0 0.0
    %3313 = vmatpush2.msra.mxu0 0.0
    %3314 = vmatprep.subr.mxu0 0.0
    %3315 = vmatpush2.msra.mxu0 0.0
    %3316 = vmatprep.subr.mxu0 0.0
    %3317 = vmatpush2.msra.mxu0 0.0
    %3318 = vmatprep.subr.mxu0 0.0
    %3319 = vmatpush2.msra.mxu0 0.0
    %3320 = vmatprep.subr.mxu0 0.0
    %3321 = vmatpush2.msra.mxu0 0.0
    %3322 = vmatprep.subr.mxu0 0.0
    %3323 = vmatpush2.msra.mxu0 0.0
    %3324 = vmatprep.subr.mxu0 0.0
    %3325 = vmatpush2.msra.mxu0 0.0
    %3326 = vmatprep.subr.mxu0 0.0
    %3327 = vmatpush2.msra.mxu0 0.0
    %3328 = vmatprep.subr.mxu0 0.0
    %3329 = vmatpush2.msra.mxu0 0.0
    %3330 = vmatprep.subr.mxu0 0.0
    %3331 = vmatpush2.msra.mxu0 0.0
    %3332 = vmatprep.subr.mxu0 0.0
    %3333 = vmatpush2.msra.mxu0 0.0
    %3334 = vmatprep.subr.mxu0 0.0
    %3335 = vmatpush2.msra.mxu0 0.0
    %3336 = vmatprep.subr.mxu0 0.0
    %3337 = vmatpush2.msra.mxu0 0.0
    %3338 = vmatprep.subr.mxu0 0.0
    %3339 = vmatpush2.msra.mxu0 0.0
    %3340 = vmatprep.subr.mxu0 0.0
    %3341 = vmatpush2.msra.mxu0 0.0
    %3342 = vmatprep.subr.mxu0 0.0
    %3343 = vmatpush2.msra.mxu0 0.0
    %3344 = vmatprep.mubr.f32.mxu0 0.0
    %3345 = vmatmul.mubr.f32.gmra.mxu0 %v3274
    %v3346 = vpop.f32.mrf.mxu0
    %v3347 = vadd.f32 0.0, %v3346
    %v3348 = vpop.f32.mrf.mxu0
    %v3349 = vadd.f32 0.0, %v3348
    %3350 = vdwg.mxu0
    %3351 = vmatprep.subr.mxu0 0.0
    %3352 = vmatpush1.msra.mxu0 %v2577
    %3353 = vmatprep.subr.mxu0 0.0
    %3354 = vmatpush1.msra.mxu0 %v2574
    %3355 = vmatprep.subr.mxu0 0.0
    %3356 = vmatpush1.msra.mxu0 %v2571
    %3357 = vmatprep.subr.mxu0 0.0
    %3358 = vmatpush1.msra.mxu0 %v2568
    %3359 = vmatprep.subr.mxu0 0.0
    %3360 = vmatpush1.msra.mxu0 %v2565
    %3361 = vmatprep.subr.mxu0 0.0
    %3362 = vmatpush1.msra.mxu0 %v2562
    %3363 = vmatprep.subr.mxu0 0.0
    %3364 = vmatpush1.msra.mxu0 %v2559
    %3365 = vmatprep.subr.mxu0 0.0
    %3366 = vmatpush1.msra.mxu0 %v2556
    %3367 = vmatprep.subr.mxu0 0.0
    %3368 = vmatpush1.msra.mxu0 %v2553
    %3369 = vmatprep.subr.mxu0 0.0
    %3370 = vmatpush1.msra.mxu0 %v2550
    %3371 = vmatprep.subr.mxu0 0.0
    %3372 = vmatpush1.msra.mxu0 %v2547
    %3373 = vmatprep.subr.mxu0 0.0
    %3374 = vmatpush1.msra.mxu0 %v2544
    %3375 = vmatprep.subr.mxu0 0.0
    %3376 = vmatpush1.msra.mxu0 %v2541
    %3377 = vmatprep.subr.mxu0 0.0
    %3378 = vmatpush1.msra.mxu0 %v2538
    %3379 = vmatprep.subr.mxu0 0.0
    %3380 = vmatpush1.msra.mxu0 %v2535
    %3381 = vmatprep.subr.mxu0 0.0
    %3382 = vmatpush1.msra.mxu0 %v2532
    %3383 = vmatprep.subr.mxu0 0.0
    %3384 = vmatpush2.msra.mxu0 0.0
    %3385 = vmatprep.subr.mxu0 0.0
    %3386 = vmatpush2.msra.mxu0 0.0
    %3387 = vmatprep.subr.mxu0 0.0
    %3388 = vmatpush2.msra.mxu0 0.0
    %3389 = vmatprep.subr.mxu0 0.0
    %3390 = vmatpush2.msra.mxu0 0.0
    %3391 = vmatprep.subr.mxu0 0.0
    %3392 = vmatpush2.msra.mxu0 0.0
    %3393 = vmatprep.subr.mxu0 0.0
    %3394 = vmatpush2.msra.mxu0 0.0
    %3395 = vmatprep.subr.mxu0 0.0
    %3396 = vmatpush2.msra.mxu0 0.0
    %3397 = vmatprep.subr.mxu0 0.0
    %3398 = vmatpush2.msra.mxu0 0.0
    %3399 = vmatprep.subr.mxu0 0.0
    %3400 = vmatpush2.msra.mxu0 0.0
    %3401 = vmatprep.subr.mxu0 0.0
    %3402 = vmatpush2.msra.mxu0 0.0
    %3403 = vmatprep.subr.mxu0 0.0
    %3404 = vmatpush2.msra.mxu0 0.0
    %3405 = vmatprep.subr.mxu0 0.0
    %3406 = vmatpush2.msra.mxu0 0.0
    %3407 = vmatprep.subr.mxu0 0.0
    %3408 = vmatpush2.msra.mxu0 0.0
    %3409 = vmatprep.subr.mxu0 0.0
    %3410 = vmatpush2.msra.mxu0 0.0
    %3411 = vmatprep.subr.mxu0 0.0
    %3412 = vmatpush2.msra.mxu0 0.0
    %3413 = vmatprep.subr.mxu0 0.0
    %3414 = vmatpush2.msra.mxu0 0.0
    %3415 = vmatprep.mubr.f32.mxu0 0.0
    %3416 = vmatmul.mubr.f32.gmra.mxu0 %v3274
    %v3417 = vpop.f32.mrf.mxu0
    %v3418 = vadd.f32 0.0, %v3417
    %v3419 = vpop.f32.mrf.mxu0
    %3420 = vdwg.mxu0
    %v3421 = vadd.f32 %v3277, %v3347
    %v3422 = vxor.u32 %v3421, 2147483648
    %v3423 = vmul.f32 %v3422, 1.442695
    %v3424 = vpow.pop %v3423
    %v3425 = vadd.f32 %v3424, 1.0
    %v3426 = vrcp.pop %v3425
    %v3427 = vmul.f32 1.0, %v3426
    %v3428 = vadd.f32 %v3278, %v3349
    %v3429 = vxor.u32 %v3428, 2147483648
    %v3430 = vmul.f32 %v3429, 1.442695
    %v3431 = vpow.pop %v3430
    %v3432 = vadd.f32 %v3431, 1.0
    %v3433 = vrcp.pop %v3432
    %v3434 = vmul.f32 1.0, %v3433
    %v3435 = vadd.f32 %v3418, %v2746
    %v3436 = vmul.f32 %v3427, %v3435
    %v3437 = vadd.f32 %v3279, %v3436
    %v3438 = vtanh.pop %v3437
    %v3439 = vsub.f32 1.0, %v3434
    %v3440 = vmul.f32 %v3439, %v3438
    %v3441 = vmul.f32 %v3434, %v3274
    %v3442 = vadd.f32 %v3440, %v3441
    %v3443 = vsel %vm1532, %v3442, 0.0
    %s3444 = scalar_lea.vmem [#allocation13], 32
    %3445 = vst [vmem:[%s3444] sm:$0xff] %v3443
    %v3446 = vsel %vm1532, %v3442, %v3274
    %v3447 = vld [vmem:[%s1537] sm:$0xff]
    %v3448 = vld [vmem:[%s1537 + $0x8] sm:$0xf]
    %v3449 = vunpack.c.l.bf16 %v3447
    %v3450 = vunpack.c.h.bf16 %v3447
    %v3451 = vunpack.c.l.bf16 %v3448
    %3452 = vmatprep.subr.mxu0 %v2576
    %3453 = vmatpush1.msra.mxu0 %v2575
    %3454 = vmatprep.subr.mxu0 %v2573
    %3455 = vmatpush1.msra.mxu0 %v2572
    %3456 = vmatprep.subr.mxu0 %v2570
    %3457 = vmatpush1.msra.mxu0 %v2569
    %3458 = vmatprep.subr.mxu0 %v2567
    %3459 = vmatpush1.msra.mxu0 %v2566
    %3460 = vmatprep.subr.mxu0 %v2564
    %3461 = vmatpush1.msra.mxu0 %v2563
    %3462 = vmatprep.subr.mxu0 %v2561
    %3463 = vmatpush1.msra.mxu0 %v2560
    %3464 = vmatprep.subr.mxu0 %v2558
    %3465 = vmatpush1.msra.mxu0 %v2557
    %3466 = vmatprep.subr.mxu0 %v2555
    %3467 = vmatpush1.msra.mxu0 %v2554
    %3468 = vmatprep.subr.mxu0 %v2552
    %3469 = vmatpush1.msra.mxu0 %v2551
    %3470 = vmatprep.subr.mxu0 %v2549
    %3471 = vmatpush1.msra.mxu0 %v2548
    %3472 = vmatprep.subr.mxu0 %v2546
    %3473 = vmatpush1.msra.mxu0 %v2545
    %3474 = vmatprep.subr.mxu0 %v2543
    %3475 = vmatpush1.msra.mxu0 %v2542
    %3476 = vmatprep.subr.mxu0 %v2540
    %3477 = vmatpush1.msra.mxu0 %v2539
    %3478 = vmatprep.subr.mxu0 %v2537
    %3479 = vmatpush1.msra.mxu0 %v2536
    %3480 = vmatprep.subr.mxu0 %v2534
    %3481 = vmatpush1.msra.mxu0 %v2533
    %3482 = vmatprep.subr.mxu0 %v2531
    %3483 = vmatpush1.msra.mxu0 %v2530
    %3484 = vmatprep.subr.mxu0 0.0
    %3485 = vmatpush2.msra.mxu0 0.0
    %3486 = vmatprep.subr.mxu0 0.0
    %3487 = vmatpush2.msra.mxu0 0.0
    %3488 = vmatprep.subr.mxu0 0.0
    %3489 = vmatpush2.msra.mxu0 0.0
    %3490 = vmatprep.subr.mxu0 0.0
    %3491 = vmatpush2.msra.mxu0 0.0
    %3492 = vmatprep.subr.mxu0 0.0
    %3493 = vmatpush2.msra.mxu0 0.0
    %3494 = vmatprep.subr.mxu0 0.0
    %3495 = vmatpush2.msra.mxu0 0.0
    %3496 = vmatprep.subr.mxu0 0.0
    %3497 = vmatpush2.msra.mxu0 0.0
    %3498 = vmatprep.subr.mxu0 0.0
    %3499 = vmatpush2.msra.mxu0 0.0
    %3500 = vmatprep.subr.mxu0 0.0
    %3501 = vmatpush2.msra.mxu0 0.0
    %3502 = vmatprep.subr.mxu0 0.0
    %3503 = vmatpush2.msra.mxu0 0.0
    %3504 = vmatprep.subr.mxu0 0.0
    %3505 = vmatpush2.msra.mxu0 0.0
    %3506 = vmatprep.subr.mxu0 0.0
    %3507 = vmatpush2.msra.mxu0 0.0
    %3508 = vmatprep.subr.mxu0 0.0
    %3509 = vmatpush2.msra.mxu0 0.0
    %3510 = vmatprep.subr.mxu0 0.0
    %3511 = vmatpush2.msra.mxu0 0.0
    %3512 = vmatprep.subr.mxu0 0.0
    %3513 = vmatpush2.msra.mxu0 0.0
    %3514 = vmatprep.subr.mxu0 0.0
    %3515 = vmatpush2.msra.mxu0 0.0
    %3516 = vmatprep.mubr.f32.mxu0 0.0
    %3517 = vmatmul.mubr.f32.gmra.mxu0 %v3446
    %v3518 = vpop.f32.mrf.mxu0
    %v3519 = vadd.f32 0.0, %v3518
    %v3520 = vpop.f32.mrf.mxu0
    %v3521 = vadd.f32 0.0, %v3520
    %3522 = vdwg.mxu0
    %3523 = vmatprep.subr.mxu0 0.0
    %3524 = vmatpush1.msra.mxu0 %v2577
    %3525 = vmatprep.subr.mxu0 0.0
    %3526 = vmatpush1.msra.mxu0 %v2574
    %3527 = vmatprep.subr.mxu0 0.0
    %3528 = vmatpush1.msra.mxu0 %v2571
    %3529 = vmatprep.subr.mxu0 0.0
    %3530 = vmatpush1.msra.mxu0 %v2568
    %3531 = vmatprep.subr.mxu0 0.0
    %3532 = vmatpush1.msra.mxu0 %v2565
    %3533 = vmatprep.subr.mxu0 0.0
    %3534 = vmatpush1.msra.mxu0 %v2562
    %3535 = vmatprep.subr.mxu0 0.0
    %3536 = vmatpush1.msra.mxu0 %v2559
    %3537 = vmatprep.subr.mxu0 0.0
    %3538 = vmatpush1.msra.mxu0 %v2556
    %3539 = vmatprep.subr.mxu0 0.0
    %3540 = vmatpush1.msra.mxu0 %v2553
    %3541 = vmatprep.subr.mxu0 0.0
    %3542 = vmatpush1.msra.mxu0 %v2550
    %3543 = vmatprep.subr.mxu0 0.0
    %3544 = vmatpush1.msra.mxu0 %v2547
    %3545 = vmatprep.subr.mxu0 0.0
    %3546 = vmatpush1.msra.mxu0 %v2544
    %3547 = vmatprep.subr.mxu0 0.0
    %3548 = vmatpush1.msra.mxu0 %v2541
    %3549 = vmatprep.subr.mxu0 0.0
    %3550 = vmatpush1.msra.mxu0 %v2538
    %3551 = vmatprep.subr.mxu0 0.0
    %3552 = vmatpush1.msra.mxu0 %v2535
    %3553 = vmatprep.subr.mxu0 0.0
    %3554 = vmatpush1.msra.mxu0 %v2532
    %3555 = vmatprep.subr.mxu0 0.0
    %3556 = vmatpush2.msra.mxu0 0.0
    %3557 = vmatprep.subr.mxu0 0.0
    %3558 = vmatpush2.msra.mxu0 0.0
    %3559 = vmatprep.subr.mxu0 0.0
    %3560 = vmatpush2.msra.mxu0 0.0
    %3561 = vmatprep.subr.mxu0 0.0
    %3562 = vmatpush2.msra.mxu0 0.0
    %3563 = vmatprep.subr.mxu0 0.0
    %3564 = vmatpush2.msra.mxu0 0.0
    %3565 = vmatprep.subr.mxu0 0.0
    %3566 = vmatpush2.msra.mxu0 0.0
    %3567 = vmatprep.subr.mxu0 0.0
    %3568 = vmatpush2.msra.mxu0 0.0
    %3569 = vmatprep.subr.mxu0 0.0
    %3570 = vmatpush2.msra.mxu0 0.0
    %3571 = vmatprep.subr.mxu0 0.0
    %3572 = vmatpush2.msra.mxu0 0.0
    %3573 = vmatprep.subr.mxu0 0.0
    %3574 = vmatpush2.msra.mxu0 0.0
    %3575 = vmatprep.subr.mxu0 0.0
    %3576 = vmatpush2.msra.mxu0 0.0
    %3577 = vmatprep.subr.mxu0 0.0
    %3578 = vmatpush2.msra.mxu0 0.0
    %3579 = vmatprep.subr.mxu0 0.0
    %3580 = vmatpush2.msra.mxu0 0.0
    %3581 = vmatprep.subr.mxu0 0.0
    %3582 = vmatpush2.msra.mxu0 0.0
    %3583 = vmatprep.subr.mxu0 0.0
    %3584 = vmatpush2.msra.mxu0 0.0
    %3585 = vmatprep.subr.mxu0 0.0
    %3586 = vmatpush2.msra.mxu0 0.0
    %3587 = vmatprep.mubr.f32.mxu0 0.0
    %3588 = vmatmul.mubr.f32.gmra.mxu0 %v3446
    %v3589 = vpop.f32.mrf.mxu0
    %v3590 = vadd.f32 0.0, %v3589
    %v3591 = vpop.f32.mrf.mxu0
    %3592 = vdwg.mxu0
    %v3593 = vadd.f32 %v3449, %v3519
    %v3594 = vxor.u32 %v3593, 2147483648
    %v3595 = vmul.f32 %v3594, 1.442695
    %v3596 = vpow.pop %v3595
    %v3597 = vadd.f32 %v3596, 1.0
    %v3598 = vrcp.pop %v3597
    %v3599 = vmul.f32 1.0, %v3598
    %v3600 = vadd.f32 %v3450, %v3521
    %v3601 = vxor.u32 %v3600, 2147483648
    %v3602 = vmul.f32 %v3601, 1.442695
    %v3603 = vpow.pop %v3602
    %v3604 = vadd.f32 %v3603, 1.0
    %v3605 = vrcp.pop %v3604
    %v3606 = vmul.f32 1.0, %v3605
    %v3607 = vadd.f32 %v3590, %v2746
    %v3608 = vmul.f32 %v3599, %v3607
    %v3609 = vadd.f32 %v3451, %v3608
    %v3610 = vtanh.pop %v3609
    %v3611 = vsub.f32 1.0, %v3606
    %v3612 = vmul.f32 %v3611, %v3610
    %v3613 = vmul.f32 %v3606, %v3446
    %v3614 = vadd.f32 %v3612, %v3613
    %v3615 = vsel %vm1713, %v3614, 0.0
    %s3616 = scalar_lea.vmem [#allocation13], 40
    %3617 = vst [vmem:[%s3616] sm:$0xff] %v3615
    %v3618 = vsel %vm1713, %v3614, %v3446
    %v3619 = vld [vmem:[%s1718] sm:$0xff]
    %v3620 = vld [vmem:[%s1718 + $0x8] sm:$0xf]
    %v3621 = vunpack.c.l.bf16 %v3619
    %v3622 = vunpack.c.h.bf16 %v3619
    %v3623 = vunpack.c.l.bf16 %v3620
    %3624 = vmatprep.subr.mxu0 %v2576
    %3625 = vmatpush1.msra.mxu0 %v2575
    %3626 = vmatprep.subr.mxu0 %v2573
    %3627 = vmatpush1.msra.mxu0 %v2572
    %3628 = vmatprep.subr.mxu0 %v2570
    %3629 = vmatpush1.msra.mxu0 %v2569
    %3630 = vmatprep.subr.mxu0 %v2567
    %3631 = vmatpush1.msra.mxu0 %v2566
    %3632 = vmatprep.subr.mxu0 %v2564
    %3633 = vmatpush1.msra.mxu0 %v2563
    %3634 = vmatprep.subr.mxu0 %v2561
    %3635 = vmatpush1.msra.mxu0 %v2560
    %3636 = vmatprep.subr.mxu0 %v2558
    %3637 = vmatpush1.msra.mxu0 %v2557
    %3638 = vmatprep.subr.mxu0 %v2555
    %3639 = vmatpush1.msra.mxu0 %v2554
    %3640 = vmatprep.subr.mxu0 %v2552
    %3641 = vmatpush1.msra.mxu0 %v2551
    %3642 = vmatprep.subr.mxu0 %v2549
    %3643 = vmatpush1.msra.mxu0 %v2548
    %3644 = vmatprep.subr.mxu0 %v2546
    %3645 = vmatpush1.msra.mxu0 %v2545
    %3646 = vmatprep.subr.mxu0 %v2543
    %3647 = vmatpush1.msra.mxu0 %v2542
    %3648 = vmatprep.subr.mxu0 %v2540
    %3649 = vmatpush1.msra.mxu0 %v2539
    %3650 = vmatprep.subr.mxu0 %v2537
    %3651 = vmatpush1.msra.mxu0 %v2536
    %3652 = vmatprep.subr.mxu0 %v2534
    %3653 = vmatpush1.msra.mxu0 %v2533
    %3654 = vmatprep.subr.mxu0 %v2531
    %3655 = vmatpush1.msra.mxu0 %v2530
    %3656 = vmatprep.subr.mxu0 0.0
    %3657 = vmatpush2.msra.mxu0 0.0
    %3658 = vmatprep.subr.mxu0 0.0
    %3659 = vmatpush2.msra.mxu0 0.0
    %3660 = vmatprep.subr.mxu0 0.0
    %3661 = vmatpush2.msra.mxu0 0.0
    %3662 = vmatprep.subr.mxu0 0.0
    %3663 = vmatpush2.msra.mxu0 0.0
    %3664 = vmatprep.subr.mxu0 0.0
    %3665 = vmatpush2.msra.mxu0 0.0
    %3666 = vmatprep.subr.mxu0 0.0
    %3667 = vmatpush2.msra.mxu0 0.0
    %3668 = vmatprep.subr.mxu0 0.0
    %3669 = vmatpush2.msra.mxu0 0.0
    %3670 = vmatprep.subr.mxu0 0.0
    %3671 = vmatpush2.msra.mxu0 0.0
    %3672 = vmatprep.subr.mxu0 0.0
    %3673 = vmatpush2.msra.mxu0 0.0
    %3674 = vmatprep.subr.mxu0 0.0
    %3675 = vmatpush2.msra.mxu0 0.0
    %3676 = vmatprep.subr.mxu0 0.0
    %3677 = vmatpush2.msra.mxu0 0.0
    %3678 = vmatprep.subr.mxu0 0.0
    %3679 = vmatpush2.msra.mxu0 0.0
    %3680 = vmatprep.subr.mxu0 0.0
    %3681 = vmatpush2.msra.mxu0 0.0
    %3682 = vmatprep.subr.mxu0 0.0
    %3683 = vmatpush2.msra.mxu0 0.0
    %3684 = vmatprep.subr.mxu0 0.0
    %3685 = vmatpush2.msra.mxu0 0.0
    %3686 = vmatprep.subr.mxu0 0.0
    %3687 = vmatpush2.msra.mxu0 0.0
    %3688 = vmatprep.mubr.f32.mxu0 0.0
    %3689 = vmatmul.mubr.f32.gmra.mxu0 %v3618
    %v3690 = vpop.f32.mrf.mxu0
    %v3691 = vadd.f32 0.0, %v3690
    %v3692 = vpop.f32.mrf.mxu0
    %v3693 = vadd.f32 0.0, %v3692
    %3694 = vdwg.mxu0
    %3695 = vmatprep.subr.mxu0 0.0
    %3696 = vmatpush1.msra.mxu0 %v2577
    %3697 = vmatprep.subr.mxu0 0.0
    %3698 = vmatpush1.msra.mxu0 %v2574
    %3699 = vmatprep.subr.mxu0 0.0
    %3700 = vmatpush1.msra.mxu0 %v2571
    %3701 = vmatprep.subr.mxu0 0.0
    %3702 = vmatpush1.msra.mxu0 %v2568
    %3703 = vmatprep.subr.mxu0 0.0
    %3704 = vmatpush1.msra.mxu0 %v2565
    %3705 = vmatprep.subr.mxu0 0.0
    %3706 = vmatpush1.msra.mxu0 %v2562
    %3707 = vmatprep.subr.mxu0 0.0
    %3708 = vmatpush1.msra.mxu0 %v2559
    %3709 = vmatprep.subr.mxu0 0.0
    %3710 = vmatpush1.msra.mxu0 %v2556
    %3711 = vmatprep.subr.mxu0 0.0
    %3712 = vmatpush1.msra.mxu0 %v2553
    %3713 = vmatprep.subr.mxu0 0.0
    %3714 = vmatpush1.msra.mxu0 %v2550
    %3715 = vmatprep.subr.mxu0 0.0
    %3716 = vmatpush1.msra.mxu0 %v2547
    %3717 = vmatprep.subr.mxu0 0.0
    %3718 = vmatpush1.msra.mxu0 %v2544
    %3719 = vmatprep.subr.mxu0 0.0
    %3720 = vmatpush1.msra.mxu0 %v2541
    %3721 = vmatprep.subr.mxu0 0.0
    %3722 = vmatpush1.msra.mxu0 %v2538
    %3723 = vmatprep.subr.mxu0 0.0
    %3724 = vmatpush1.msra.mxu0 %v2535
    %3725 = vmatprep.subr.mxu0 0.0
    %3726 = vmatpush1.msra.mxu0 %v2532
    %3727 = vmatprep.subr.mxu0 0.0
    %3728 = vmatpush2.msra.mxu0 0.0
    %3729 = vmatprep.subr.mxu0 0.0
    %3730 = vmatpush2.msra.mxu0 0.0
    %3731 = vmatprep.subr.mxu0 0.0
    %3732 = vmatpush2.msra.mxu0 0.0
    %3733 = vmatprep.subr.mxu0 0.0
    %3734 = vmatpush2.msra.mxu0 0.0
    %3735 = vmatprep.subr.mxu0 0.0
    %3736 = vmatpush2.msra.mxu0 0.0
    %3737 = vmatprep.subr.mxu0 0.0
    %3738 = vmatpush2.msra.mxu0 0.0
    %3739 = vmatprep.subr.mxu0 0.0
    %3740 = vmatpush2.msra.mxu0 0.0
    %3741 = vmatprep.subr.mxu0 0.0
    %3742 = vmatpush2.msra.mxu0 0.0
    %3743 = vmatprep.subr.mxu0 0.0
    %3744 = vmatpush2.msra.mxu0 0.0
    %3745 = vmatprep.subr.mxu0 0.0
    %3746 = vmatpush2.msra.mxu0 0.0
    %3747 = vmatprep.subr.mxu0 0.0
    %3748 = vmatpush2.msra.mxu0 0.0
    %3749 = vmatprep.subr.mxu0 0.0
    %3750 = vmatpush2.msra.mxu0 0.0
    %3751 = vmatprep.subr.mxu0 0.0
    %3752 = vmatpush2.msra.mxu0 0.0
    %3753 = vmatprep.subr.mxu0 0.0
    %3754 = vmatpush2.msra.mxu0 0.0
    %3755 = vmatprep.subr.mxu0 0.0
    %3756 = vmatpush2.msra.mxu0 0.0
    %3757 = vmatprep.subr.mxu0 0.0
    %3758 = vmatpush2.msra.mxu0 0.0
    %3759 = vmatprep.mubr.f32.mxu0 0.0
    %3760 = vmatmul.mubr.f32.gmra.mxu0 %v3618
    %v3761 = vpop.f32.mrf.mxu0
    %v3762 = vadd.f32 0.0, %v3761
    %v3763 = vpop.f32.mrf.mxu0
    %3764 = vdwg.mxu0
    %v3765 = vadd.f32 %v3621, %v3691
    %v3766 = vxor.u32 %v3765, 2147483648
    %v3767 = vmul.f32 %v3766, 1.442695
    %v3768 = vpow.pop %v3767
    %v3769 = vadd.f32 %v3768, 1.0
    %v3770 = vrcp.pop %v3769
    %v3771 = vmul.f32 1.0, %v3770
    %v3772 = vadd.f32 %v3622, %v3693
    %v3773 = vxor.u32 %v3772, 2147483648
    %v3774 = vmul.f32 %v3773, 1.442695
    %v3775 = vpow.pop %v3774
    %v3776 = vadd.f32 %v3775, 1.0
    %v3777 = vrcp.pop %v3776
    %v3778 = vmul.f32 1.0, %v3777
    %v3779 = vadd.f32 %v3762, %v2746
    %v3780 = vmul.f32 %v3771, %v3779
    %v3781 = vadd.f32 %v3623, %v3780
    %v3782 = vtanh.pop %v3781
    %v3783 = vsub.f32 1.0, %v3778
    %v3784 = vmul.f32 %v3783, %v3782
    %v3785 = vmul.f32 %v3778, %v3618
    %v3786 = vadd.f32 %v3784, %v3785
    %v3787 = vsel %vm1894, %v3786, 0.0
    %s3788 = scalar_lea.vmem [#allocation13], 48
    %3789 = vst [vmem:[%s3788] sm:$0xff] %v3787
    %v3790 = vsel %vm1894, %v3786, %v3618
    %v3791 = vld [vmem:[%s1899] sm:$0xff]
    %v3792 = vld [vmem:[%s1899 + $0x8] sm:$0xf]
    %v3793 = vunpack.c.l.bf16 %v3791
    %v3794 = vunpack.c.h.bf16 %v3791
    %v3795 = vunpack.c.l.bf16 %v3792
    %3796 = vmatprep.subr.mxu0 %v2576
    %3797 = vmatpush1.msra.mxu0 %v2575
    %3798 = vmatprep.subr.mxu0 %v2573
    %3799 = vmatpush1.msra.mxu0 %v2572
    %3800 = vmatprep.subr.mxu0 %v2570
    %3801 = vmatpush1.msra.mxu0 %v2569
    %3802 = vmatprep.subr.mxu0 %v2567
    %3803 = vmatpush1.msra.mxu0 %v2566
    %3804 = vmatprep.subr.mxu0 %v2564
    %3805 = vmatpush1.msra.mxu0 %v2563
    %3806 = vmatprep.subr.mxu0 %v2561
    %3807 = vmatpush1.msra.mxu0 %v2560
    %3808 = vmatprep.subr.mxu0 %v2558
    %3809 = vmatpush1.msra.mxu0 %v2557
    %3810 = vmatprep.subr.mxu0 %v2555
    %3811 = vmatpush1.msra.mxu0 %v2554
    %3812 = vmatprep.subr.mxu0 %v2552
    %3813 = vmatpush1.msra.mxu0 %v2551
    %3814 = vmatprep.subr.mxu0 %v2549
    %3815 = vmatpush1.msra.mxu0 %v2548
    %3816 = vmatprep.subr.mxu0 %v2546
    %3817 = vmatpush1.msra.mxu0 %v2545
    %3818 = vmatprep.subr.mxu0 %v2543
    %3819 = vmatpush1.msra.mxu0 %v2542
    %3820 = vmatprep.subr.mxu0 %v2540
    %3821 = vmatpush1.msra.mxu0 %v2539
    %3822 = vmatprep.subr.mxu0 %v2537
    %3823 = vmatpush1.msra.mxu0 %v2536
    %3824 = vmatprep.subr.mxu0 %v2534
    %3825 = vmatpush1.msra.mxu0 %v2533
    %3826 = vmatprep.subr.mxu0 %v2531
    %3827 = vmatpush1.msra.mxu0 %v2530
    %3828 = vmatprep.subr.mxu0 0.0
    %3829 = vmatpush2.msra.mxu0 0.0
    %3830 = vmatprep.subr.mxu0 0.0
    %3831 = vmatpush2.msra.mxu0 0.0
    %3832 = vmatprep.subr.mxu0 0.0
    %3833 = vmatpush2.msra.mxu0 0.0
    %3834 = vmatprep.subr.mxu0 0.0
    %3835 = vmatpush2.msra.mxu0 0.0
    %3836 = vmatprep.subr.mxu0 0.0
    %3837 = vmatpush2.msra.mxu0 0.0
    %3838 = vmatprep.subr.mxu0 0.0
    %3839 = vmatpush2.msra.mxu0 0.0
    %3840 = vmatprep.subr.mxu0 0.0
    %3841 = vmatpush2.msra.mxu0 0.0
    %3842 = vmatprep.subr.mxu0 0.0
    %3843 = vmatpush2.msra.mxu0 0.0
    %3844 = vmatprep.subr.mxu0 0.0
    %3845 = vmatpush2.msra.mxu0 0.0
    %3846 = vmatprep.subr.mxu0 0.0
    %3847 = vmatpush2.msra.mxu0 0.0
    %3848 = vmatprep.subr.mxu0 0.0
    %3849 = vmatpush2.msra.mxu0 0.0
    %3850 = vmatprep.subr.mxu0 0.0
    %3851 = vmatpush2.msra.mxu0 0.0
    %3852 = vmatprep.subr.mxu0 0.0
    %3853 = vmatpush2.msra.mxu0 0.0
    %3854 = vmatprep.subr.mxu0 0.0
    %3855 = vmatpush2.msra.mxu0 0.0
    %3856 = vmatprep.subr.mxu0 0.0
    %3857 = vmatpush2.msra.mxu0 0.0
    %3858 = vmatprep.subr.mxu0 0.0
    %3859 = vmatpush2.msra.mxu0 0.0
    %3860 = vmatprep.mubr.f32.mxu0 0.0
    %3861 = vmatmul.mubr.f32.gmra.mxu0 %v3790
    %v3862 = vpop.f32.mrf.mxu0
    %v3863 = vadd.f32 0.0, %v3862
    %v3864 = vpop.f32.mrf.mxu0
    %v3865 = vadd.f32 0.0, %v3864
    %3866 = vdwg.mxu0
    %3867 = vmatprep.subr.mxu0 0.0
    %3868 = vmatpush1.msra.mxu0 %v2577
    %3869 = vmatprep.subr.mxu0 0.0
    %3870 = vmatpush1.msra.mxu0 %v2574
    %3871 = vmatprep.subr.mxu0 0.0
    %3872 = vmatpush1.msra.mxu0 %v2571
    %3873 = vmatprep.subr.mxu0 0.0
    %3874 = vmatpush1.msra.mxu0 %v2568
    %3875 = vmatprep.subr.mxu0 0.0
    %3876 = vmatpush1.msra.mxu0 %v2565
    %3877 = vmatprep.subr.mxu0 0.0
    %3878 = vmatpush1.msra.mxu0 %v2562
    %3879 = vmatprep.subr.mxu0 0.0
    %3880 = vmatpush1.msra.mxu0 %v2559
    %3881 = vmatprep.subr.mxu0 0.0
    %3882 = vmatpush1.msra.mxu0 %v2556
    %3883 = vmatprep.subr.mxu0 0.0
    %3884 = vmatpush1.msra.mxu0 %v2553
    %3885 = vmatprep.subr.mxu0 0.0
    %3886 = vmatpush1.msra.mxu0 %v2550
    %3887 = vmatprep.subr.mxu0 0.0
    %3888 = vmatpush1.msra.mxu0 %v2547
    %3889 = vmatprep.subr.mxu0 0.0
    %3890 = vmatpush1.msra.mxu0 %v2544
    %3891 = vmatprep.subr.mxu0 0.0
    %3892 = vmatpush1.msra.mxu0 %v2541
    %3893 = vmatprep.subr.mxu0 0.0
    %3894 = vmatpush1.msra.mxu0 %v2538
    %3895 = vmatprep.subr.mxu0 0.0
    %3896 = vmatpush1.msra.mxu0 %v2535
    %3897 = vmatprep.subr.mxu0 0.0
    %3898 = vmatpush1.msra.mxu0 %v2532
    %3899 = vmatprep.subr.mxu0 0.0
    %3900 = vmatpush2.msra.mxu0 0.0
    %3901 = vmatprep.subr.mxu0 0.0
    %3902 = vmatpush2.msra.mxu0 0.0
    %3903 = vmatprep.subr.mxu0 0.0
    %3904 = vmatpush2.msra.mxu0 0.0
    %3905 = vmatprep.subr.mxu0 0.0
    %3906 = vmatpush2.msra.mxu0 0.0
    %3907 = vmatprep.subr.mxu0 0.0
    %3908 = vmatpush2.msra.mxu0 0.0
    %3909 = vmatprep.subr.mxu0 0.0
    %3910 = vmatpush2.msra.mxu0 0.0
    %3911 = vmatprep.subr.mxu0 0.0
    %3912 = vmatpush2.msra.mxu0 0.0
    %3913 = vmatprep.subr.mxu0 0.0
    %3914 = vmatpush2.msra.mxu0 0.0
    %3915 = vmatprep.subr.mxu0 0.0
    %3916 = vmatpush2.msra.mxu0 0.0
    %3917 = vmatprep.subr.mxu0 0.0
    %3918 = vmatpush2.msra.mxu0 0.0
    %3919 = vmatprep.subr.mxu0 0.0
    %3920 = vmatpush2.msra.mxu0 0.0
    %3921 = vmatprep.subr.mxu0 0.0
    %3922 = vmatpush2.msra.mxu0 0.0
    %3923 = vmatprep.subr.mxu0 0.0
    %3924 = vmatpush2.msra.mxu0 0.0
    %3925 = vmatprep.subr.mxu0 0.0
    %3926 = vmatpush2.msra.mxu0 0.0
    %3927 = vmatprep.subr.mxu0 0.0
    %3928 = vmatpush2.msra.mxu0 0.0
    %3929 = vmatprep.subr.mxu0 0.0
    %3930 = vmatpush2.msra.mxu0 0.0
    %3931 = vmatprep.mubr.f32.mxu0 0.0
    %3932 = vmatmul.mubr.f32.gmra.mxu0 %v3790
    %v3933 = vpop.f32.mrf.mxu0
    %v3934 = vadd.f32 0.0, %v3933
    %v3935 = vpop.f32.mrf.mxu0
    %3936 = vdwg.mxu0
    %v3937 = vadd.f32 %v3793, %v3863
    %v3938 = vxor.u32 %v3937, 2147483648
    %v3939 = vmul.f32 %v3938, 1.442695
    %v3940 = vpow.pop %v3939
    %v3941 = vadd.f32 %v3940, 1.0
    %v3942 = vrcp.pop %v3941
    %v3943 = vmul.f32 1.0, %v3942
    %v3944 = vadd.f32 %v3794, %v3865
    %v3945 = vxor.u32 %v3944, 2147483648
    %v3946 = vmul.f32 %v3945, 1.442695
    %v3947 = vpow.pop %v3946
    %v3948 = vadd.f32 %v3947, 1.0
    %v3949 = vrcp.pop %v3948
    %v3950 = vmul.f32 1.0, %v3949
    %v3951 = vadd.f32 %v3934, %v2746
    %v3952 = vmul.f32 %v3943, %v3951
    %v3953 = vadd.f32 %v3795, %v3952
    %v3954 = vtanh.pop %v3953
    %v3955 = vsub.f32 1.0, %v3950
    %v3956 = vmul.f32 %v3955, %v3954
    %v3957 = vmul.f32 %v3950, %v3790
    %v3958 = vadd.f32 %v3956, %v3957
    %v3959 = vsel %vm2075, %v3958, 0.0
    %s3960 = scalar_lea.vmem [#allocation13], 56
    %3961 = vst [vmem:[%s3960] sm:$0xff] %v3959
    %v3962 = vsel %vm2075, %v3958, %v3790
    %3963 = vst [vmem:[%s2580] sm:$0xff] %v3962
    // Predicated region
    $region58: #{tpu_custom_call.1} parent=1 // pred_check
      _
    $region59: #{tpu_custom_call.1} parent=1 // pred_check_branch
      %3965 = sbr.rel (0) target = $region61
    $region60: #{tpu_custom_call.1} parent=1 // pred_region
      %s3967 = ssub.s32 1024, 1024
      %3968 = vsyncadd [#allocation6], %s3967
      %s3969 = sshll.u32 [#allocation13], 4
      %s3970 = int_to_ptr.vmem [resolvable:$true] %s3969
      %3975 = dma.vmem_to_hbm [thread:$0]  %s3970, 1024, %s8, [#allocation6], 128, 128, 8
    $region61: #{tpu_custom_call.1} parent=1 // pred_fallthru
      _
    // Predicated region
    $region62: #{tpu_custom_call.1} parent=1 // pred_check
      _
    $region63: #{tpu_custom_call.1} parent=1 // pred_check_branch
      %3977 = sbr.rel (0) target = $region65
    $region64: #{tpu_custom_call.1} parent=1 // pred_region
      %s3979 = ssub.s32 256, 256
      %3980 = vsyncadd [#allocation15], %s3979
      %s3981 = sshll.u32 [#allocation14], 4
      %s3982 = int_to_ptr.vmem [resolvable:$true] %s3981
      %3987 = dma.vmem_to_hbm [thread:$0]  %s3982, 256, %s9, [#allocation15], 128, 128, 8
    $region65: #{tpu_custom_call.1} parent=1 // pred_fallthru
      _
    // Predicated region
    $region66: #{tpu_custom_call.1} parent=1 // pred_check
      _
    $region67: #{tpu_custom_call.1} parent=1 // pred_check_branch
      %3989 = sbr.rel (0) target = $region69
    $region68: #{tpu_custom_call.1} parent=1 // pred_region
      %3990 = dma.done [#allocation6], 1024
    $region69: #{tpu_custom_call.1} parent=1 // pred_fallthru
      _
    // Predicated region
    $region70: #{tpu_custom_call.1} parent=1 // pred_check
      _
    $region71: #{tpu_custom_call.1} parent=1 // pred_check_branch
      %3992 = sbr.rel (0) target = $region73
    $region72: #{tpu_custom_call.1} parent=1 // pred_region
      %3993 = dma.done [#allocation15], 256
    $region73: #{tpu_custom_call.1} parent=1 // pred_fallthru
      _
    %3994 = vsyncpa [#allocation5], 1
    %3995 = vsyncpa [#allocation8], 1
    %3996 = vsyncpa [#allocation11], 1
    %3997 = vsyncpa [#allocation6], 1
    %3998 = vsyncpa [#allocation15], 1

</llo_original>
